<compile_context>
chip_gen: v7x
topology: tpu7x:2x2x1
jax: 0.10.0
libtpu: 0.0.40
codegen_flags: <defaults>
</compile_context>

<pallas_src>
import functools
import math

import jax
import jax.numpy as jnp
from jax.experimental import pallas as pl
from jax.experimental.pallas import tpu as pltpu


# ----------------------------- helpers -----------------------------

def _pick_tile(total, target, align):
    """Largest `align`-multiple divisor of `total` that is <= target, else full."""
    if total <= target:
        return total
    t = (target // align) * align
    while t >= align:
        if total % t == 0:
            return t
        t -= align
    return total


# ----------------------------- Pallas kernels -----------------------------

def _linear_kernel(x_ref, wt_ref, b_ref, o_ref, *, activation):
    # y = x @ W^T + b   (wt_ref already holds W^T, shape (in, out_tile))
    y = jnp.dot(x_ref[...], wt_ref[...], preferred_element_type=jnp.float32)
    y = y + b_ref[...]
    if activation == "relu":
        y = jnp.maximum(y, 0.0)
    o_ref[...] = y.astype(o_ref.dtype)


def linear(x2d, wt, b, activation=None, *, row_target=256, col_target=512):
    """x2d: (rows, in); wt: (in, out) [pre-transposed]; b: (out,) -> (rows, out).

    Tiled over rows (8-aligned) and out-features (128-aligned); reduction dim kept
    whole (no accumulator needed)."""
    rows, in_f = x2d.shape
    out_f = wt.shape[1]
    tr = _pick_tile(rows, row_target, 8)
    tc = _pick_tile(out_f, col_target, 128)
    grid = (rows // tr, out_f // tc)
    return pl.pallas_call(
        functools.partial(_linear_kernel, activation=activation),
        grid=grid,
        out_shape=jax.ShapeDtypeStruct((rows, out_f), x2d.dtype),
        in_specs=[
            pl.BlockSpec((tr, in_f), lambda i, j: (i, 0)),
            pl.BlockSpec((in_f, tc), lambda i, j: (0, j)),
            pl.BlockSpec((1, tc), lambda i, j: (0, j)),
        ],
        out_specs=pl.BlockSpec((tr, tc), lambda i, j: (i, j)),
        compiler_params=pltpu.CompilerParams(
            dimension_semantics=("parallel", "parallel")),
    )(x2d, wt, b.reshape(1, out_f))


def _ffn_block_kernel(x_ref, w1_ref, b1_ref, w2_ref, b2_ref, g_ref, beta_ref,
                      o_ref, *, eps):
    # LayerNorm( ff2(relu(ff1(x))) + x )  -- hidden (rows, 4E) never leaves VMEM.
    x = x_ref[...].astype(jnp.float32)
    h = jnp.dot(x, w1_ref[...], preferred_element_type=jnp.float32) + b1_ref[...]
    h = jnp.maximum(h, 0.0)
    y = jnp.dot(h, w2_ref[...], preferred_element_type=jnp.float32) + b2_ref[...]
    z = y + x
    mean = jnp.mean(z, axis=-1, keepdims=True)
    c = z - mean
    var = jnp.mean(c * c, axis=-1, keepdims=True)
    o_ref[...] = ((c * jax.lax.rsqrt(var + eps)) * g_ref[...]
                  + beta_ref[...]).astype(o_ref.dtype)


def ffn_block(x2d, w1t, b1, w2t, b2, gamma, beta, *, eps=1e-5, row_target=256):
    rows, e = x2d.shape
    hid = w1t.shape[1]
    tr = _pick_tile(rows, row_target, 8)
    return pl.pallas_call(
        functools.partial(_ffn_block_kernel, eps=eps),
        grid=(rows // tr,),
        out_shape=jax.ShapeDtypeStruct((rows, e), x2d.dtype),
        in_specs=[
            pl.BlockSpec((tr, e), lambda i: (i, 0)),
            pl.BlockSpec((e, hid), lambda i: (0, 0)),
            pl.BlockSpec((1, hid), lambda i: (0, 0)),
            pl.BlockSpec((hid, e), lambda i: (0, 0)),
            pl.BlockSpec((1, e), lambda i: (0, 0)),
            pl.BlockSpec((1, e), lambda i: (0, 0)),
            pl.BlockSpec((1, e), lambda i: (0, 0)),
        ],
        out_specs=pl.BlockSpec((tr, e), lambda i: (i, 0)),
        compiler_params=pltpu.CompilerParams(dimension_semantics=("parallel",)),
    )(x2d, w1t, b1.reshape(1, hid), w2t, b2.reshape(1, e),
      gamma.reshape(1, e), beta.reshape(1, e))


def _attn_block_kernel(v_ref, k_ref, q_ref, m_ref, wv_ref, wk_ref, wq_ref,
                       fcw_ref, fcb_ref, g_ref, beta_ref, o_ref, *, heads, eps):
    """Per batch: block-diag q/k/v projection (all heads at once), per-head masked
    softmax attention, lane-dense head concat, fc_out, residual add, LayerNorm."""
    vin = v_ref[...].astype(jnp.float32)
    kin = k_ref[...].astype(jnp.float32)
    qin = q_ref[...].astype(jnp.float32)

    # Wide projections (scale 1/sqrt(E) already folded into wq).
    q = jnp.dot(qin, wq_ref[...], preferred_element_type=jnp.float32)
    k = jnp.dot(kin, wk_ref[...], preferred_element_type=jnp.float32)
    v = jnp.dot(vin, wv_ref[...], preferred_element_type=jnp.float32)

    lq, e = q.shape
    lk = k.shape[0]
    d = e // heads
    mask0 = jnp.broadcast_to(m_ref[...] == 0, (lq, lk))

    outs = []
    for h in range(heads):
        qh = q[:, h * d:(h + 1) * d]
        kh = k[:, h * d:(h + 1) * d]
        vh = v[:, h * d:(h + 1) * d]
        energy = jnp.dot(qh, kh.T, preferred_element_type=jnp.float32)   # (Lq, Lk)
        energy = jnp.where(mask0, -1e20, energy)                          # masked_fill
        energy = energy - jnp.max(energy, axis=-1, keepdims=True)
        p = jnp.exp(energy)
        p = p * pl.reciprocal(jnp.sum(p, axis=-1, keepdims=True), approx=True)
        outs.append(jnp.dot(p, vh, preferred_element_type=jnp.float32))
    attn = jnp.concatenate(outs, axis=-1)                                 # (Lq, E)

    # fc_out + residual + LayerNorm epilogue (all in VMEM).
    y = jnp.dot(attn, fcw_ref[...], preferred_element_type=jnp.float32) + fcb_ref[...]
    x = y + qin
    mean = jnp.mean(x, axis=-1, keepdims=True)
    c = x - mean
    var = jnp.mean(c * c, axis=-1, keepdims=True)
    o_ref[...] = ((c * jax.lax.rsqrt(var + eps)) * g_ref[...]
                  + beta_ref[...]).astype(o_ref.dtype)


def attention_block(attn_p, ln_g, ln_b, value, key_, query, mask, *, heads, eps=1e-5):
    """LayerNorm( SelfAttention(value, key, query, mask) + query ).

    value/key: (N, Lk, E); query: (N, Lq, E); mask: (N or 1, Lq or 1, Lk) int32.
    Grid over batch only -> lane-dense (Lq, E) output slab per step."""
    n, lq, e = query.shape
    lk = key_.shape[1]
    scale = 1.0 / math.sqrt(e)

    # Expand the shared per-head (d,d) weights to block-diagonal (E,E) once.
    eye = jnp.eye(heads, dtype=jnp.float32)
    wq_bd = jnp.kron(eye, attn_p["wq_t"]) * scale   # scale folded into Q projection
    wk_bd = jnp.kron(eye, attn_p["wk_t"])
    wv_bd = jnp.kron(eye, attn_p["wv_t"])

    mb, mq, mk = mask.shape
    mask_map = (lambda b: (b, 0, 0)) if mb == n else (lambda b: (0, 0, 0))
    sq = pl.Squeezed()

    return pl.pallas_call(
        functools.partial(_attn_block_kernel, heads=heads, eps=eps),
        grid=(n,),
        out_shape=jax.ShapeDtypeStruct((n, lq, e), query.dtype),
        in_specs=[
            pl.BlockSpec((sq, lk, e), lambda b: (b, 0, 0)),   # value
            pl.BlockSpec((sq, lk, e), lambda b: (b, 0, 0)),   # key
            pl.BlockSpec((sq, lq, e), lambda b: (b, 0, 0)),   # query (also residual)
            pl.BlockSpec((sq, mq, mk), mask_map),             # mask (int32)
            pl.BlockSpec((e, e), lambda b: (0, 0)),           # wv block-diag
            pl.BlockSpec((e, e), lambda b: (0, 0)),           # wk block-diag
            pl.BlockSpec((e, e), lambda b: (0, 0)),           # wq block-diag (scaled)
            pl.BlockSpec((e, e), lambda b: (0, 0)),           # fc_out W^T
            pl.BlockSpec((1, e), lambda b: (0, 0)),           # fc_out bias
            pl.BlockSpec((1, e), lambda b: (0, 0)),           # ln gamma
            pl.BlockSpec((1, e), lambda b: (0, 0)),           # ln beta
        ],
        out_specs=pl.BlockSpec((sq, lq, e), lambda b: (b, 0, 0)),
        compiler_params=pltpu.CompilerParams(dimension_semantics=("parallel",)),
    )(value, key_, query, mask, wv_bd, wk_bd, wq_bd,
      attn_p["fc_wt"], attn_p["fc_b"].reshape(1, e),
      ln_g.reshape(1, e), ln_b.reshape(1, e))


# ----------------------------- model glue (plain JAX) -----------------------------

def transformer_block_forward(p, value, key_, query, mask, *, heads):
    n, lq, e = query.shape
    x = attention_block(p["attention"], p["ln1_g"], p["ln1_b"],
                        value, key_, query, mask, heads=heads)
    out2d = ffn_block(x.reshape(n * lq, e),
                      p["ff1_wt"], p["ff1_b"], p["ff2_wt"], p["ff2_b"],
                      p["ln2_g"], p["ln2_b"])
    return out2d.reshape(n, lq, e)


def encoder_forward(p, src, src_mask, *, heads):
    n, l = src.shape
    # TODO(synk): embedding lookup is a gather -> plain-JAX glue, not a Pallas kernel.
    out = p["tok_emb"][src] + p["pos_emb"][jnp.arange(l)][None, :, :]
    for lp in p["layers"]:
        out = transformer_block_forward(lp, out, out, out, src_mask, heads=heads)
    return out


def decoder_forward(p, trg, enc_out, src_mask, trg_mask, *, heads, embed_size):
    n, l = trg.shape
    x = p["tok_emb"][trg] + p["pos_emb"][jnp.arange(l)][None, :, :]
    for lp in p["layers"]:
        # masked self-attention + norm (DecoderBlock.norm)
        query = attention_block(lp["self_attn"], lp["ln_g"], lp["ln_b"],
                                x, x, x, trg_mask, heads=heads)
        # cross-attention transformer block over encoder output
        x = transformer_block_forward(lp["block"], enc_out, enc_out, query,
                                      src_mask, heads=heads)
    out = linear(x.reshape(n * l, embed_size), p["fc_wt"], p["fc_b"])
    return out.reshape(n, l, p["fc_wt"].shape[1])


def transformer_forward(params, src, trg, src_pad_idx, *, heads, embed_size):
    n, trg_len = trg.shape
    # Compact int masks (no f32 (N,1,Lq,Lk) broadcast in HBM).
    src_mask = (src != src_pad_idx).astype(jnp.int32)[:, None, :]          # (N, 1, Ls)
    trg_mask = jnp.tril(jnp.ones((trg_len, trg_len), jnp.int32))[None]     # (1, Lt, Lt)
    enc_src = encoder_forward(params["encoder"], src, src_mask, heads=heads)
    out = decoder_forward(params["decoder"], trg, enc_src, src_mask, trg_mask,
                          heads=heads, embed_size=embed_size)
    return out


# ----------------------------- deterministic parameter init -----------------------------
# Weights are stored pre-transposed in (in, out) layout so no transpose per forward.

def init_params(key, src_vocab, trg_vocab, embed_size, num_layers, heads, fexp, max_len):
    keys = iter(jax.random.split(key, 256))
    d = embed_size // heads

    def dense_t(in_f, out_f, scale=0.05):          # returns W^T : (in, out)
        return scale * jax.random.normal(next(keys), (in_f, out_f), jnp.float32)

    def emb(rows, cols, scale=0.1):
        return scale * jax.random.normal(next(keys), (rows, cols), jnp.float32)

    def attn_params():
        return {
            "wq_t": dense_t(d, d), "wk_t": dense_t(d, d), "wv_t": dense_t(d, d),
            "fc_wt": dense_t(embed_size, embed_size),
            "fc_b": jnp.zeros((embed_size,), jnp.float32),
        }

    def block_params():
        return {
            "attention": attn_params(),
            "ln1_g": jnp.ones((embed_size,), jnp.float32),
            "ln1_b": jnp.zeros((embed_size,), jnp.float32),
            "ff1_wt": dense_t(embed_size, fexp * embed_size),
            "ff1_b": jnp.zeros((fexp * embed_size,), jnp.float32),
            "ff2_wt": dense_t(fexp * embed_size, embed_size),
            "ff2_b": jnp.zeros((embed_size,), jnp.float32),
            "ln2_g": jnp.ones((embed_size,), jnp.float32),
            "ln2_b": jnp.zeros((embed_size,), jnp.float32),
        }

    encoder = {
        "tok_emb": emb(src_vocab, embed_size),
        "pos_emb": emb(max_len, embed_size),
        "layers": [block_params() for _ in range(num_layers)],
    }
    decoder = {
        "tok_emb": emb(trg_vocab, embed_size),
        "pos_emb": emb(max_len, embed_size),
        "layers": [{
            "self_attn": attn_params(),
            "ln_g": jnp.ones((embed_size,), jnp.float32),
            "ln_b": jnp.zeros((embed_size,), jnp.float32),
            "block": block_params(),
        } for _ in range(num_layers)],
        "fc_wt": dense_t(embed_size, trg_vocab),
        "fc_b": jnp.zeros((trg_vocab,), jnp.float32),
    }
    return {"encoder": encoder, "decoder": decoder}


# ----------------------------- demo -----------------------------

if __name__ == "__main__":
    src_vocab_size = 13
    trg_vocab_size = 13
    src_pad_idx = 0
    trg_pad_idx = 0
    embed_size = 32
    num_layers = 2
    forward_expansion = 4
    num_heads = 4
    max_length = 100

    N, src_len, trg_len = 2, 8, 8

    root = jax.random.PRNGKey(0)
    k_param, k_src, k_trg = jax.random.split(root, 3)
    params = init_params(k_param, src_vocab_size, trg_vocab_size, embed_size,
                         num_layers, num_heads, forward_expansion, max_length)

    src = jax.random.randint(k_src, (N, src_len), 1, src_vocab_size, dtype=jnp.int32)
    src = src.at[:, -2:].set(src_pad_idx)          # exercise the padding mask
    trg = jax.random.randint(k_trg, (N, trg_len), 1, trg_vocab_size, dtype=jnp.int32)

    fwd = jax.jit(functools.partial(transformer_forward,
                                    heads=num_heads, embed_size=embed_size))
    out = fwd(params, src, trg, src_pad_idx)
    out = jax.block_until_ready(out)

    assert out.shape == (N, trg_len, trg_vocab_size), out.shape
    assert bool(jnp.all(jnp.isfinite(out)))
    print("KERNEL_OK")
</pallas_src>

<mosaic_0001>
module attributes {stable_mosaic.version = 11 : i64} {
  func.func @_attn_block_kernel(%arg0: i32, %arg1: memref<1x8x32xf32, #tpu.memory_space<vmem>>, %arg2: memref<1x8x32xf32, #tpu.memory_space<vmem>>, %arg3: memref<1x8x32xf32, #tpu.memory_space<vmem>>, %arg4: memref<1x1x8xi32, #tpu.memory_space<vmem>>, %arg5: memref<32x32xf32, #tpu.memory_space<vmem>>, %arg6: memref<32x32xf32, #tpu.memory_space<vmem>>, %arg7: memref<32x32xf32, #tpu.memory_space<vmem>>, %arg8: memref<32x32xf32, #tpu.memory_space<vmem>>, %arg9: memref<1x32xf32, #tpu.memory_space<vmem>>, %arg10: memref<1x32xf32, #tpu.memory_space<vmem>>, %arg11: memref<1x32xf32, #tpu.memory_space<vmem>>, %arg12: memref<1x8x32xf32, #tpu.memory_space<vmem>>) attributes {dimension_semantics = [#tpu.dimension_semantics<parallel>], iteration_bounds = array<i64: 2>, scalar_prefetch = 0 : i64, scratch_operands = 0 : i64, tpu.core_type = #tpu.core_type<tc>, window_params = [{transform_indices = @transform_0, window_bounds = array<i64: 1, 8, 32>}, {transform_indices = @transform_1, window_bounds = array<i64: 1, 8, 32>}, {transform_indices = @transform_2, window_bounds = array<i64: 1, 8, 32>}, {transform_indices = @transform_3, window_bounds = array<i64: 1, 1, 8>}, {pipeline_mode = #tpu.pipeline_mode<synchronous>, transform_indices = @transform_4, window_bounds = array<i64: 32, 32>}, {pipeline_mode = #tpu.pipeline_mode<synchronous>, transform_indices = @transform_5, window_bounds = array<i64: 32, 32>}, {pipeline_mode = #tpu.pipeline_mode<synchronous>, transform_indices = @transform_6, window_bounds = array<i64: 32, 32>}, {pipeline_mode = #tpu.pipeline_mode<synchronous>, transform_indices = @transform_7, window_bounds = array<i64: 32, 32>}, {pipeline_mode = #tpu.pipeline_mode<synchronous>, transform_indices = @transform_8, window_bounds = array<i64: 1, 32>}, {pipeline_mode = #tpu.pipeline_mode<synchronous>, transform_indices = @transform_9, window_bounds = array<i64: 1, 32>}, {pipeline_mode = #tpu.pipeline_mode<synchronous>, transform_indices = @transform_10, window_bounds = array<i64: 1, 32>}, {transform_indices = @transform_11, window_bounds = array<i64: 1, 8, 32>}]} {
    %c0 = arith.constant 0 : index
    %c0_0 = arith.constant 0 : index
    %c0_1 = arith.constant 0 : index
    %0 = vector.load %arg1[%c0, %c0_0, %c0_1] : memref<1x8x32xf32, #tpu.memory_space<vmem>>, vector<1x8x32xf32>
    %1 = vector.shape_cast %0 : vector<1x8x32xf32> to vector<8x32xf32>
    %c0_2 = arith.constant 0 : index
    %c0_3 = arith.constant 0 : index
    %c0_4 = arith.constant 0 : index
    %2 = vector.load %arg2[%c0_2, %c0_3, %c0_4] : memref<1x8x32xf32, #tpu.memory_space<vmem>>, vector<1x8x32xf32>
    %3 = vector.shape_cast %2 : vector<1x8x32xf32> to vector<8x32xf32>
    %c0_5 = arith.constant 0 : index
    %c0_6 = arith.constant 0 : index
    %c0_7 = arith.constant 0 : index
    %4 = vector.load %arg3[%c0_5, %c0_6, %c0_7] : memref<1x8x32xf32, #tpu.memory_space<vmem>>, vector<1x8x32xf32>
    %5 = vector.shape_cast %4 : vector<1x8x32xf32> to vector<8x32xf32>
    %c0_8 = arith.constant 0 : index
    %c0_9 = arith.constant 0 : index
    %6 = vector.load %arg7[%c0_8, %c0_9] : memref<32x32xf32, #tpu.memory_space<vmem>>, vector<32x32xf32>
    %cst = arith.constant dense<0.000000e+00> : vector<8x32xf32>
    %7 = tpu.matmul %5, %6, %cst {dimension_numbers = #tpu.dot_dimension_numbers<[1], [0], [0], [1], [0, 0, 1, 1], [], []>} : vector<8x32xf32>, vector<32x32xf32>, vector<8x32xf32> -> vector<8x32xf32>
    %c0_10 = arith.constant 0 : index
    %c0_11 = arith.constant 0 : index
    %8 = vector.load %arg6[%c0_10, %c0_11] : memref<32x32xf32, #tpu.memory_space<vmem>>, vector<32x32xf32>
    %cst_12 = arith.constant dense<0.000000e+00> : vector<8x32xf32>
    %9 = tpu.matmul %3, %8, %cst_12 {dimension_numbers = #tpu.dot_dimension_numbers<[1], [0], [0], [1], [0, 0, 1, 1], [], []>} : vector<8x32xf32>, vector<32x32xf32>, vector<8x32xf32> -> vector<8x32xf32>
    %c0_13 = arith.constant 0 : index
    %c0_14 = arith.constant 0 : index
    %10 = vector.load %arg5[%c0_13, %c0_14] : memref<32x32xf32, #tpu.memory_space<vmem>>, vector<32x32xf32>
    %cst_15 = arith.constant dense<0.000000e+00> : vector<8x32xf32>
    %11 = tpu.matmul %1, %10, %cst_15 {dimension_numbers = #tpu.dot_dimension_numbers<[1], [0], [0], [1], [0, 0, 1, 1], [], []>} : vector<8x32xf32>, vector<32x32xf32>, vector<8x32xf32> -> vector<8x32xf32>
    %c0_16 = arith.constant 0 : index
    %c0_17 = arith.constant 0 : index
    %c0_18 = arith.constant 0 : index
    %12 = vector.load %arg4[%c0_16, %c0_17, %c0_18] : memref<1x1x8xi32, #tpu.memory_space<vmem>>, vector<1x1x8xi32>
    %13 = vector.shape_cast %12 : vector<1x1x8xi32> to vector<1x8xi32>
    %c0_i32 = arith.constant 0 : i32
    %14 = vector.broadcast %c0_i32 : i32 to vector<1x8xi32>
    %15 = arith.cmpi eq, %13, %14 : vector<1x8xi32>
    %16 = vector.shape_cast %15 : vector<1x8xi1> to vector<1x8xi1>
    %17 = vector.broadcast %16 : vector<1x8xi1> to vector<8x8xi1>
    %18 = vector.extract_strided_slice %7 {offsets = [0, 0], sizes = [8, 8], strides = [1, 1]} : vector<8x32xf32> to vector<8x8xf32>
    %19 = vector.extract_strided_slice %9 {offsets = [0, 0], sizes = [8, 8], strides = [1, 1]} : vector<8x32xf32> to vector<8x8xf32>
    %20 = vector.extract_strided_slice %11 {offsets = [0, 0], sizes = [8, 8], strides = [1, 1]} : vector<8x32xf32> to vector<8x8xf32>
    %21 = tpu.transpose %19, [1, 0] : vector<8x8xf32> -> vector<8x8xf32>
    %cst_19 = arith.constant dense<0.000000e+00> : vector<8x8xf32>
    %22 = tpu.matmul %18, %21, %cst_19 {dimension_numbers = #tpu.dot_dimension_numbers<[1], [0], [0], [1], [0, 0, 1, 1], [], []>} : vector<8x8xf32>, vector<8x8xf32>, vector<8x8xf32> -> vector<8x8xf32>
    %cst_20 = arith.constant -1.000000e+20 : f32
    %23 = vector.broadcast %cst_20 : f32 to vector<8x8xf32>
    %24 = arith.select %17, %23, %22 : vector<8x8xi1>, vector<8x8xf32>
    %cst_21 = arith.constant dense<0xFF800000> : vector<8xf32>
    %25 = vector.multi_reduction <maximumf>, %24, %cst_21 [1] : vector<8x8xf32> to vector<8xf32>
    %26 = vector.shape_cast %25 : vector<8xf32> to vector<8x1xf32>
    %27 = vector.broadcast %26 : vector<8x1xf32> to vector<8x8xf32>
    %28 = arith.subf %24, %27 : vector<8x8xf32>
    %29 = math.exp %28 : vector<8x8xf32>
    %cst_22 = arith.constant dense<0.000000e+00> : vector<8xf32>
    %30 = vector.multi_reduction <add>, %29, %cst_22 [1] : vector<8x8xf32> to vector<8xf32>
    %31 = vector.shape_cast %30 : vector<8xf32> to vector<8x1xf32>
    %32 = tpu.reciprocal %31 {approx = true} : vector<8x1xf32> -> vector<8x1xf32>
    %33 = vector.broadcast %32 : vector<8x1xf32> to vector<8x8xf32>
    %34 = arith.mulf %29, %33 : vector<8x8xf32>
    %cst_23 = arith.constant dense<0.000000e+00> : vector<8x8xf32>
    %35 = tpu.matmul %34, %20, %cst_23 {dimension_numbers = #tpu.dot_dimension_numbers<[1], [0], [0], [1], [0, 0, 1, 1], [], []>} : vector<8x8xf32>, vector<8x8xf32>, vector<8x8xf32> -> vector<8x8xf32>
    %36 = vector.extract_strided_slice %7 {offsets = [0, 8], sizes = [8, 8], strides = [1, 1]} : vector<8x32xf32> to vector<8x8xf32>
    %37 = vector.extract_strided_slice %9 {offsets = [0, 8], sizes = [8, 8], strides = [1, 1]} : vector<8x32xf32> to vector<8x8xf32>
    %38 = vector.extract_strided_slice %11 {offsets = [0, 8], sizes = [8, 8], strides = [1, 1]} : vector<8x32xf32> to vector<8x8xf32>
    %39 = tpu.transpose %37, [1, 0] : vector<8x8xf32> -> vector<8x8xf32>
    %cst_24 = arith.constant dense<0.000000e+00> : vector<8x8xf32>
    %40 = tpu.matmul %36, %39, %cst_24 {dimension_numbers = #tpu.dot_dimension_numbers<[1], [0], [0], [1], [0, 0, 1, 1], [], []>} : vector<8x8xf32>, vector<8x8xf32>, vector<8x8xf32> -> vector<8x8xf32>
    %cst_25 = arith.constant -1.000000e+20 : f32
    %41 = vector.broadcast %cst_25 : f32 to vector<8x8xf32>
    %42 = arith.select %17, %41, %40 : vector<8x8xi1>, vector<8x8xf32>
    %cst_26 = arith.constant dense<0xFF800000> : vector<8xf32>
    %43 = vector.multi_reduction <maximumf>, %42, %cst_26 [1] : vector<8x8xf32> to vector<8xf32>
    %44 = vector.shape_cast %43 : vector<8xf32> to vector<8x1xf32>
    %45 = vector.broadcast %44 : vector<8x1xf32> to vector<8x8xf32>
    %46 = arith.subf %42, %45 : vector<8x8xf32>
    %47 = math.exp %46 : vector<8x8xf32>
    %cst_27 = arith.constant dense<0.000000e+00> : vector<8xf32>
    %48 = vector.multi_reduction <add>, %47, %cst_27 [1] : vector<8x8xf32> to vector<8xf32>
    %49 = vector.shape_cast %48 : vector<8xf32> to vector<8x1xf32>
    %50 = tpu.reciprocal %49 {approx = true} : vector<8x1xf32> -> vector<8x1xf32>
    %51 = vector.broadcast %50 : vector<8x1xf32> to vector<8x8xf32>
    %52 = arith.mulf %47, %51 : vector<8x8xf32>
    %cst_28 = arith.constant dense<0.000000e+00> : vector<8x8xf32>
    %53 = tpu.matmul %52, %38, %cst_28 {dimension_numbers = #tpu.dot_dimension_numbers<[1], [0], [0], [1], [0, 0, 1, 1], [], []>} : vector<8x8xf32>, vector<8x8xf32>, vector<8x8xf32> -> vector<8x8xf32>
    %54 = vector.extract_strided_slice %7 {offsets = [0, 16], sizes = [8, 8], strides = [1, 1]} : vector<8x32xf32> to vector<8x8xf32>
    %55 = vector.extract_strided_slice %9 {offsets = [0, 16], sizes = [8, 8], strides = [1, 1]} : vector<8x32xf32> to vector<8x8xf32>
    %56 = vector.extract_strided_slice %11 {offsets = [0, 16], sizes = [8, 8], strides = [1, 1]} : vector<8x32xf32> to vector<8x8xf32>
    %57 = tpu.transpose %55, [1, 0] : vector<8x8xf32> -> vector<8x8xf32>
    %cst_29 = arith.constant dense<0.000000e+00> : vector<8x8xf32>
    %58 = tpu.matmul %54, %57, %cst_29 {dimension_numbers = #tpu.dot_dimension_numbers<[1], [0], [0], [1], [0, 0, 1, 1], [], []>} : vector<8x8xf32>, vector<8x8xf32>, vector<8x8xf32> -> vector<8x8xf32>
    %cst_30 = arith.constant -1.000000e+20 : f32
    %59 = vector.broadcast %cst_30 : f32 to vector<8x8xf32>
    %60 = arith.select %17, %59, %58 : vector<8x8xi1>, vector<8x8xf32>
    %cst_31 = arith.constant dense<0xFF800000> : vector<8xf32>
    %61 = vector.multi_reduction <maximumf>, %60, %cst_31 [1] : vector<8x8xf32> to vector<8xf32>
    %62 = vector.shape_cast %61 : vector<8xf32> to vector<8x1xf32>
    %63 = vector.broadcast %62 : vector<8x1xf32> to vector<8x8xf32>
    %64 = arith.subf %60, %63 : vector<8x8xf32>
    %65 = math.exp %64 : vector<8x8xf32>
    %cst_32 = arith.constant dense<0.000000e+00> : vector<8xf32>
    %66 = vector.multi_reduction <add>, %65, %cst_32 [1] : vector<8x8xf32> to vector<8xf32>
    %67 = vector.shape_cast %66 : vector<8xf32> to vector<8x1xf32>
    %68 = tpu.reciprocal %67 {approx = true} : vector<8x1xf32> -> vector<8x1xf32>
    %69 = vector.broadcast %68 : vector<8x1xf32> to vector<8x8xf32>
    %70 = arith.mulf %65, %69 : vector<8x8xf32>
    %cst_33 = arith.constant dense<0.000000e+00> : vector<8x8xf32>
    %71 = tpu.matmul %70, %56, %cst_33 {dimension_numbers = #tpu.dot_dimension_numbers<[1], [0], [0], [1], [0, 0, 1, 1], [], []>} : vector<8x8xf32>, vector<8x8xf32>, vector<8x8xf32> -> vector<8x8xf32>
    %72 = vector.extract_strided_slice %7 {offsets = [0, 24], sizes = [8, 8], strides = [1, 1]} : vector<8x32xf32> to vector<8x8xf32>
    %73 = vector.extract_strided_slice %9 {offsets = [0, 24], sizes = [8, 8], strides = [1, 1]} : vector<8x32xf32> to vector<8x8xf32>
    %74 = vector.extract_strided_slice %11 {offsets = [0, 24], sizes = [8, 8], strides = [1, 1]} : vector<8x32xf32> to vector<8x8xf32>
    %75 = tpu.transpose %73, [1, 0] : vector<8x8xf32> -> vector<8x8xf32>
    %cst_34 = arith.constant dense<0.000000e+00> : vector<8x8xf32>
    %76 = tpu.matmul %72, %75, %cst_34 {dimension_numbers = #tpu.dot_dimension_numbers<[1], [0], [0], [1], [0, 0, 1, 1], [], []>} : vector<8x8xf32>, vector<8x8xf32>, vector<8x8xf32> -> vector<8x8xf32>
    %cst_35 = arith.constant -1.000000e+20 : f32
    %77 = vector.broadcast %cst_35 : f32 to vector<8x8xf32>
    %78 = arith.select %17, %77, %76 : vector<8x8xi1>, vector<8x8xf32>
    %cst_36 = arith.constant dense<0xFF800000> : vector<8xf32>
    %79 = vector.multi_reduction <maximumf>, %78, %cst_36 [1] : vector<8x8xf32> to vector<8xf32>
    %80 = vector.shape_cast %79 : vector<8xf32> to vector<8x1xf32>
    %81 = vector.broadcast %80 : vector<8x1xf32> to vector<8x8xf32>
    %82 = arith.subf %78, %81 : vector<8x8xf32>
    %83 = math.exp %82 : vector<8x8xf32>
    %cst_37 = arith.constant dense<0.000000e+00> : vector<8xf32>
    %84 = vector.multi_reduction <add>, %83, %cst_37 [1] : vector<8x8xf32> to vector<8xf32>
    %85 = vector.shape_cast %84 : vector<8xf32> to vector<8x1xf32>
    %86 = tpu.reciprocal %85 {approx = true} : vector<8x1xf32> -> vector<8x1xf32>
    %87 = vector.broadcast %86 : vector<8x1xf32> to vector<8x8xf32>
    %88 = arith.mulf %83, %87 : vector<8x8xf32>
    %cst_38 = arith.constant dense<0.000000e+00> : vector<8x8xf32>
    %89 = tpu.matmul %88, %74, %cst_38 {dimension_numbers = #tpu.dot_dimension_numbers<[1], [0], [0], [1], [0, 0, 1, 1], [], []>} : vector<8x8xf32>, vector<8x8xf32>, vector<8x8xf32> -> vector<8x8xf32>
    %90 = tpu.concatenate %35, %53, %71, %89 in 1 : vector<8x8xf32>, vector<8x8xf32>, vector<8x8xf32>, vector<8x8xf32> -> vector<8x32xf32>
    %c0_39 = arith.constant 0 : index
    %c0_40 = arith.constant 0 : index
    %91 = vector.load %arg8[%c0_39, %c0_40] : memref<32x32xf32, #tpu.memory_space<vmem>>, vector<32x32xf32>
    %cst_41 = arith.constant dense<0.000000e+00> : vector<8x32xf32>
    %92 = tpu.matmul %90, %91, %cst_41 {dimension_numbers = #tpu.dot_dimension_numbers<[1], [0], [0], [1], [0, 0, 1, 1], [], []>} : vector<8x32xf32>, vector<32x32xf32>, vector<8x32xf32> -> vector<8x32xf32>
    %c0_42 = arith.constant 0 : index
    %c0_43 = arith.constant 0 : index
    %93 = vector.load %arg9[%c0_42, %c0_43] : memref<1x32xf32, #tpu.memory_space<vmem>>, vector<1x32xf32>
    %94 = vector.broadcast %93 : vector<1x32xf32> to vector<8x32xf32>
    %95 = arith.addf %92, %94 : vector<8x32xf32>
    %96 = arith.addf %95, %5 : vector<8x32xf32>
    %cst_44 = arith.constant dense<0.000000e+00> : vector<8xf32>
    %97 = vector.multi_reduction <add>, %96, %cst_44 [1] : vector<8x32xf32> to vector<8xf32>
    %98 = vector.shape_cast %97 : vector<8xf32> to vector<8x1xf32>
    %cst_45 = arith.constant 3.200000e+01 : f32
    %99 = vector.broadcast %cst_45 : f32 to vector<8x1xf32>
    %100 = arith.divf %98, %99 : vector<8x1xf32>
    %101 = vector.broadcast %100 : vector<8x1xf32> to vector<8x32xf32>
    %102 = arith.subf %96, %101 : vector<8x32xf32>
    %103 = arith.mulf %102, %102 : vector<8x32xf32>
    %cst_46 = arith.constant dense<0.000000e+00> : vector<8xf32>
    %104 = vector.multi_reduction <add>, %103, %cst_46 [1] : vector<8x32xf32> to vector<8xf32>
    %105 = vector.shape_cast %104 : vector<8xf32> to vector<8x1xf32>
    %cst_47 = arith.constant 3.200000e+01 : f32
    %106 = vector.broadcast %cst_47 : f32 to vector<8x1xf32>
    %107 = arith.divf %105, %106 : vector<8x1xf32>
    %cst_48 = arith.constant 9.99999974E-6 : f32
    %108 = vector.broadcast %cst_48 : f32 to vector<8x1xf32>
    %109 = arith.addf %107, %108 : vector<8x1xf32>
    %110 = math.rsqrt %109 : vector<8x1xf32>
    %111 = vector.broadcast %110 : vector<8x1xf32> to vector<8x32xf32>
    %112 = arith.mulf %102, %111 : vector<8x32xf32>
    %c0_49 = arith.constant 0 : index
    %c0_50 = arith.constant 0 : index
    %113 = vector.load %arg10[%c0_49, %c0_50] : memref<1x32xf32, #tpu.memory_space<vmem>>, vector<1x32xf32>
    %114 = vector.broadcast %113 : vector<1x32xf32> to vector<8x32xf32>
    %115 = arith.mulf %112, %114 : vector<8x32xf32>
    %c0_51 = arith.constant 0 : index
    %c0_52 = arith.constant 0 : index
    %116 = vector.load %arg11[%c0_51, %c0_52] : memref<1x32xf32, #tpu.memory_space<vmem>>, vector<1x32xf32>
    %117 = vector.broadcast %116 : vector<1x32xf32> to vector<8x32xf32>
    %118 = arith.addf %115, %117 : vector<8x32xf32>
    %c0_53 = arith.constant 0 : index
    %c0_54 = arith.constant 0 : index
    %c0_55 = arith.constant 0 : index
    %119 = vector.load %arg12[%c0_53, %c0_54, %c0_55] : memref<1x8x32xf32, #tpu.memory_space<vmem>>, vector<1x8x32xf32>
    %120 = vector.shape_cast %119 : vector<1x8x32xf32> to vector<8x32xf32>
    %121 = vector.shape_cast %118 : vector<8x32xf32> to vector<1x8x32xf32>
    tpu.vector_store %arg12[%c0_53, %c0_54, %c0_55], %121 {strides = array<i32>} : memref<1x8x32xf32, #tpu.memory_space<vmem>>, vector<1x8x32xf32>,
    return
  }
  func.func @transform_0(%arg0: i32) -> (i32, i32, i32) {
    %c0_i32 = arith.constant 0 : i32
    %c0_i32_0 = arith.constant 0 : i32
    %c0_i32_1 = arith.constant 0 : i32
    return %arg0, %c0_i32, %c0_i32_0 : i32, i32, i32
  }
  func.func @transform_1(%arg0: i32) -> (i32, i32, i32) {
    %c0_i32 = arith.constant 0 : i32
    %c0_i32_0 = arith.constant 0 : i32
    %c0_i32_1 = arith.constant 0 : i32
    return %arg0, %c0_i32, %c0_i32_0 : i32, i32, i32
  }
  func.func @transform_2(%arg0: i32) -> (i32, i32, i32) {
    %c0_i32 = arith.constant 0 : i32
    %c0_i32_0 = arith.constant 0 : i32
    %c0_i32_1 = arith.constant 0 : i32
    return %arg0, %c0_i32, %c0_i32_0 : i32, i32, i32
  }
  func.func @transform_3(%arg0: i32) -> (i32, i32, i32) {
    %c0_i32 = arith.constant 0 : i32
    %c0_i32_0 = arith.constant 0 : i32
    %c0_i32_1 = arith.constant 0 : i32
    return %arg0, %c0_i32, %c0_i32_0 : i32, i32, i32
  }
  func.func @transform_4(%arg0: i32) -> (i32, i32) {
    %c0_i32 = arith.constant 0 : i32
    %c0_i32_0 = arith.constant 0 : i32
    %c0_i32_1 = arith.constant 0 : i32
    return %c0_i32, %c0_i32_0 : i32, i32
  }
  func.func @transform_5(%arg0: i32) -> (i32, i32) {
    %c0_i32 = arith.constant 0 : i32
    %c0_i32_0 = arith.constant 0 : i32
    %c0_i32_1 = arith.constant 0 : i32
    return %c0_i32, %c0_i32_0 : i32, i32
  }
  func.func @transform_6(%arg0: i32) -> (i32, i32) {
    %c0_i32 = arith.constant 0 : i32
    %c0_i32_0 = arith.constant 0 : i32
    %c0_i32_1 = arith.constant 0 : i32
    return %c0_i32, %c0_i32_0 : i32, i32
  }
  func.func @transform_7(%arg0: i32) -> (i32, i32) {
    %c0_i32 = arith.constant 0 : i32
    %c0_i32_0 = arith.constant 0 : i32
    %c0_i32_1 = arith.constant 0 : i32
    return %c0_i32, %c0_i32_0 : i32, i32
  }
  func.func @transform_8(%arg0: i32) -> (i32, i32) {
    %c0_i32 = arith.constant 0 : i32
    %c0_i32_0 = arith.constant 0 : i32
    %c0_i32_1 = arith.constant 0 : i32
    return %c0_i32, %c0_i32_0 : i32, i32
  }
  func.func @transform_9(%arg0: i32) -> (i32, i32) {
    %c0_i32 = arith.constant 0 : i32
    %c0_i32_0 = arith.constant 0 : i32
    %c0_i32_1 = arith.constant 0 : i32
    return %c0_i32, %c0_i32_0 : i32, i32
  }
  func.func @transform_10(%arg0: i32) -> (i32, i32) {
    %c0_i32 = arith.constant 0 : i32
    %c0_i32_0 = arith.constant 0 : i32
    %c0_i32_1 = arith.constant 0 : i32
    return %c0_i32, %c0_i32_0 : i32, i32
  }
  func.func @transform_11(%arg0: i32) -> (i32, i32, i32) {
    %c0_i32 = arith.constant 0 : i32
    %c0_i32_0 = arith.constant 0 : i32
    %c0_i32_1 = arith.constant 0 : i32
    return %arg0, %c0_i32, %c0_i32_0 : i32, i32, i32
  }
}

module attributes {stable_mosaic.version = 11 : i64} {
  func.func @_ffn_block_kernel(%arg0: i32, %arg1: memref<16x32xf32, #tpu.memory_space<vmem>>, %arg2: memref<32x128xf32, #tpu.memory_space<vmem>>, %arg3: memref<1x128xf32, #tpu.memory_space<vmem>>, %arg4: memref<128x32xf32, #tpu.memory_space<vmem>>, %arg5: memref<1x32xf32, #tpu.memory_space<vmem>>, %arg6: memref<1x32xf32, #tpu.memory_space<vmem>>, %arg7: memref<1x32xf32, #tpu.memory_space<vmem>>, %arg8: memref<16x32xf32, #tpu.memory_space<vmem>>) attributes {dimension_semantics = [#tpu.dimension_semantics<parallel>], iteration_bounds = array<i64: 1>, scalar_prefetch = 0 : i64, scratch_operands = 0 : i64, tpu.core_type = #tpu.core_type<tc>, window_params = [{transform_indices = @transform_0, window_bounds = array<i64: 16, 32>}, {pipeline_mode = #tpu.pipeline_mode<synchronous>, transform_indices = @transform_1, window_bounds = array<i64: 32, 128>}, {pipeline_mode = #tpu.pipeline_mode<synchronous>, transform_indices = @transform_2, window_bounds = array<i64: 1, 128>}, {pipeline_mode = #tpu.pipeline_mode<synchronous>, transform_indices = @transform_3, window_bounds = array<i64: 128, 32>}, {pipeline_mode = #tpu.pipeline_mode<synchronous>, transform_indices = @transform_4, window_bounds = array<i64: 1, 32>}, {pipeline_mode = #tpu.pipeline_mode<synchronous>, transform_indices = @transform_5, window_bounds = array<i64: 1, 32>}, {pipeline_mode = #tpu.pipeline_mode<synchronous>, transform_indices = @transform_6, window_bounds = array<i64: 1, 32>}, {transform_indices = @transform_7, window_bounds = array<i64: 16, 32>}]} {
    %c0 = arith.constant 0 : index
    %c0_0 = arith.constant 0 : index
    %0 = vector.load %arg1[%c0, %c0_0] : memref<16x32xf32, #tpu.memory_space<vmem>>, vector<16x32xf32>
    %c0_1 = arith.constant 0 : index
    %c0_2 = arith.constant 0 : index
    %1 = vector.load %arg2[%c0_1, %c0_2] : memref<32x128xf32, #tpu.memory_space<vmem>>, vector<32x128xf32>
    %cst = arith.constant dense<0.000000e+00> : vector<16x128xf32>
    %2 = tpu.matmul %0, %1, %cst {dimension_numbers = #tpu.dot_dimension_numbers<[1], [0], [0], [1], [0, 0, 1, 1], [], []>} : vector<16x32xf32>, vector<32x128xf32>, vector<16x128xf32> -> vector<16x128xf32>
    %c0_3 = arith.constant 0 : index
    %c0_4 = arith.constant 0 : index
    %3 = vector.load %arg3[%c0_3, %c0_4] : memref<1x128xf32, #tpu.memory_space<vmem>>, vector<1x128xf32>
    %4 = vector.broadcast %3 : vector<1x128xf32> to vector<16x128xf32>
    %5 = arith.addf %2, %4 : vector<16x128xf32>
    %cst_5 = arith.constant 0.000000e+00 : f32
    %6 = vector.broadcast %cst_5 : f32 to vector<16x128xf32>
    %7 = arith.maximumf %5, %6 : vector<16x128xf32>
    %c0_6 = arith.constant 0 : index
    %c0_7 = arith.constant 0 : index
    %8 = vector.load %arg4[%c0_6, %c0_7] : memref<128x32xf32, #tpu.memory_space<vmem>>, vector<128x32xf32>
    %cst_8 = arith.constant dense<0.000000e+00> : vector<16x32xf32>
    %9 = tpu.matmul %7, %8, %cst_8 {dimension_numbers = #tpu.dot_dimension_numbers<[1], [0], [0], [1], [0, 0, 1, 1], [], []>} : vector<16x128xf32>, vector<128x32xf32>, vector<16x32xf32> -> vector<16x32xf32>
    %c0_9 = arith.constant 0 : index
    %c0_10 = arith.constant 0 : index
    %10 = vector.load %arg5[%c0_9, %c0_10] : memref<1x32xf32, #tpu.memory_space<vmem>>, vector<1x32xf32>
    %11 = vector.broadcast %10 : vector<1x32xf32> to vector<16x32xf32>
    %12 = arith.addf %9, %11 : vector<16x32xf32>
    %13 = arith.addf %12, %0 : vector<16x32xf32>
    %cst_11 = arith.constant dense<0.000000e+00> : vector<16xf32>
    %14 = vector.multi_reduction <add>, %13, %cst_11 [1] : vector<16x32xf32> to vector<16xf32>
    %15 = vector.shape_cast %14 : vector<16xf32> to vector<16x1xf32>
    %cst_12 = arith.constant 3.200000e+01 : f32
    %16 = vector.broadcast %cst_12 : f32 to vector<16x1xf32>
    %17 = arith.divf %15, %16 : vector<16x1xf32>
    %18 = vector.broadcast %17 : vector<16x1xf32> to vector<16x32xf32>
    %19 = arith.subf %13, %18 : vector<16x32xf32>
    %20 = arith.mulf %19, %19 : vector<16x32xf32>
    %cst_13 = arith.constant dense<0.000000e+00> : vector<16xf32>
    %21 = vector.multi_reduction <add>, %20, %cst_13 [1] : vector<16x32xf32> to vector<16xf32>
    %22 = vector.shape_cast %21 : vector<16xf32> to vector<16x1xf32>
    %cst_14 = arith.constant 3.200000e+01 : f32
    %23 = vector.broadcast %cst_14 : f32 to vector<16x1xf32>
    %24 = arith.divf %22, %23 : vector<16x1xf32>
    %cst_15 = arith.constant 9.99999974E-6 : f32
    %25 = vector.broadcast %cst_15 : f32 to vector<16x1xf32>
    %26 = arith.addf %24, %25 : vector<16x1xf32>
    %27 = math.rsqrt %26 : vector<16x1xf32>
    %28 = vector.broadcast %27 : vector<16x1xf32> to vector<16x32xf32>
    %29 = arith.mulf %19, %28 : vector<16x32xf32>
    %c0_16 = arith.constant 0 : index
    %c0_17 = arith.constant 0 : index
    %30 = vector.load %arg6[%c0_16, %c0_17] : memref<1x32xf32, #tpu.memory_space<vmem>>, vector<1x32xf32>
    %31 = vector.broadcast %30 : vector<1x32xf32> to vector<16x32xf32>
    %32 = arith.mulf %29, %31 : vector<16x32xf32>
    %c0_18 = arith.constant 0 : index
    %c0_19 = arith.constant 0 : index
    %33 = vector.load %arg7[%c0_18, %c0_19] : memref<1x32xf32, #tpu.memory_space<vmem>>, vector<1x32xf32>
    %34 = vector.broadcast %33 : vector<1x32xf32> to vector<16x32xf32>
    %35 = arith.addf %32, %34 : vector<16x32xf32>
    %c0_20 = arith.constant 0 : index
    %c0_21 = arith.constant 0 : index
    %36 = vector.load %arg8[%c0_20, %c0_21] : memref<16x32xf32, #tpu.memory_space<vmem>>, vector<16x32xf32>
    tpu.vector_store %arg8[%c0_20, %c0_21], %35 {strides = array<i32>} : memref<16x32xf32, #tpu.memory_space<vmem>>, vector<16x32xf32>,
    return
  }
  func.func @transform_0(%arg0: i32) -> (i32, i32) {
    %c0_i32 = arith.constant 0 : i32
    %c0_i32_0 = arith.constant 0 : i32
    return %arg0, %c0_i32 : i32, i32
  }
  func.func @transform_1(%arg0: i32) -> (i32, i32) {
    %c0_i32 = arith.constant 0 : i32
    %c0_i32_0 = arith.constant 0 : i32
    %c0_i32_1 = arith.constant 0 : i32
    return %c0_i32, %c0_i32_0 : i32, i32
  }
  func.func @transform_2(%arg0: i32) -> (i32, i32) {
    %c0_i32 = arith.constant 0 : i32
    %c0_i32_0 = arith.constant 0 : i32
    %c0_i32_1 = arith.constant 0 : i32
    return %c0_i32, %c0_i32_0 : i32, i32
  }
  func.func @transform_3(%arg0: i32) -> (i32, i32) {
    %c0_i32 = arith.constant 0 : i32
    %c0_i32_0 = arith.constant 0 : i32
    %c0_i32_1 = arith.constant 0 : i32
    return %c0_i32, %c0_i32_0 : i32, i32
  }
  func.func @transform_4(%arg0: i32) -> (i32, i32) {
    %c0_i32 = arith.constant 0 : i32
    %c0_i32_0 = arith.constant 0 : i32
    %c0_i32_1 = arith.constant 0 : i32
    return %c0_i32, %c0_i32_0 : i32, i32
  }
  func.func @transform_5(%arg0: i32) -> (i32, i32) {
    %c0_i32 = arith.constant 0 : i32
    %c0_i32_0 = arith.constant 0 : i32
    %c0_i32_1 = arith.constant 0 : i32
    return %c0_i32, %c0_i32_0 : i32, i32
  }
  func.func @transform_6(%arg0: i32) -> (i32, i32) {
    %c0_i32 = arith.constant 0 : i32
    %c0_i32_0 = arith.constant 0 : i32
    %c0_i32_1 = arith.constant 0 : i32
    return %c0_i32, %c0_i32_0 : i32, i32
  }
  func.func @transform_7(%arg0: i32) -> (i32, i32) {
    %c0_i32 = arith.constant 0 : i32
    %c0_i32_0 = arith.constant 0 : i32
    return %arg0, %c0_i32 : i32, i32
  }
}

module attributes {stable_mosaic.version = 11 : i64} {
  func.func @_linear_kernel(%arg0: i32, %arg1: i32, %arg2: memref<16x32xf32, #tpu.memory_space<vmem>>, %arg3: memref<32x13xf32, #tpu.memory_space<vmem>>, %arg4: memref<1x13xf32, #tpu.memory_space<vmem>>, %arg5: memref<16x13xf32, #tpu.memory_space<vmem>>) attributes {dimension_semantics = [#tpu.dimension_semantics<parallel>, #tpu.dimension_semantics<parallel>], iteration_bounds = array<i64: 1, 1>, scalar_prefetch = 0 : i64, scratch_operands = 0 : i64, tpu.core_type = #tpu.core_type<tc>, window_params = [{transform_indices = @transform_0, window_bounds = array<i64: 16, 32>}, {transform_indices = @transform_1, window_bounds = array<i64: 32, 13>}, {transform_indices = @transform_2, window_bounds = array<i64: 1, 13>}, {transform_indices = @transform_3, window_bounds = array<i64: 16, 13>}]} {
    %c0 = arith.constant 0 : index
    %c0_0 = arith.constant 0 : index
    %0 = vector.load %arg2[%c0, %c0_0] : memref<16x32xf32, #tpu.memory_space<vmem>>, vector<16x32xf32>
    %c0_1 = arith.constant 0 : index
    %c0_2 = arith.constant 0 : index
    %1 = vector.load %arg3[%c0_1, %c0_2] : memref<32x13xf32, #tpu.memory_space<vmem>>, vector<32x13xf32>
    %cst = arith.constant dense<0.000000e+00> : vector<16x13xf32>
    %2 = tpu.matmul %0, %1, %cst {dimension_numbers = #tpu.dot_dimension_numbers<[1], [0], [0], [1], [0, 0, 1, 1], [], []>} : vector<16x32xf32>, vector<32x13xf32>, vector<16x13xf32> -> vector<16x13xf32>
    %c0_3 = arith.constant 0 : index
    %c0_4 = arith.constant 0 : index
    %3 = vector.load %arg4[%c0_3, %c0_4] : memref<1x13xf32, #tpu.memory_space<vmem>>, vector<1x13xf32>
    %4 = vector.broadcast %3 : vector<1x13xf32> to vector<16x13xf32>
    %5 = arith.addf %2, %4 : vector<16x13xf32>
    %c0_5 = arith.constant 0 : index
    %c0_6 = arith.constant 0 : index
    %6 = vector.load %arg5[%c0_5, %c0_6] : memref<16x13xf32, #tpu.memory_space<vmem>>, vector<16x13xf32>
    tpu.vector_store %arg5[%c0_5, %c0_6], %5 {strides = array<i32>} : memref<16x13xf32, #tpu.memory_space<vmem>>, vector<16x13xf32>,
    return
  }
  func.func @transform_0(%arg0: i32, %arg1: i32) -> (i32, i32) {
    %c0_i32 = arith.constant 0 : i32
    %c0_i32_0 = arith.constant 0 : i32
    return %arg0, %c0_i32 : i32, i32
  }
  func.func @transform_1(%arg0: i32, %arg1: i32) -> (i32, i32) {
    %c0_i32 = arith.constant 0 : i32
    %c0_i32_0 = arith.constant 0 : i32
    return %c0_i32, %arg1 : i32, i32
  }
  func.func @transform_2(%arg0: i32, %arg1: i32) -> (i32, i32) {
    %c0_i32 = arith.constant 0 : i32
    %c0_i32_0 = arith.constant 0 : i32
    return %c0_i32, %arg1 : i32, i32
  }
  func.func @transform_3(%arg0: i32, %arg1: i32) -> (i32, i32) {
    %c0_i32 = arith.constant 0 : i32
    return %arg0, %arg1 : i32, i32
  }
}

module attributes {stable_mosaic.version = 11 : i64} {
  func.func @_attn_block_kernel(%arg0: i32, %arg1: memref<1x8x32xf32, #tpu.memory_space<vmem>>, %arg2: memref<1x8x32xf32, #tpu.memory_space<vmem>>, %arg3: memref<1x8x32xf32, #tpu.memory_space<vmem>>, %arg4: memref<1x8x8xi32, #tpu.memory_space<vmem>>, %arg5: memref<32x32xf32, #tpu.memory_space<vmem>>, %arg6: memref<32x32xf32, #tpu.memory_space<vmem>>, %arg7: memref<32x32xf32, #tpu.memory_space<vmem>>, %arg8: memref<32x32xf32, #tpu.memory_space<vmem>>, %arg9: memref<1x32xf32, #tpu.memory_space<vmem>>, %arg10: memref<1x32xf32, #tpu.memory_space<vmem>>, %arg11: memref<1x32xf32, #tpu.memory_space<vmem>>, %arg12: memref<1x8x32xf32, #tpu.memory_space<vmem>>) attributes {dimension_semantics = [#tpu.dimension_semantics<parallel>], iteration_bounds = array<i64: 2>, scalar_prefetch = 0 : i64, scratch_operands = 0 : i64, tpu.core_type = #tpu.core_type<tc>, window_params = [{transform_indices = @transform_0, window_bounds = array<i64: 1, 8, 32>}, {transform_indices = @transform_1, window_bounds = array<i64: 1, 8, 32>}, {transform_indices = @transform_2, window_bounds = array<i64: 1, 8, 32>}, {pipeline_mode = #tpu.pipeline_mode<synchronous>, transform_indices = @transform_3, window_bounds = array<i64: 1, 8, 8>}, {pipeline_mode = #tpu.pipeline_mode<synchronous>, transform_indices = @transform_4, window_bounds = array<i64: 32, 32>}, {pipeline_mode = #tpu.pipeline_mode<synchronous>, transform_indices = @transform_5, window_bounds = array<i64: 32, 32>}, {pipeline_mode = #tpu.pipeline_mode<synchronous>, transform_indices = @transform_6, window_bounds = array<i64: 32, 32>}, {pipeline_mode = #tpu.pipeline_mode<synchronous>, transform_indices = @transform_7, window_bounds = array<i64: 32, 32>}, {pipeline_mode = #tpu.pipeline_mode<synchronous>, transform_indices = @transform_8, window_bounds = array<i64: 1, 32>}, {pipeline_mode = #tpu.pipeline_mode<synchronous>, transform_indices = @transform_9, window_bounds = array<i64: 1, 32>}, {pipeline_mode = #tpu.pipeline_mode<synchronous>, transform_indices = @transform_10, window_bounds = array<i64: 1, 32>}, {transform_indices = @transform_11, window_bounds = array<i64: 1, 8, 32>}]} {
    %c0 = arith.constant 0 : index
    %c0_0 = arith.constant 0 : index
    %c0_1 = arith.constant 0 : index
    %0 = vector.load %arg1[%c0, %c0_0, %c0_1] : memref<1x8x32xf32, #tpu.memory_space<vmem>>, vector<1x8x32xf32>
    %1 = vector.shape_cast %0 : vector<1x8x32xf32> to vector<8x32xf32>
    %c0_2 = arith.constant 0 : index
    %c0_3 = arith.constant 0 : index
    %c0_4 = arith.constant 0 : index
    %2 = vector.load %arg2[%c0_2, %c0_3, %c0_4] : memref<1x8x32xf32, #tpu.memory_space<vmem>>, vector<1x8x32xf32>
    %3 = vector.shape_cast %2 : vector<1x8x32xf32> to vector<8x32xf32>
    %c0_5 = arith.constant 0 : index
    %c0_6 = arith.constant 0 : index
    %c0_7 = arith.constant 0 : index
    %4 = vector.load %arg3[%c0_5, %c0_6, %c0_7] : memref<1x8x32xf32, #tpu.memory_space<vmem>>, vector<1x8x32xf32>
    %5 = vector.shape_cast %4 : vector<1x8x32xf32> to vector<8x32xf32>
    %c0_8 = arith.constant 0 : index
    %c0_9 = arith.constant 0 : index
    %6 = vector.load %arg7[%c0_8, %c0_9] : memref<32x32xf32, #tpu.memory_space<vmem>>, vector<32x32xf32>
    %cst = arith.constant dense<0.000000e+00> : vector<8x32xf32>
    %7 = tpu.matmul %5, %6, %cst {dimension_numbers = #tpu.dot_dimension_numbers<[1], [0], [0], [1], [0, 0, 1, 1], [], []>} : vector<8x32xf32>, vector<32x32xf32>, vector<8x32xf32> -> vector<8x32xf32>
    %c0_10 = arith.constant 0 : index
    %c0_11 = arith.constant 0 : index
    %8 = vector.load %arg6[%c0_10, %c0_11] : memref<32x32xf32, #tpu.memory_space<vmem>>, vector<32x32xf32>
    %cst_12 = arith.constant dense<0.000000e+00> : vector<8x32xf32>
    %9 = tpu.matmul %3, %8, %cst_12 {dimension_numbers = #tpu.dot_dimension_numbers<[1], [0], [0], [1], [0, 0, 1, 1], [], []>} : vector<8x32xf32>, vector<32x32xf32>, vector<8x32xf32> -> vector<8x32xf32>
    %c0_13 = arith.constant 0 : index
    %c0_14 = arith.constant 0 : index
    %10 = vector.load %arg5[%c0_13, %c0_14] : memref<32x32xf32, #tpu.memory_space<vmem>>, vector<32x32xf32>
    %cst_15 = arith.constant dense<0.000000e+00> : vector<8x32xf32>
    %11 = tpu.matmul %1, %10, %cst_15 {dimension_numbers = #tpu.dot_dimension_numbers<[1], [0], [0], [1], [0, 0, 1, 1], [], []>} : vector<8x32xf32>, vector<32x32xf32>, vector<8x32xf32> -> vector<8x32xf32>
    %c0_16 = arith.constant 0 : index
    %c0_17 = arith.constant 0 : index
    %c0_18 = arith.constant 0 : index
    %12 = vector.load %arg4[%c0_16, %c0_17, %c0_18] : memref<1x8x8xi32, #tpu.memory_space<vmem>>, vector<1x8x8xi32>
    %13 = vector.shape_cast %12 : vector<1x8x8xi32> to vector<8x8xi32>
    %c0_i32 = arith.constant 0 : i32
    %14 = vector.broadcast %c0_i32 : i32 to vector<8x8xi32>
    %15 = arith.cmpi eq, %13, %14 : vector<8x8xi32>
    %16 = vector.extract_strided_slice %7 {offsets = [0, 0], sizes = [8, 8], strides = [1, 1]} : vector<8x32xf32> to vector<8x8xf32>
    %17 = vector.extract_strided_slice %9 {offsets = [0, 0], sizes = [8, 8], strides = [1, 1]} : vector<8x32xf32> to vector<8x8xf32>
    %18 = vector.extract_strided_slice %11 {offsets = [0, 0], sizes = [8, 8], strides = [1, 1]} : vector<8x32xf32> to vector<8x8xf32>
    %19 = tpu.transpose %17, [1, 0] : vector<8x8xf32> -> vector<8x8xf32>
    %cst_19 = arith.constant dense<0.000000e+00> : vector<8x8xf32>
    %20 = tpu.matmul %16, %19, %cst_19 {dimension_numbers = #tpu.dot_dimension_numbers<[1], [0], [0], [1], [0, 0, 1, 1], [], []>} : vector<8x8xf32>, vector<8x8xf32>, vector<8x8xf32> -> vector<8x8xf32>
    %cst_20 = arith.constant -1.000000e+20 : f32
    %21 = vector.broadcast %cst_20 : f32 to vector<8x8xf32>
    %22 = arith.select %15, %21, %20 : vector<8x8xi1>, vector<8x8xf32>
    %cst_21 = arith.constant dense<0xFF800000> : vector<8xf32>
    %23 = vector.multi_reduction <maximumf>, %22, %cst_21 [1] : vector<8x8xf32> to vector<8xf32>
    %24 = vector.shape_cast %23 : vector<8xf32> to vector<8x1xf32>
    %25 = vector.broadcast %24 : vector<8x1xf32> to vector<8x8xf32>
    %26 = arith.subf %22, %25 : vector<8x8xf32>
    %27 = math.exp %26 : vector<8x8xf32>
    %cst_22 = arith.constant dense<0.000000e+00> : vector<8xf32>
    %28 = vector.multi_reduction <add>, %27, %cst_22 [1] : vector<8x8xf32> to vector<8xf32>
    %29 = vector.shape_cast %28 : vector<8xf32> to vector<8x1xf32>
    %30 = tpu.reciprocal %29 {approx = true} : vector<8x1xf32> -> vector<8x1xf32>
    %31 = vector.broadcast %30 : vector<8x1xf32> to vector<8x8xf32>
    %32 = arith.mulf %27, %31 : vector<8x8xf32>
    %cst_23 = arith.constant dense<0.000000e+00> : vector<8x8xf32>
    %33 = tpu.matmul %32, %18, %cst_23 {dimension_numbers = #tpu.dot_dimension_numbers<[1], [0], [0], [1], [0, 0, 1, 1], [], []>} : vector<8x8xf32>, vector<8x8xf32>, vector<8x8xf32> -> vector<8x8xf32>
    %34 = vector.extract_strided_slice %7 {offsets = [0, 8], sizes = [8, 8], strides = [1, 1]} : vector<8x32xf32> to vector<8x8xf32>
    %35 = vector.extract_strided_slice %9 {offsets = [0, 8], sizes = [8, 8], strides = [1, 1]} : vector<8x32xf32> to vector<8x8xf32>
    %36 = vector.extract_strided_slice %11 {offsets = [0, 8], sizes = [8, 8], strides = [1, 1]} : vector<8x32xf32> to vector<8x8xf32>
    %37 = tpu.transpose %35, [1, 0] : vector<8x8xf32> -> vector<8x8xf32>
    %cst_24 = arith.constant dense<0.000000e+00> : vector<8x8xf32>
    %38 = tpu.matmul %34, %37, %cst_24 {dimension_numbers = #tpu.dot_dimension_numbers<[1], [0], [0], [1], [0, 0, 1, 1], [], []>} : vector<8x8xf32>, vector<8x8xf32>, vector<8x8xf32> -> vector<8x8xf32>
    %cst_25 = arith.constant -1.000000e+20 : f32
    %39 = vector.broadcast %cst_25 : f32 to vector<8x8xf32>
    %40 = arith.select %15, %39, %38 : vector<8x8xi1>, vector<8x8xf32>
    %cst_26 = arith.constant dense<0xFF800000> : vector<8xf32>
    %41 = vector.multi_reduction <maximumf>, %40, %cst_26 [1] : vector<8x8xf32> to vector<8xf32>
    %42 = vector.shape_cast %41 : vector<8xf32> to vector<8x1xf32>
    %43 = vector.broadcast %42 : vector<8x1xf32> to vector<8x8xf32>
    %44 = arith.subf %40, %43 : vector<8x8xf32>
    %45 = math.exp %44 : vector<8x8xf32>
    %cst_27 = arith.constant dense<0.000000e+00> : vector<8xf32>
    %46 = vector.multi_reduction <add>, %45, %cst_27 [1] : vector<8x8xf32> to vector<8xf32>
    %47 = vector.shape_cast %46 : vector<8xf32> to vector<8x1xf32>
    %48 = tpu.reciprocal %47 {approx = true} : vector<8x1xf32> -> vector<8x1xf32>
    %49 = vector.broadcast %48 : vector<8x1xf32> to vector<8x8xf32>
    %50 = arith.mulf %45, %49 : vector<8x8xf32>
    %cst_28 = arith.constant dense<0.000000e+00> : vector<8x8xf32>
    %51 = tpu.matmul %50, %36, %cst_28 {dimension_numbers = #tpu.dot_dimension_numbers<[1], [0], [0], [1], [0, 0, 1, 1], [], []>} : vector<8x8xf32>, vector<8x8xf32>, vector<8x8xf32> -> vector<8x8xf32>
    %52 = vector.extract_strided_slice %7 {offsets = [0, 16], sizes = [8, 8], strides = [1, 1]} : vector<8x32xf32> to vector<8x8xf32>
    %53 = vector.extract_strided_slice %9 {offsets = [0, 16], sizes = [8, 8], strides = [1, 1]} : vector<8x32xf32> to vector<8x8xf32>
    %54 = vector.extract_strided_slice %11 {offsets = [0, 16], sizes = [8, 8], strides = [1, 1]} : vector<8x32xf32> to vector<8x8xf32>
    %55 = tpu.transpose %53, [1, 0] : vector<8x8xf32> -> vector<8x8xf32>
    %cst_29 = arith.constant dense<0.000000e+00> : vector<8x8xf32>
    %56 = tpu.matmul %52, %55, %cst_29 {dimension_numbers = #tpu.dot_dimension_numbers<[1], [0], [0], [1], [0, 0, 1, 1], [], []>} : vector<8x8xf32>, vector<8x8xf32>, vector<8x8xf32> -> vector<8x8xf32>
    %cst_30 = arith.constant -1.000000e+20 : f32
    %57 = vector.broadcast %cst_30 : f32 to vector<8x8xf32>
    %58 = arith.select %15, %57, %56 : vector<8x8xi1>, vector<8x8xf32>
    %cst_31 = arith.constant dense<0xFF800000> : vector<8xf32>
    %59 = vector.multi_reduction <maximumf>, %58, %cst_31 [1] : vector<8x8xf32> to vector<8xf32>
    %60 = vector.shape_cast %59 : vector<8xf32> to vector<8x1xf32>
    %61 = vector.broadcast %60 : vector<8x1xf32> to vector<8x8xf32>
    %62 = arith.subf %58, %61 : vector<8x8xf32>
    %63 = math.exp %62 : vector<8x8xf32>
    %cst_32 = arith.constant dense<0.000000e+00> : vector<8xf32>
    %64 = vector.multi_reduction <add>, %63, %cst_32 [1] : vector<8x8xf32> to vector<8xf32>
    %65 = vector.shape_cast %64 : vector<8xf32> to vector<8x1xf32>
    %66 = tpu.reciprocal %65 {approx = true} : vector<8x1xf32> -> vector<8x1xf32>
    %67 = vector.broadcast %66 : vector<8x1xf32> to vector<8x8xf32>
    %68 = arith.mulf %63, %67 : vector<8x8xf32>
    %cst_33 = arith.constant dense<0.000000e+00> : vector<8x8xf32>
    %69 = tpu.matmul %68, %54, %cst_33 {dimension_numbers = #tpu.dot_dimension_numbers<[1], [0], [0], [1], [0, 0, 1, 1], [], []>} : vector<8x8xf32>, vector<8x8xf32>, vector<8x8xf32> -> vector<8x8xf32>
    %70 = vector.extract_strided_slice %7 {offsets = [0, 24], sizes = [8, 8], strides = [1, 1]} : vector<8x32xf32> to vector<8x8xf32>
    %71 = vector.extract_strided_slice %9 {offsets = [0, 24], sizes = [8, 8], strides = [1, 1]} : vector<8x32xf32> to vector<8x8xf32>
    %72 = vector.extract_strided_slice %11 {offsets = [0, 24], sizes = [8, 8], strides = [1, 1]} : vector<8x32xf32> to vector<8x8xf32>
    %73 = tpu.transpose %71, [1, 0] : vector<8x8xf32> -> vector<8x8xf32>
    %cst_34 = arith.constant dense<0.000000e+00> : vector<8x8xf32>
    %74 = tpu.matmul %70, %73, %cst_34 {dimension_numbers = #tpu.dot_dimension_numbers<[1], [0], [0], [1], [0, 0, 1, 1], [], []>} : vector<8x8xf32>, vector<8x8xf32>, vector<8x8xf32> -> vector<8x8xf32>
    %cst_35 = arith.constant -1.000000e+20 : f32
    %75 = vector.broadcast %cst_35 : f32 to vector<8x8xf32>
    %76 = arith.select %15, %75, %74 : vector<8x8xi1>, vector<8x8xf32>
    %cst_36 = arith.constant dense<0xFF800000> : vector<8xf32>
    %77 = vector.multi_reduction <maximumf>, %76, %cst_36 [1] : vector<8x8xf32> to vector<8xf32>
    %78 = vector.shape_cast %77 : vector<8xf32> to vector<8x1xf32>
    %79 = vector.broadcast %78 : vector<8x1xf32> to vector<8x8xf32>
    %80 = arith.subf %76, %79 : vector<8x8xf32>
    %81 = math.exp %80 : vector<8x8xf32>
    %cst_37 = arith.constant dense<0.000000e+00> : vector<8xf32>
    %82 = vector.multi_reduction <add>, %81, %cst_37 [1] : vector<8x8xf32> to vector<8xf32>
    %83 = vector.shape_cast %82 : vector<8xf32> to vector<8x1xf32>
    %84 = tpu.reciprocal %83 {approx = true} : vector<8x1xf32> -> vector<8x1xf32>
    %85 = vector.broadcast %84 : vector<8x1xf32> to vector<8x8xf32>
    %86 = arith.mulf %81, %85 : vector<8x8xf32>
    %cst_38 = arith.constant dense<0.000000e+00> : vector<8x8xf32>
    %87 = tpu.matmul %86, %72, %cst_38 {dimension_numbers = #tpu.dot_dimension_numbers<[1], [0], [0], [1], [0, 0, 1, 1], [], []>} : vector<8x8xf32>, vector<8x8xf32>, vector<8x8xf32> -> vector<8x8xf32>
    %88 = tpu.concatenate %33, %51, %69, %87 in 1 : vector<8x8xf32>, vector<8x8xf32>, vector<8x8xf32>, vector<8x8xf32> -> vector<8x32xf32>
    %c0_39 = arith.constant 0 : index
    %c0_40 = arith.constant 0 : index
    %89 = vector.load %arg8[%c0_39, %c0_40] : memref<32x32xf32, #tpu.memory_space<vmem>>, vector<32x32xf32>
    %cst_41 = arith.constant dense<0.000000e+00> : vector<8x32xf32>
    %90 = tpu.matmul %88, %89, %cst_41 {dimension_numbers = #tpu.dot_dimension_numbers<[1], [0], [0], [1], [0, 0, 1, 1], [], []>} : vector<8x32xf32>, vector<32x32xf32>, vector<8x32xf32> -> vector<8x32xf32>
    %c0_42 = arith.constant 0 : index
    %c0_43 = arith.constant 0 : index
    %91 = vector.load %arg9[%c0_42, %c0_43] : memref<1x32xf32, #tpu.memory_space<vmem>>, vector<1x32xf32>
    %92 = vector.broadcast %91 : vector<1x32xf32> to vector<8x32xf32>
    %93 = arith.addf %90, %92 : vector<8x32xf32>
    %94 = arith.addf %93, %5 : vector<8x32xf32>
    %cst_44 = arith.constant dense<0.000000e+00> : vector<8xf32>
    %95 = vector.multi_reduction <add>, %94, %cst_44 [1] : vector<8x32xf32> to vector<8xf32>
    %96 = vector.shape_cast %95 : vector<8xf32> to vector<8x1xf32>
    %cst_45 = arith.constant 3.200000e+01 : f32
    %97 = vector.broadcast %cst_45 : f32 to vector<8x1xf32>
    %98 = arith.divf %96, %97 : vector<8x1xf32>
    %99 = vector.broadcast %98 : vector<8x1xf32> to vector<8x32xf32>
    %100 = arith.subf %94, %99 : vector<8x32xf32>
    %101 = arith.mulf %100, %100 : vector<8x32xf32>
    %cst_46 = arith.constant dense<0.000000e+00> : vector<8xf32>
    %102 = vector.multi_reduction <add>, %101, %cst_46 [1] : vector<8x32xf32> to vector<8xf32>
    %103 = vector.shape_cast %102 : vector<8xf32> to vector<8x1xf32>
    %cst_47 = arith.constant 3.200000e+01 : f32
    %104 = vector.broadcast %cst_47 : f32 to vector<8x1xf32>
    %105 = arith.divf %103, %104 : vector<8x1xf32>
    %cst_48 = arith.constant 9.99999974E-6 : f32
    %106 = vector.broadcast %cst_48 : f32 to vector<8x1xf32>
    %107 = arith.addf %105, %106 : vector<8x1xf32>
    %108 = math.rsqrt %107 : vector<8x1xf32>
    %109 = vector.broadcast %108 : vector<8x1xf32> to vector<8x32xf32>
    %110 = arith.mulf %100, %109 : vector<8x32xf32>
    %c0_49 = arith.constant 0 : index
    %c0_50 = arith.constant 0 : index
    %111 = vector.load %arg10[%c0_49, %c0_50] : memref<1x32xf32, #tpu.memory_space<vmem>>, vector<1x32xf32>
    %112 = vector.broadcast %111 : vector<1x32xf32> to vector<8x32xf32>
    %113 = arith.mulf %110, %112 : vector<8x32xf32>
    %c0_51 = arith.constant 0 : index
    %c0_52 = arith.constant 0 : index
    %114 = vector.load %arg11[%c0_51, %c0_52] : memref<1x32xf32, #tpu.memory_space<vmem>>, vector<1x32xf32>
    %115 = vector.broadcast %114 : vector<1x32xf32> to vector<8x32xf32>
    %116 = arith.addf %113, %115 : vector<8x32xf32>
    %c0_53 = arith.constant 0 : index
    %c0_54 = arith.constant 0 : index
    %c0_55 = arith.constant 0 : index
    %117 = vector.load %arg12[%c0_53, %c0_54, %c0_55] : memref<1x8x32xf32, #tpu.memory_space<vmem>>, vector<1x8x32xf32>
    %118 = vector.shape_cast %117 : vector<1x8x32xf32> to vector<8x32xf32>
    %119 = vector.shape_cast %116 : vector<8x32xf32> to vector<1x8x32xf32>
    tpu.vector_store %arg12[%c0_53, %c0_54, %c0_55], %119 {strides = array<i32>} : memref<1x8x32xf32, #tpu.memory_space<vmem>>, vector<1x8x32xf32>,
    return
  }
  func.func @transform_0(%arg0: i32) -> (i32, i32, i32) {
    %c0_i32 = arith.constant 0 : i32
    %c0_i32_0 = arith.constant 0 : i32
    %c0_i32_1 = arith.constant 0 : i32
    return %arg0, %c0_i32, %c0_i32_0 : i32, i32, i32
  }
  func.func @transform_1(%arg0: i32) -> (i32, i32, i32) {
    %c0_i32 = arith.constant 0 : i32
    %c0_i32_0 = arith.constant 0 : i32
    %c0_i32_1 = arith.constant 0 : i32
    return %arg0, %c0_i32, %c0_i32_0 : i32, i32, i32
  }
  func.func @transform_2(%arg0: i32) -> (i32, i32, i32) {
    %c0_i32 = arith.constant 0 : i32
    %c0_i32_0 = arith.constant 0 : i32
    %c0_i32_1 = arith.constant 0 : i32
    return %arg0, %c0_i32, %c0_i32_0 : i32, i32, i32
  }
  func.func @transform_3(%arg0: i32) -> (i32, i32, i32) {
    %c0_i32 = arith.constant 0 : i32
    %c0_i32_0 = arith.constant 0 : i32
    %c0_i32_1 = arith.constant 0 : i32
    %c0_i32_2 = arith.constant 0 : i32
    return %c0_i32, %c0_i32_0, %c0_i32_1 : i32, i32, i32
  }
  func.func @transform_4(%arg0: i32) -> (i32, i32) {
    %c0_i32 = arith.constant 0 : i32
    %c0_i32_0 = arith.constant 0 : i32
    %c0_i32_1 = arith.constant 0 : i32
    return %c0_i32, %c0_i32_0 : i32, i32
  }
  func.func @transform_5(%arg0: i32) -> (i32, i32) {
    %c0_i32 = arith.constant 0 : i32
    %c0_i32_0 = arith.constant 0 : i32
    %c0_i32_1 = arith.constant 0 : i32
    return %c0_i32, %c0_i32_0 : i32, i32
  }
  func.func @transform_6(%arg0: i32) -> (i32, i32) {
    %c0_i32 = arith.constant 0 : i32
    %c0_i32_0 = arith.constant 0 : i32
    %c0_i32_1 = arith.constant 0 : i32
    return %c0_i32, %c0_i32_0 : i32, i32
  }
  func.func @transform_7(%arg0: i32) -> (i32, i32) {
    %c0_i32 = arith.constant 0 : i32
    %c0_i32_0 = arith.constant 0 : i32
    %c0_i32_1 = arith.constant 0 : i32
    return %c0_i32, %c0_i32_0 : i32, i32
  }
  func.func @transform_8(%arg0: i32) -> (i32, i32) {
    %c0_i32 = arith.constant 0 : i32
    %c0_i32_0 = arith.constant 0 : i32
    %c0_i32_1 = arith.constant 0 : i32
    return %c0_i32, %c0_i32_0 : i32, i32
  }
  func.func @transform_9(%arg0: i32) -> (i32, i32) {
    %c0_i32 = arith.constant 0 : i32
    %c0_i32_0 = arith.constant 0 : i32
    %c0_i32_1 = arith.constant 0 : i32
    return %c0_i32, %c0_i32_0 : i32, i32
  }
  func.func @transform_10(%arg0: i32) -> (i32, i32) {
    %c0_i32 = arith.constant 0 : i32
    %c0_i32_0 = arith.constant 0 : i32
    %c0_i32_1 = arith.constant 0 : i32
    return %c0_i32, %c0_i32_0 : i32, i32
  }
  func.func @transform_11(%arg0: i32) -> (i32, i32, i32) {
    %c0_i32 = arith.constant 0 : i32
    %c0_i32_0 = arith.constant 0 : i32
    %c0_i32_1 = arith.constant 0 : i32
    return %arg0, %c0_i32, %c0_i32_0 : i32, i32, i32
  }
}

</mosaic_0001>

<llo_original>
// kernel: transformer_forward.21
$region0: #{transformer_forward.21}
  #allocation0 [shape = 'u32[]', space=smem, size = 0x4, offset = 0x4, fixed_abs, tag = 'smem constant byte address 0x4 - core index']
  #allocation1 [shape = 'u32[144,128]{1,0:T(1,128)}', space=vmem, size = 0x12000, scoped, tag = 'internal scratch']
  %s0 = inlined_call_operand.vmem [shape: f32[16,32], index: 0, kind: input, shape index: {}]
  %s1 = inlined_call_operand.vmem [shape: f32[32,13], index: 1, kind: input, shape index: {}]
  %s2 = inlined_call_operand.vmem [shape: f32[1,13], index: 2, kind: input, shape index: {}]
  %s3 = inlined_call_operand.hbm [shape: f32[16,13], index: 3, kind: output, shape index: {}]
  %s4 = sld [smem:[#allocation0]]
  $region22: #{transformer_forward.21} parent=0
    _
  %s6 = ssub.s32 1, %s4
  %s7 = scalar_select 0, %s6, %s4
  $region1: #{transformer_forward.21} parent=0
    #allocation2 [shape = 'u8[8192]{0}', space=vmem, size = 0x2000, scoped, tag = 'output window, operand 0, single buffered']
    #allocation3 [shape = 's32[1]{0}', space=sflag, size = 0x4, scoped, tag = 'scoped memory for transformer_forward.21']
    %8 = vsyncpa [#allocation3], 0
    // Predicated region
    $region2: #{transformer_forward.21} parent=1 // pred_check
      _
    $region3: #{transformer_forward.21} parent=1 // pred_check_branch
      %10 = sbr.rel (0) target = $region5
    $region4: #{transformer_forward.21} parent=1 // pred_region
      _
    $region5: #{transformer_forward.21} parent=1 // pred_fallthru
      _
    // Predicated region
    $region6: #{transformer_forward.21} parent=1 // pred_check
      _
    $region7: #{transformer_forward.21} parent=1 // pred_check_branch
      %12 = sbr.rel (0) target = $region9
    $region8: #{transformer_forward.21} parent=1 // pred_region
      _
    $region9: #{transformer_forward.21} parent=1 // pred_fallthru
      _
    // Predicated region
    $region10: #{transformer_forward.21} parent=1 // pred_check
      _
    $region11: #{transformer_forward.21} parent=1 // pred_check_branch
      %14 = sbr.rel (0) target = $region13
    $region12: #{transformer_forward.21} parent=1 // pred_region
      _
    $region13: #{transformer_forward.21} parent=1 // pred_fallthru
      _
    %v15 = vld [vmem:[%s0] sm:$0xff]
    %v16 = vld [vmem:[%s0 + $0x8] sm:$0xff]
    %v17 = vld [vmem:[%s1] sm:$0xff]
    %v18 = vld [vmem:[%s1 + $0x8] sm:$0xff]
    %v19 = vld [vmem:[%s1 + $0x10] sm:$0xff]
    %v20 = vld [vmem:[%s1 + $0x18] sm:$0xff]
    %v21 = vld [vmem:[%s2] sm:$0x1]
    %v23 = vlaneseq
    %v24 = vshrl.u32 %v23, 7
    %v25 = vsub.s32 0, %v24
    %v26 = vrot.slane %v21, %v25
    %vm28 = vcmask 261120
    %v30 = vsel %vm28, %v15, 0
    %v33 = vsel %vm28, %v16, 0
    %35 = vmatprep.subr.mxu0 0.0
    %36 = vmatpush1.msra.mxu0 %v17
    %37 = vmatprep.subr.mxu0 0.0
    %38 = vmatpush1.msra.mxu0 %v18
    %39 = vmatprep.subr.mxu0 0.0
    %40 = vmatpush1.msra.mxu0 %v19
    %41 = vmatprep.subr.mxu0 0.0
    %42 = vmatpush1.msra.mxu0 %v20
    %43 = vmatprep.subr.mxu0 0.0
    %44 = vmatpush1.msra.mxu0 0.0
    %45 = vmatprep.subr.mxu0 0.0
    %46 = vmatpush1.msra.mxu0 0.0
    %47 = vmatprep.subr.mxu0 0.0
    %48 = vmatpush1.msra.mxu0 0.0
    %49 = vmatprep.subr.mxu0 0.0
    %50 = vmatpush1.msra.mxu0 0.0
    %51 = vmatprep.subr.mxu0 0.0
    %52 = vmatpush1.msra.mxu0 0.0
    %53 = vmatprep.subr.mxu0 0.0
    %54 = vmatpush1.msra.mxu0 0.0
    %55 = vmatprep.subr.mxu0 0.0
    %56 = vmatpush1.msra.mxu0 0.0
    %57 = vmatprep.subr.mxu0 0.0
    %58 = vmatpush1.msra.mxu0 0.0
    %59 = vmatprep.subr.mxu0 0.0
    %60 = vmatpush1.msra.mxu0 0.0
    %61 = vmatprep.subr.mxu0 0.0
    %62 = vmatpush1.msra.mxu0 0.0
    %63 = vmatprep.subr.mxu0 0.0
    %64 = vmatpush1.msra.mxu0 0.0
    %65 = vmatprep.subr.mxu0 0.0
    %66 = vmatpush1.msra.mxu0 0.0
    %67 = vmatprep.subr.mxu0 0.0
    %68 = vmatpush1.msra.mxu0 0.0
    %69 = vmatprep.subr.mxu0 0.0
    %70 = vmatpush1.msra.mxu0 0.0
    %71 = vmatprep.subr.mxu0 0.0
    %72 = vmatpush1.msra.mxu0 0.0
    %73 = vmatprep.subr.mxu0 0.0
    %74 = vmatpush1.msra.mxu0 0.0
    %75 = vmatprep.subr.mxu0 0.0
    %76 = vmatpush1.msra.mxu0 0.0
    %77 = vmatprep.subr.mxu0 0.0
    %78 = vmatpush1.msra.mxu0 0.0
    %79 = vmatprep.subr.mxu0 0.0
    %80 = vmatpush1.msra.mxu0 0.0
    %81 = vmatprep.subr.mxu0 0.0
    %82 = vmatpush1.msra.mxu0 0.0
    %83 = vmatprep.subr.mxu0 0.0
    %84 = vmatpush1.msra.mxu0 0.0
    %85 = vmatprep.subr.mxu0 0.0
    %86 = vmatpush1.msra.mxu0 0.0
    %87 = vmatprep.subr.mxu0 0.0
    %88 = vmatpush1.msra.mxu0 0.0
    %89 = vmatprep.subr.mxu0 0.0
    %90 = vmatpush1.msra.mxu0 0.0
    %91 = vmatprep.subr.mxu0 0.0
    %92 = vmatpush1.msra.mxu0 0.0
    %93 = vmatprep.subr.mxu0 0.0
    %94 = vmatpush1.msra.mxu0 0.0
    %95 = vmatprep.subr.mxu0 0.0
    %96 = vmatpush1.msra.mxu0 0.0
    %97 = vmatprep.subr.mxu0 0.0
    %98 = vmatpush1.msra.mxu0 0.0
    %99 = vmatprep.mubr.f32.mxu0 0.0
    %100 = vmatmul.mubr.f32.gmra.mrb[0].mxu0 %v30
    %v101 = vpop.f32.mrb[0].mxu0
    %v102 = vadd.f32 %v26, %v101
    %v103 = vpop.f32.mrb[0].mxu0
    %104 = vmatprep.mubr.f32.mxu0 0.0
    %105 = vmatmul.mubr.f32.gmra.mrb[0].mxu0 %v33
    %v106 = vpop.f32.mrb[0].mxu0
    %v107 = vadd.f32 %v26, %v106
    %v108 = vpop.f32.mrb[0].mxu0
    %109 = vdwg.mxu0
    %vm110 = vcmask 105472
    %111 = vst.msk [vmem:[#allocation2] sm:$0xff] %vm110, %v102
    %112 = vst.msk [vmem:[#allocation2 + $0x8] sm:$0xff] %vm110, %v107
    // Predicated region
    $region14: #{transformer_forward.21} parent=1 // pred_check
      _
    $region15: #{transformer_forward.21} parent=1 // pred_check_branch
      %114 = sbr.rel (0) target = $region17
    $region16: #{transformer_forward.21} parent=1 // pred_region
      %s116 = ssub.s32 256, 256
      %117 = vsyncadd [#allocation3], %s116
      %s118 = sshll.u32 [#allocation2], 4
      %s119 = int_to_ptr.vmem [resolvable:$true] %s118
      %124 = dma.vmem_to_hbm [thread:$0]  %s119, 256, %s3, [#allocation3], 128, 128, 8
    $region17: #{transformer_forward.21} parent=1 // pred_fallthru
      _
    // Predicated region
    $region18: #{transformer_forward.21} parent=1 // pred_check
      _
    $region19: #{transformer_forward.21} parent=1 // pred_check_branch
      %126 = sbr.rel (0) target = $region21
    $region20: #{transformer_forward.21} parent=1 // pred_region
      %127 = dma.done [#allocation3], 256
    $region21: #{transformer_forward.21} parent=1 // pred_fallthru
      _
    %128 = vsyncpa [#allocation3], 1

// kernel: transformer_forward.12
$region0: #{transformer_forward.12}
  #allocation0 [shape = 'u32[]', space=smem, size = 0x4, offset = 0x4, fixed_abs, tag = 'smem constant byte address 0x4 - core index']
  #allocation1 [shape = 'u32[144,128]{1,0:T(1,128)}', space=vmem, size = 0x12000, scoped, tag = 'internal scratch']
  %s0 = inlined_call_operand.vmem [shape: f32[16,32], index: 0, kind: input, shape index: {}]
  %s1 = inlined_call_operand.vmem [shape: f32[32,128], index: 1, kind: input, shape index: {}]
  %s2 = inlined_call_operand.vmem [shape: f32[1,128], index: 2, kind: input, shape index: {}]
  %s3 = inlined_call_operand.vmem [shape: f32[128,32], index: 3, kind: input, shape index: {}]
  %s4 = inlined_call_operand.vmem [shape: f32[1,32], index: 4, kind: input, shape index: {}]
  %s5 = inlined_call_operand.vmem [shape: f32[1,32], index: 5, kind: input, shape index: {}]
  %s6 = inlined_call_operand.vmem [shape: f32[1,32], index: 6, kind: input, shape index: {}]
  %s7 = inlined_call_operand.vmem [shape: f32[16,32], index: 7, kind: output, shape index: {}]
  %s8 = sld [smem:[#allocation0]]
  $region38: #{transformer_forward.12} parent=0
    _
  %s10 = ssub.s32 1, %s8
  %s11 = scalar_select 0, %s10, %s8
  // Predicated region
  $region2: #{transformer_forward.12} parent=0 // pred_check
    _
  $region3: #{transformer_forward.12} parent=0 // pred_check_branch
    %13 = sbr.rel (0) target = $region5
  $region4: #{transformer_forward.12} parent=0 // pred_region
    _
  $region5: #{transformer_forward.12} parent=0 // pred_fallthru
    _
  // Predicated region
  $region6: #{transformer_forward.12} parent=0 // pred_check
    _
  $region7: #{transformer_forward.12} parent=0 // pred_check_branch
    %15 = sbr.rel (0) target = $region9
  $region8: #{transformer_forward.12} parent=0 // pred_region
    _
  $region9: #{transformer_forward.12} parent=0 // pred_fallthru
    _
  // Predicated region
  $region10: #{transformer_forward.12} parent=0 // pred_check
    _
  $region11: #{transformer_forward.12} parent=0 // pred_check_branch
    %17 = sbr.rel (0) target = $region13
  $region12: #{transformer_forward.12} parent=0 // pred_region
    _
  $region13: #{transformer_forward.12} parent=0 // pred_fallthru
    _
  // Predicated region
  $region14: #{transformer_forward.12} parent=0 // pred_check
    _
  $region15: #{transformer_forward.12} parent=0 // pred_check_branch
    %19 = sbr.rel (0) target = $region17
  $region16: #{transformer_forward.12} parent=0 // pred_region
    _
  $region17: #{transformer_forward.12} parent=0 // pred_fallthru
    _
  // Predicated region
  $region18: #{transformer_forward.12} parent=0 // pred_check
    _
  $region19: #{transformer_forward.12} parent=0 // pred_check_branch
    %21 = sbr.rel (0) target = $region21
  $region20: #{transformer_forward.12} parent=0 // pred_region
    _
  $region21: #{transformer_forward.12} parent=0 // pred_fallthru
    _
  // Predicated region
  $region22: #{transformer_forward.12} parent=0 // pred_check
    _
  $region23: #{transformer_forward.12} parent=0 // pred_check_branch
    %23 = sbr.rel (0) target = $region25
  $region24: #{transformer_forward.12} parent=0 // pred_region
    _
  $region25: #{transformer_forward.12} parent=0 // pred_fallthru
    _
  // Predicated region
  $region26: #{transformer_forward.12} parent=0 // pred_check
    _
  $region27: #{transformer_forward.12} parent=0 // pred_check_branch
    %25 = sbr.rel (0) target = $region29
  $region28: #{transformer_forward.12} parent=0 // pred_region
    _
  $region29: #{transformer_forward.12} parent=0 // pred_fallthru
    _
  %v26 = vld [vmem:[%s0] sm:$0xff]
  %v27 = vld [vmem:[%s0 + $0x8] sm:$0xff]
  %v28 = vld [vmem:[%s1] sm:$0xff]
  %v29 = vld [vmem:[%s1 + $0x8] sm:$0xff]
  %v30 = vld [vmem:[%s1 + $0x10] sm:$0xff]
  %v31 = vld [vmem:[%s1 + $0x18] sm:$0xff]
  %v32 = vld [vmem:[%s2] sm:$0x1]
  %v34 = vlaneseq
  %v35 = vshrl.u32 %v34, 7
  %v36 = vsub.s32 0, %v35
  %v37 = vrot.slane %v32, %v36
  %vm39 = vcmask 261120
  %v41 = vsel %vm39, %v26, 0
  %v44 = vsel %vm39, %v27, 0
  %46 = vmatprep.subr.mxu0 0.0
  %47 = vmatpush1.msra.mxu0 %v28
  %48 = vmatprep.subr.mxu0 0.0
  %49 = vmatpush1.msra.mxu0 %v29
  %50 = vmatprep.subr.mxu0 0.0
  %51 = vmatpush1.msra.mxu0 %v30
  %52 = vmatprep.subr.mxu0 0.0
  %53 = vmatpush1.msra.mxu0 %v31
  %54 = vmatprep.subr.mxu0 0.0
  %55 = vmatpush1.msra.mxu0 0.0
  %56 = vmatprep.subr.mxu0 0.0
  %57 = vmatpush1.msra.mxu0 0.0
  %58 = vmatprep.subr.mxu0 0.0
  %59 = vmatpush1.msra.mxu0 0.0
  %60 = vmatprep.subr.mxu0 0.0
  %61 = vmatpush1.msra.mxu0 0.0
  %62 = vmatprep.subr.mxu0 0.0
  %63 = vmatpush1.msra.mxu0 0.0
  %64 = vmatprep.subr.mxu0 0.0
  %65 = vmatpush1.msra.mxu0 0.0
  %66 = vmatprep.subr.mxu0 0.0
  %67 = vmatpush1.msra.mxu0 0.0
  %68 = vmatprep.subr.mxu0 0.0
  %69 = vmatpush1.msra.mxu0 0.0
  %70 = vmatprep.subr.mxu0 0.0
  %71 = vmatpush1.msra.mxu0 0.0
  %72 = vmatprep.subr.mxu0 0.0
  %73 = vmatpush1.msra.mxu0 0.0
  %74 = vmatprep.subr.mxu0 0.0
  %75 = vmatpush1.msra.mxu0 0.0
  %76 = vmatprep.subr.mxu0 0.0
  %77 = vmatpush1.msra.mxu0 0.0
  %78 = vmatprep.subr.mxu0 0.0
  %79 = vmatpush1.msra.mxu0 0.0
  %80 = vmatprep.subr.mxu0 0.0
  %81 = vmatpush1.msra.mxu0 0.0
  %82 = vmatprep.subr.mxu0 0.0
  %83 = vmatpush1.msra.mxu0 0.0
  %84 = vmatprep.subr.mxu0 0.0
  %85 = vmatpush1.msra.mxu0 0.0
  %86 = vmatprep.subr.mxu0 0.0
  %87 = vmatpush1.msra.mxu0 0.0
  %88 = vmatprep.subr.mxu0 0.0
  %89 = vmatpush1.msra.mxu0 0.0
  %90 = vmatprep.subr.mxu0 0.0
  %91 = vmatpush1.msra.mxu0 0.0
  %92 = vmatprep.subr.mxu0 0.0
  %93 = vmatpush1.msra.mxu0 0.0
  %94 = vmatprep.subr.mxu0 0.0
  %95 = vmatpush1.msra.mxu0 0.0
  %96 = vmatprep.subr.mxu0 0.0
  %97 = vmatpush1.msra.mxu0 0.0
  %98 = vmatprep.subr.mxu0 0.0
  %99 = vmatpush1.msra.mxu0 0.0
  %100 = vmatprep.subr.mxu0 0.0
  %101 = vmatpush1.msra.mxu0 0.0
  %102 = vmatprep.subr.mxu0 0.0
  %103 = vmatpush1.msra.mxu0 0.0
  %104 = vmatprep.subr.mxu0 0.0
  %105 = vmatpush1.msra.mxu0 0.0
  %106 = vmatprep.subr.mxu0 0.0
  %107 = vmatpush1.msra.mxu0 0.0
  %108 = vmatprep.subr.mxu0 0.0
  %109 = vmatpush1.msra.mxu0 0.0
  %110 = vmatprep.mubr.f32.mxu0 0.0
  %111 = vmatmul.mubr.f32.gmra.mrb[0].mxu0 %v41
  %v112 = vpop.f32.mrb[0].mxu0
  %v113 = vadd.f32 %v37, %v112
  %v114 = vpop.f32.mrb[0].mxu0
  %115 = vmatprep.mubr.f32.mxu0 0.0
  %116 = vmatmul.mubr.f32.gmra.mrb[0].mxu0 %v44
  %v117 = vpop.f32.mrb[0].mxu0
  %v118 = vadd.f32 %v37, %v117
  %v119 = vpop.f32.mrb[0].mxu0
  %120 = vdwg.mxu0
  %v121 = vmax.f32 %v113, 0.0
  %v122 = vmax.f32 %v118, 0.0
  %v123 = vld [vmem:[%s3] sm:$0xff]
  %v124 = vld [vmem:[%s3 + $0x8] sm:$0xff]
  %v125 = vld [vmem:[%s3 + $0x10] sm:$0xff]
  %v126 = vld [vmem:[%s3 + $0x18] sm:$0xff]
  %v127 = vld [vmem:[%s3 + $0x20] sm:$0xff]
  %v128 = vld [vmem:[%s3 + $0x28] sm:$0xff]
  %v129 = vld [vmem:[%s3 + $0x30] sm:$0xff]
  %v130 = vld [vmem:[%s3 + $0x38] sm:$0xff]
  %v131 = vld [vmem:[%s3 + $0x40] sm:$0xff]
  %v132 = vld [vmem:[%s3 + $0x48] sm:$0xff]
  %v133 = vld [vmem:[%s3 + $0x50] sm:$0xff]
  %v134 = vld [vmem:[%s3 + $0x58] sm:$0xff]
  %v135 = vld [vmem:[%s3 + $0x60] sm:$0xff]
  %v136 = vld [vmem:[%s3 + $0x68] sm:$0xff]
  %v137 = vld [vmem:[%s3 + $0x70] sm:$0xff]
  %v138 = vld [vmem:[%s3 + $0x78] sm:$0xff]
  %v139 = vld [vmem:[%s4] sm:$0x1]
  %v141 = vlaneseq
  %v142 = vshrl.u32 %v141, 7
  %v143 = vsub.s32 0, %v142
  %v144 = vrot.slane %v139, %v143
  %146 = vmatprep.subr.mxu0 0.0
  %147 = vmatpush1.msra.mxu0 %v123
  %148 = vmatprep.subr.mxu0 0.0
  %149 = vmatpush1.msra.mxu0 %v124
  %150 = vmatprep.subr.mxu0 0.0
  %151 = vmatpush1.msra.mxu0 %v125
  %152 = vmatprep.subr.mxu0 0.0
  %153 = vmatpush1.msra.mxu0 %v126
  %154 = vmatprep.subr.mxu0 0.0
  %155 = vmatpush1.msra.mxu0 %v127
  %156 = vmatprep.subr.mxu0 0.0
  %157 = vmatpush1.msra.mxu0 %v128
  %158 = vmatprep.subr.mxu0 0.0
  %159 = vmatpush1.msra.mxu0 %v129
  %160 = vmatprep.subr.mxu0 0.0
  %161 = vmatpush1.msra.mxu0 %v130
  %162 = vmatprep.subr.mxu0 0.0
  %163 = vmatpush1.msra.mxu0 %v131
  %164 = vmatprep.subr.mxu0 0.0
  %165 = vmatpush1.msra.mxu0 %v132
  %166 = vmatprep.subr.mxu0 0.0
  %167 = vmatpush1.msra.mxu0 %v133
  %168 = vmatprep.subr.mxu0 0.0
  %169 = vmatpush1.msra.mxu0 %v134
  %170 = vmatprep.subr.mxu0 0.0
  %171 = vmatpush1.msra.mxu0 %v135
  %172 = vmatprep.subr.mxu0 0.0
  %173 = vmatpush1.msra.mxu0 %v136
  %174 = vmatprep.subr.mxu0 0.0
  %175 = vmatpush1.msra.mxu0 %v137
  %176 = vmatprep.subr.mxu0 0.0
  %177 = vmatpush1.msra.mxu0 %v138
  %178 = vmatprep.subr.mxu0 0.0
  %179 = vmatpush1.msra.mxu0 0.0
  %180 = vmatprep.subr.mxu0 0.0
  %181 = vmatpush1.msra.mxu0 0.0
  %182 = vmatprep.subr.mxu0 0.0
  %183 = vmatpush1.msra.mxu0 0.0
  %184 = vmatprep.subr.mxu0 0.0
  %185 = vmatpush1.msra.mxu0 0.0
  %186 = vmatprep.subr.mxu0 0.0
  %187 = vmatpush1.msra.mxu0 0.0
  %188 = vmatprep.subr.mxu0 0.0
  %189 = vmatpush1.msra.mxu0 0.0
  %190 = vmatprep.subr.mxu0 0.0
  %191 = vmatpush1.msra.mxu0 0.0
  %192 = vmatprep.subr.mxu0 0.0
  %193 = vmatpush1.msra.mxu0 0.0
  %194 = vmatprep.subr.mxu0 0.0
  %195 = vmatpush1.msra.mxu0 0.0
  %196 = vmatprep.subr.mxu0 0.0
  %197 = vmatpush1.msra.mxu0 0.0
  %198 = vmatprep.subr.mxu0 0.0
  %199 = vmatpush1.msra.mxu0 0.0
  %200 = vmatprep.subr.mxu0 0.0
  %201 = vmatpush1.msra.mxu0 0.0
  %202 = vmatprep.subr.mxu0 0.0
  %203 = vmatpush1.msra.mxu0 0.0
  %204 = vmatprep.subr.mxu0 0.0
  %205 = vmatpush1.msra.mxu0 0.0
  %206 = vmatprep.subr.mxu0 0.0
  %207 = vmatpush1.msra.mxu0 0.0
  %208 = vmatprep.subr.mxu0 0.0
  %209 = vmatpush1.msra.mxu0 0.0
  %210 = vmatprep.mubr.f32.mxu0 0.0
  %211 = vmatmul.mubr.f32.gmra.mrb[0].mxu0 %v121
  %v212 = vpop.f32.mrb[0].mxu0
  %v213 = vadd.f32 %v144, %v212
  %v214 = vpop.f32.mrb[0].mxu0
  %215 = vmatprep.mubr.f32.mxu0 0.0
  %216 = vmatmul.mubr.f32.gmra.mrb[0].mxu0 %v122
  %v217 = vpop.f32.mrb[0].mxu0
  %v218 = vadd.f32 %v144, %v217
  %v219 = vpop.f32.mrb[0].mxu0
  %220 = vdwg.mxu0
  %v221 = vadd.f32 %v213, %v26
  %v222 = vadd.f32 %v218, %v27
  %v223 = vsel %vm39, %v221, 0.0
  %224 = vadd.xlane.f32.xlu0 %v223
  %v225 = vpop.xlane.xlu0 %224
  %v226 = vsel %vm39, %v222, 0.0
  %227 = vadd.xlane.f32.xlu0 %v226
  %v228 = vpop.xlane.xlu0 %227
  %v229 = vrcp.pop 32.0
  %v230 = vmul.f32 %v225, %v229
  %v231 = vmul.f32 %v228, %v229
  %v232 = vsub.f32 %v221, %v230
  %v233 = vsub.f32 %v222, %v231
  %v234 = vmul.f32 %v232, %v232
  %v235 = vmul.f32 %v233, %v233
  %v236 = vsel %vm39, %v234, 0.0
  %237 = vadd.xlane.f32.xlu0 %v236
  %v238 = vpop.xlane.xlu0 %237
  %v239 = vsel %vm39, %v235, 0.0
  %240 = vadd.xlane.f32.xlu0 %v239
  %v241 = vpop.xlane.xlu0 %240
  %v242 = vmul.f32 %v238, %v229
  %v243 = vmul.f32 %v241, %v229
  %v244 = vadd.f32 %v242, 1e-05
  %v245 = vadd.f32 %v243, 1e-05
  %v246 = vrsqrt.pop %v244
  %v247 = vrsqrt.pop %v245
  %v248 = vmul.f32 %v232, %v246
  %v249 = vmul.f32 %v233, %v247
  %v250 = vld [vmem:[%s5] sm:$0x1]
  %v252 = vlaneseq
  %v253 = vshrl.u32 %v252, 7
  %v254 = vsub.s32 0, %v253
  %v255 = vrot.slane %v250, %v254
  %v257 = vmul.f32 %v248, %v255
  %v258 = vmul.f32 %v249, %v255
  %v259 = vld [vmem:[%s6] sm:$0x1]
  %v261 = vlaneseq
  %v262 = vshrl.u32 %v261, 7
  %v263 = vsub.s32 0, %v262
  %v264 = vrot.slane %v259, %v263
  %v266 = vadd.f32 %v257, %v264
  %v267 = vadd.f32 %v258, %v264
  %268 = vst.msk [vmem:[%s7] sm:$0xff] %vm39, %v266
  %269 = vst.msk [vmem:[%s7 + $0x8] sm:$0xff] %vm39, %v267
  // Predicated region
  $region30: #{transformer_forward.12} parent=0 // pred_check
    _
  $region31: #{transformer_forward.12} parent=0 // pred_check_branch
    %271 = sbr.rel (0) target = $region33
  $region32: #{transformer_forward.12} parent=0 // pred_region
    _
  $region33: #{transformer_forward.12} parent=0 // pred_fallthru
    _
  // Predicated region
  $region34: #{transformer_forward.12} parent=0 // pred_check
    _
  $region35: #{transformer_forward.12} parent=0 // pred_check_branch
    %273 = sbr.rel (0) target = $region37
  $region36: #{transformer_forward.12} parent=0 // pred_region
    _
  $region37: #{transformer_forward.12} parent=0 // pred_fallthru
    _

// kernel: transformer_forward.15
$region0: #{transformer_forward.15}
  #allocation0 [shape = 'u32[]', space=smem, size = 0x4, offset = 0x4, fixed_abs, tag = 'smem constant byte address 0x4 - core index']
  #allocation1 [shape = 'u32[144,128]{1,0:T(1,128)}', space=vmem, size = 0x12000, scoped, tag = 'internal scratch']
  %s0 = inlined_call_operand.vmem [shape: f32[2,8,32], index: 0, kind: input, shape index: {}, may-alias: {0,1,2}]
  %s1 = inlined_call_operand.vmem [shape: f32[2,8,32], index: 1, kind: input, shape index: {}, may-alias: {0,1,2}]
  %s2 = inlined_call_operand.vmem [shape: f32[2,8,32], index: 2, kind: input, shape index: {}, may-alias: {0,1,2}]
  %s3 = inlined_call_operand.vmem [shape: s32[1,8,8], index: 3, kind: input, shape index: {}]
  %s4 = inlined_call_operand.vmem [shape: f32[32,32], index: 4, kind: input, shape index: {}]
  %s5 = inlined_call_operand.vmem [shape: f32[32,32], index: 5, kind: input, shape index: {}]
  %s6 = inlined_call_operand.vmem [shape: f32[32,32], index: 6, kind: input, shape index: {}]
  %s7 = inlined_call_operand.vmem [shape: f32[32,32], index: 7, kind: input, shape index: {}]
  %s8 = inlined_call_operand.vmem [shape: f32[1,32], index: 8, kind: input, shape index: {}]
  %s9 = inlined_call_operand.vmem [shape: f32[1,32], index: 9, kind: input, shape index: {}]
  %s10 = inlined_call_operand.vmem [shape: f32[1,32], index: 10, kind: input, shape index: {}]
  %s11 = inlined_call_operand.vmem [shape: f32[2,8,32], index: 11, kind: output, shape index: {}]
  %s12 = sld [smem:[#allocation0]]
  $region77: #{transformer_forward.15} parent=0
    _
  %s14 = ssub.s32 1, %s12
  %s15 = scalar_select 0, %s14, %s12
  loop: start=0, step=1, limit=4
  $region2: #{transformer_forward.15} parent=0 // loop_pre_header
    _
  $region3: #{transformer_forward.15} parent=0 // loop_header
    %s17 = sphi 0, %s21
    %p18 = scmp.ge.s32.totalorder %s17, 4
    %s27 = sphi 0, %s29
    %s30 = sphi 0, %s27
    %s31 = sphi 0, %s30
    %s47 = sphi 0, %s31
    %s53 = sphi 0, %s55
    %s56 = sphi 0, %s53
    %s57 = sphi 0, %s56
    %s73 = sphi 0, %s57
    %s79 = sphi 0, %s81
    %s82 = sphi 0, %s79
    %s83 = sphi 0, %s82
    %s99 = sphi 0, %s83
    %s103 = sphi 0, %s103
    %s105 = sphi 0, %s103
    %s106 = sphi 0, %s105
    %s120 = sphi 0, %s106
    %s124 = sphi 0, %s124
    %s126 = sphi 0, %s124
    %s127 = sphi 0, %s126
    %s141 = sphi 0, %s127
    %s145 = sphi 0, %s145
    %s147 = sphi 0, %s145
    %s148 = sphi 0, %s147
    %s162 = sphi 0, %s148
    %s166 = sphi 0, %s166
    %s168 = sphi 0, %s166
    %s169 = sphi 0, %s168
    %s183 = sphi 0, %s169
    %s187 = sphi 0, %s187
    %s189 = sphi 0, %s187
    %s190 = sphi 0, %s189
    %s204 = sphi 0, %s190
    %s208 = sphi 0, %s208
    %s210 = sphi 0, %s208
    %s211 = sphi 0, %s210
    %s225 = sphi 0, %s211
    %s229 = sphi 0, %s229
    %s231 = sphi 0, %s229
    %s232 = sphi 0, %s231
    %s246 = sphi 0, %s232
    %s250 = sphi 0, %s250
    %s252 = sphi 0, %s250
    %s253 = sphi 0, %s252
    %s267 = sphi 0, %s253
    %s273 = sphi 0, %s275
    %s276 = sphi 0, %s273
    %s277 = sphi 0, %s276
    %s293 = sphi 0, %s277
  $region4: #{transformer_forward.15} parent=0 // loop_header_branch
    %20 = sbr.rel (%p18) target = $region8
  $region5: #{transformer_forward.15} parent=0 // loop_body
    %s22 = ssub.s32 %s17, 1
    %s23 = ssub.s32 %s17, 2
    %s24 = sadd.s32 %s17, 1
    %s25 = ssub.s32 %s17, %s24
    %p26 = scmp.eq.s32.totalorder %s25, 0
    %s28 = sadd.s32 %s27, 1
    %s29 = scalar_select %p26, %s27, %s28
    %p32 = pneg %p26
    %p33 = scmp.eq.s32.totalorder %s17, 1
    %p34 = por %p32, %p33
    %p35 = scmp.ne.s32.totalorder %s27, %s30
    %p36 = scmp.eq.s32.totalorder %s17, 0
    %p37 = por %p35, %p36
    %p38 = scmp.ne.s32.totalorder %s27, %s30
    %p39 = scmp.eq.s32.totalorder %s22, 1
    %p40 = por %p38, %p39
    %p41 = scmp.ne.s32.totalorder %s30, %s31
    %p42 = scmp.eq.s32.totalorder %s22, 0
    %p43 = por %p41, %p42
    %p44 = scmp.ne.s32.totalorder %s30, %s31
    %p45 = scmp.eq.s32.totalorder %s23, 1
    %p46 = por %p44, %p45
    %p48 = scmp.ne.s32.totalorder %s31, %s47
    %p49 = scmp.eq.s32.totalorder %s23, 0
    %p50 = por %p48, %p49
    %s51 = ssub.s32 %s17, %s24
    %p52 = scmp.eq.s32.totalorder %s51, 0
    %s54 = sadd.s32 %s53, 1
    %s55 = scalar_select %p52, %s53, %s54
    %p58 = pneg %p52
    %p59 = scmp.eq.s32.totalorder %s17, 1
    %p60 = por %p58, %p59
    %p61 = scmp.ne.s32.totalorder %s53, %s56
    %p62 = scmp.eq.s32.totalorder %s17, 0
    %p63 = por %p61, %p62
    %p64 = scmp.ne.s32.totalorder %s53, %s56
    %p65 = scmp.eq.s32.totalorder %s22, 1
    %p66 = por %p64, %p65
    %p67 = scmp.ne.s32.totalorder %s56, %s57
    %p68 = scmp.eq.s32.totalorder %s22, 0
    %p69 = por %p67, %p68
    %p70 = scmp.ne.s32.totalorder %s56, %s57
    %p71 = scmp.eq.s32.totalorder %s23, 1
    %p72 = por %p70, %p71
    %p74 = scmp.ne.s32.totalorder %s57, %s73
    %p75 = scmp.eq.s32.totalorder %s23, 0
    %p76 = por %p74, %p75
    %s77 = ssub.s32 %s17, %s24
    %p78 = scmp.eq.s32.totalorder %s77, 0
    %s80 = sadd.s32 %s79, 1
    %s81 = scalar_select %p78, %s79, %s80
    %p84 = pneg %p78
    %p85 = scmp.eq.s32.totalorder %s17, 1
    %p86 = por %p84, %p85
    %p87 = scmp.ne.s32.totalorder %s79, %s82
    %p88 = scmp.eq.s32.totalorder %s17, 0
    %p89 = por %p87, %p88
    %p90 = scmp.ne.s32.totalorder %s79, %s82
    %p91 = scmp.eq.s32.totalorder %s22, 1
    %p92 = por %p90, %p91
    %p93 = scmp.ne.s32.totalorder %s82, %s83
    %p94 = scmp.eq.s32.totalorder %s22, 0
    %p95 = por %p93, %p94
    %p96 = scmp.ne.s32.totalorder %s82, %s83
    %p97 = scmp.eq.s32.totalorder %s23, 1
    %p98 = por %p96, %p97
    %p100 = scmp.ne.s32.totalorder %s83, %s99
    %p101 = scmp.eq.s32.totalorder %s23, 0
    %p102 = por %p100, %p101
    %s104 = sadd.s32 %s103, 1
    %p107 = scmp.eq.s32.totalorder %s17, 1
    %p108 = scmp.ne.s32.totalorder %s103, %s105
    %p109 = scmp.eq.s32.totalorder %s17, 0
    %p110 = por %p108, %p109
    %p111 = scmp.ne.s32.totalorder %s103, %s105
    %p112 = scmp.eq.s32.totalorder %s22, 1
    %p113 = por %p111, %p112
    %p114 = scmp.ne.s32.totalorder %s105, %s106
    %p115 = scmp.eq.s32.totalorder %s22, 0
    %p116 = por %p114, %p115
    %p117 = scmp.ne.s32.totalorder %s105, %s106
    %p118 = scmp.eq.s32.totalorder %s23, 1
    %p119 = por %p117, %p118
    %p121 = scmp.ne.s32.totalorder %s106, %s120
    %p122 = scmp.eq.s32.totalorder %s23, 0
    %p123 = por %p121, %p122
    %s125 = sadd.s32 %s124, 1
    %p128 = scmp.eq.s32.totalorder %s17, 1
    %p129 = scmp.ne.s32.totalorder %s124, %s126
    %p130 = scmp.eq.s32.totalorder %s17, 0
    %p131 = por %p129, %p130
    %p132 = scmp.ne.s32.totalorder %s124, %s126
    %p133 = scmp.eq.s32.totalorder %s22, 1
    %p134 = por %p132, %p133
    %p135 = scmp.ne.s32.totalorder %s126, %s127
    %p136 = scmp.eq.s32.totalorder %s22, 0
    %p137 = por %p135, %p136
    %p138 = scmp.ne.s32.totalorder %s126, %s127
    %p139 = scmp.eq.s32.totalorder %s23, 1
    %p140 = por %p138, %p139
    %p142 = scmp.ne.s32.totalorder %s127, %s141
    %p143 = scmp.eq.s32.totalorder %s23, 0
    %p144 = por %p142, %p143
    %s146 = sadd.s32 %s145, 1
    %p149 = scmp.eq.s32.totalorder %s17, 1
    %p150 = scmp.ne.s32.totalorder %s145, %s147
    %p151 = scmp.eq.s32.totalorder %s17, 0
    %p152 = por %p150, %p151
    %p153 = scmp.ne.s32.totalorder %s145, %s147
    %p154 = scmp.eq.s32.totalorder %s22, 1
    %p155 = por %p153, %p154
    %p156 = scmp.ne.s32.totalorder %s147, %s148
    %p157 = scmp.eq.s32.totalorder %s22, 0
    %p158 = por %p156, %p157
    %p159 = scmp.ne.s32.totalorder %s147, %s148
    %p160 = scmp.eq.s32.totalorder %s23, 1
    %p161 = por %p159, %p160
    %p163 = scmp.ne.s32.totalorder %s148, %s162
    %p164 = scmp.eq.s32.totalorder %s23, 0
    %p165 = por %p163, %p164
    %s167 = sadd.s32 %s166, 1
    %p170 = scmp.eq.s32.totalorder %s17, 1
    %p171 = scmp.ne.s32.totalorder %s166, %s168
    %p172 = scmp.eq.s32.totalorder %s17, 0
    %p173 = por %p171, %p172
    %p174 = scmp.ne.s32.totalorder %s166, %s168
    %p175 = scmp.eq.s32.totalorder %s22, 1
    %p176 = por %p174, %p175
    %p177 = scmp.ne.s32.totalorder %s168, %s169
    %p178 = scmp.eq.s32.totalorder %s22, 0
    %p179 = por %p177, %p178
    %p180 = scmp.ne.s32.totalorder %s168, %s169
    %p181 = scmp.eq.s32.totalorder %s23, 1
    %p182 = por %p180, %p181
    %p184 = scmp.ne.s32.totalorder %s169, %s183
    %p185 = scmp.eq.s32.totalorder %s23, 0
    %p186 = por %p184, %p185
    %s188 = sadd.s32 %s187, 1
    %p191 = scmp.eq.s32.totalorder %s17, 1
    %p192 = scmp.ne.s32.totalorder %s187, %s189
    %p193 = scmp.eq.s32.totalorder %s17, 0
    %p194 = por %p192, %p193
    %p195 = scmp.ne.s32.totalorder %s187, %s189
    %p196 = scmp.eq.s32.totalorder %s22, 1
    %p197 = por %p195, %p196
    %p198 = scmp.ne.s32.totalorder %s189, %s190
    %p199 = scmp.eq.s32.totalorder %s22, 0
    %p200 = por %p198, %p199
    %p201 = scmp.ne.s32.totalorder %s189, %s190
    %p202 = scmp.eq.s32.totalorder %s23, 1
    %p203 = por %p201, %p202
    %p205 = scmp.ne.s32.totalorder %s190, %s204
    %p206 = scmp.eq.s32.totalorder %s23, 0
    %p207 = por %p205, %p206
    %s209 = sadd.s32 %s208, 1
    %p212 = scmp.eq.s32.totalorder %s17, 1
    %p213 = scmp.ne.s32.totalorder %s208, %s210
    %p214 = scmp.eq.s32.totalorder %s17, 0
    %p215 = por %p213, %p214
    %p216 = scmp.ne.s32.totalorder %s208, %s210
    %p217 = scmp.eq.s32.totalorder %s22, 1
    %p218 = por %p216, %p217
    %p219 = scmp.ne.s32.totalorder %s210, %s211
    %p220 = scmp.eq.s32.totalorder %s22, 0
    %p221 = por %p219, %p220
    %p222 = scmp.ne.s32.totalorder %s210, %s211
    %p223 = scmp.eq.s32.totalorder %s23, 1
    %p224 = por %p222, %p223
    %p226 = scmp.ne.s32.totalorder %s211, %s225
    %p227 = scmp.eq.s32.totalorder %s23, 0
    %p228 = por %p226, %p227
    %s230 = sadd.s32 %s229, 1
    %p233 = scmp.eq.s32.totalorder %s17, 1
    %p234 = scmp.ne.s32.totalorder %s229, %s231
    %p235 = scmp.eq.s32.totalorder %s17, 0
    %p236 = por %p234, %p235
    %p237 = scmp.ne.s32.totalorder %s229, %s231
    %p238 = scmp.eq.s32.totalorder %s22, 1
    %p239 = por %p237, %p238
    %p240 = scmp.ne.s32.totalorder %s231, %s232
    %p241 = scmp.eq.s32.totalorder %s22, 0
    %p242 = por %p240, %p241
    %p243 = scmp.ne.s32.totalorder %s231, %s232
    %p244 = scmp.eq.s32.totalorder %s23, 1
    %p245 = por %p243, %p244
    %p247 = scmp.ne.s32.totalorder %s232, %s246
    %p248 = scmp.eq.s32.totalorder %s23, 0
    %p249 = por %p247, %p248
    %s251 = sadd.s32 %s250, 1
    %p254 = scmp.eq.s32.totalorder %s17, 1
    %p255 = scmp.ne.s32.totalorder %s250, %s252
    %p256 = scmp.eq.s32.totalorder %s17, 0
    %p257 = por %p255, %p256
    %p258 = scmp.ne.s32.totalorder %s250, %s252
    %p259 = scmp.eq.s32.totalorder %s22, 1
    %p260 = por %p258, %p259
    %p261 = scmp.ne.s32.totalorder %s252, %s253
    %p262 = scmp.eq.s32.totalorder %s22, 0
    %p263 = por %p261, %p262
    %p264 = scmp.ne.s32.totalorder %s252, %s253
    %p265 = scmp.eq.s32.totalorder %s23, 1
    %p266 = por %p264, %p265
    %p268 = scmp.ne.s32.totalorder %s253, %s267
    %p269 = scmp.eq.s32.totalorder %s23, 0
    %p270 = por %p268, %p269
    %s271 = ssub.s32 %s17, %s24
    %p272 = scmp.eq.s32.totalorder %s271, 0
    %s274 = sadd.s32 %s273, 1
    %s275 = scalar_select %p272, %s273, %s274
    %p278 = pneg %p272
    %p279 = scmp.eq.s32.totalorder %s17, 1
    %p280 = por %p278, %p279
    %p281 = scmp.ne.s32.totalorder %s273, %s276
    %p282 = scmp.eq.s32.totalorder %s17, 0
    %p283 = por %p281, %p282
    %p284 = scmp.ne.s32.totalorder %s273, %s276
    %p285 = scmp.eq.s32.totalorder %s22, 1
    %p286 = por %p284, %p285
    %p287 = scmp.ne.s32.totalorder %s276, %s277
    %p288 = scmp.eq.s32.totalorder %s22, 0
    %p289 = por %p287, %p288
    %p290 = scmp.ne.s32.totalorder %s276, %s277
    %p291 = scmp.eq.s32.totalorder %s23, 1
    %p292 = por %p290, %p291
    %p294 = scmp.ne.s32.totalorder %s277, %s293
    %p295 = scmp.eq.s32.totalorder %s23, 0
    %p296 = por %p294, %p295
    %p297 = scmp.le.s32.totalorder 1, %s17
    %p298 = scmp.lt.s32.totalorder %s17, 3
    %p299 = pnand %p297, %p298
    %p300 = pneg %p299
    // Predicated region
    $region9: #{transformer_forward.15} parent=5 // pred_check
      _
    $region10: #{transformer_forward.15} parent=5 // pred_check_branch
      %302 = sbr.rel (%p299) target = $region12
    $region11: #{transformer_forward.15} parent=5 // pred_region
      %s303 = ssub.s32 %s17, 1
      // Predicated region
      $region13: #{transformer_forward.15} parent=11 // pred_check
        %p304 = pneg %p116
      $region14: #{transformer_forward.15} parent=11 // pred_check_branch
        %306 = sbr.rel (%p304) target = $region16
      $region15: #{transformer_forward.15} parent=11 // pred_region
        _
      $region16: #{transformer_forward.15} parent=11 // pred_fallthru
        _
      // Predicated region
      $region17: #{transformer_forward.15} parent=11 // pred_check
        %p307 = pneg %p137
      $region18: #{transformer_forward.15} parent=11 // pred_check_branch
        %309 = sbr.rel (%p307) target = $region20
      $region19: #{transformer_forward.15} parent=11 // pred_region
        _
      $region20: #{transformer_forward.15} parent=11 // pred_fallthru
        _
      // Predicated region
      $region21: #{transformer_forward.15} parent=11 // pred_check
        %p310 = pneg %p158
      $region22: #{transformer_forward.15} parent=11 // pred_check_branch
        %312 = sbr.rel (%p310) target = $region24
      $region23: #{transformer_forward.15} parent=11 // pred_region
        _
      $region24: #{transformer_forward.15} parent=11 // pred_fallthru
        _
      // Predicated region
      $region25: #{transformer_forward.15} parent=11 // pred_check
        %p313 = pneg %p179
      $region26: #{transformer_forward.15} parent=11 // pred_check_branch
        %315 = sbr.rel (%p313) target = $region28
      $region27: #{transformer_forward.15} parent=11 // pred_region
        _
      $region28: #{transformer_forward.15} parent=11 // pred_fallthru
        _
      // Predicated region
      $region29: #{transformer_forward.15} parent=11 // pred_check
        %p316 = pneg %p200
      $region30: #{transformer_forward.15} parent=11 // pred_check_branch
        %318 = sbr.rel (%p316) target = $region32
      $region31: #{transformer_forward.15} parent=11 // pred_region
        _
      $region32: #{transformer_forward.15} parent=11 // pred_fallthru
        _
      // Predicated region
      $region33: #{transformer_forward.15} parent=11 // pred_check
        %p319 = pneg %p221
      $region34: #{transformer_forward.15} parent=11 // pred_check_branch
        %321 = sbr.rel (%p319) target = $region36
      $region35: #{transformer_forward.15} parent=11 // pred_region
        _
      $region36: #{transformer_forward.15} parent=11 // pred_fallthru
        _
      // Predicated region
      $region37: #{transformer_forward.15} parent=11 // pred_check
        %p322 = pneg %p242
      $region38: #{transformer_forward.15} parent=11 // pred_check_branch
        %324 = sbr.rel (%p322) target = $region40
      $region39: #{transformer_forward.15} parent=11 // pred_region
        _
      $region40: #{transformer_forward.15} parent=11 // pred_fallthru
        _
      // Predicated region
      $region41: #{transformer_forward.15} parent=11 // pred_check
        %p325 = pneg %p263
      $region42: #{transformer_forward.15} parent=11 // pred_check_branch
        %327 = sbr.rel (%p325) target = $region44
      $region43: #{transformer_forward.15} parent=11 // pred_region
        _
      $region44: #{transformer_forward.15} parent=11 // pred_fallthru
        _
    $region12: #{transformer_forward.15} parent=5 // pred_fallthru
      _
    %p328 = scmp.lt.s32.totalorder %s17, 2
    // Predicated region
    $region45: #{transformer_forward.15} parent=5 // pred_check
      %p329 = pneg %p328
    $region46: #{transformer_forward.15} parent=5 // pred_check_branch
      %331 = sbr.rel (%p329) target = $region48
    $region47: #{transformer_forward.15} parent=5 // pred_region
      // Predicated region
      $region49: #{transformer_forward.15} parent=47 // pred_check
        %p332 = pneg %p37
      $region50: #{transformer_forward.15} parent=47 // pred_check_branch
        %334 = sbr.rel (%p332) target = $region52
      $region51: #{transformer_forward.15} parent=47 // pred_region
        %p335 = scmp.lt.s32.totalorder %s17, 1
        %s336 = scalar_select %p335, %s17, 1
        %s337 = smul.addr %s336, 8
        %s338 = scalar_lea.vmem %s0, %s337
      $region52: #{transformer_forward.15} parent=47 // pred_fallthru
        _
      // Predicated region
      $region53: #{transformer_forward.15} parent=47 // pred_check
        %p339 = pneg %p63
      $region54: #{transformer_forward.15} parent=47 // pred_check_branch
        %341 = sbr.rel (%p339) target = $region56
      $region55: #{transformer_forward.15} parent=47 // pred_region
        %p342 = scmp.lt.s32.totalorder %s17, 1
        %s343 = scalar_select %p342, %s17, 1
        %s344 = smul.addr %s343, 8
        %s345 = scalar_lea.vmem %s1, %s344
      $region56: #{transformer_forward.15} parent=47 // pred_fallthru
        _
      // Predicated region
      $region57: #{transformer_forward.15} parent=47 // pred_check
        %p346 = pneg %p89
      $region58: #{transformer_forward.15} parent=47 // pred_check_branch
        %348 = sbr.rel (%p346) target = $region60
      $region59: #{transformer_forward.15} parent=47 // pred_region
        %p349 = scmp.lt.s32.totalorder %s17, 1
        %s350 = scalar_select %p349, %s17, 1
        %s351 = smul.addr %s350, 8
        %s352 = scalar_lea.vmem %s2, %s351
      $region60: #{transformer_forward.15} parent=47 // pred_fallthru
        _
    $region48: #{transformer_forward.15} parent=5 // pred_fallthru
      _
    %p353 = scmp.le.s32.totalorder 1, %s17
    %p354 = scmp.lt.s32.totalorder %s17, 3
    %p355 = pnand %p353, %p354
    %p356 = pneg %p355
    // Predicated region
    $region61: #{transformer_forward.15} parent=5 // pred_check
      _
    $region62: #{transformer_forward.15} parent=5 // pred_check_branch
      %358 = sbr.rel (%p355) target = $region64
    $region63: #{transformer_forward.15} parent=5 // pred_region
      %s359 = ssub.s32 %s17, 1
      %p360 = scmp.lt.s32.totalorder %s22, 1
      %s361 = scalar_select %p360, %s22, 1
      %s362 = smul.addr %s361, 8
      %s363 = scalar_lea.vmem %s0, %s362
      %p364 = pneg %p43
      %p365 = pneg %p40
      %p366 = scmp.lt.s32.totalorder %s22, 1
      %s367 = scalar_select %p366, %s22, 1
      %s368 = smul.addr %s367, 8
      %s369 = scalar_lea.vmem %s1, %s368
      %p370 = pneg %p69
      %p371 = pneg %p66
      %p372 = scmp.lt.s32.totalorder %s22, 1
      %s373 = scalar_select %p372, %s22, 1
      %s374 = smul.addr %s373, 8
      %s375 = scalar_lea.vmem %s2, %s374
      %p376 = pneg %p95
      %p377 = pneg %p92
      %p378 = pneg %p116
      %p379 = pneg %p113
      %p380 = pneg %p137
      %p381 = pneg %p134
      %p382 = pneg %p158
      %p383 = pneg %p155
      %p384 = pneg %p179
      %p385 = pneg %p176
      %p386 = pneg %p200
      %p387 = pneg %p197
      %p388 = pneg %p221
      %p389 = pneg %p218
      %p390 = pneg %p242
      %p391 = pneg %p239
      %p392 = pneg %p263
      %p393 = pneg %p260
      %p394 = pneg %p289
      %p395 = pneg %p286
      %p396 = scmp.lt.s32.totalorder %s22, 1
      %s397 = scalar_select %p396, %s22, 1
      %s398 = smul.addr %s397, 8
      %s399 = scalar_lea.vmem %s11, %s398
      %p400 = scmp.lt.s32.totalorder %s22, 1
      %s401 = scalar_select %p400, %s22, 1
      %s402 = smul.addr %s401, 8
      %s403 = scalar_lea.vmem %s0, %s402
      %p404 = scmp.lt.s32.totalorder %s22, 1
      %s405 = scalar_select %p404, %s22, 1
      %s406 = smul.addr %s405, 8
      %s407 = scalar_lea.vmem %s1, %s406
      %p408 = scmp.lt.s32.totalorder %s22, 1
      %s409 = scalar_select %p408, %s22, 1
      %s410 = smul.addr %s409, 8
      %s411 = scalar_lea.vmem %s2, %s410
      %p412 = scmp.lt.s32.totalorder %s22, 1
      %s413 = scalar_select %p412, %s22, 1
      %s414 = smul.addr %s413, 8
      %s415 = scalar_lea.vmem %s11, %s414
      %v416 = vld [vmem:[%s403] sm:$0xff]
      %v417 = vld [vmem:[%s407] sm:$0xff]
      %v418 = vld [vmem:[%s411] sm:$0xff]
      %v419 = vld [vmem:[%s6] sm:$0xff]
      %v420 = vld [vmem:[%s6 + $0x8] sm:$0xff]
      %v421 = vld [vmem:[%s6 + $0x10] sm:$0xff]
      %v422 = vld [vmem:[%s6 + $0x18] sm:$0xff]
      %vm423 = vcmask 261120
      %v425 = vsel %vm423, %v418, 0
      %427 = vmatprep.subr.mxu0 0.0
      %428 = vmatpush1.msra.mxu0 %v419
      %429 = vmatprep.subr.mxu0 0.0
      %430 = vmatpush1.msra.mxu0 %v420
      %431 = vmatprep.subr.mxu0 0.0
      %432 = vmatpush1.msra.mxu0 %v421
      %433 = vmatprep.subr.mxu0 0.0
      %434 = vmatpush1.msra.mxu0 %v422
      %435 = vmatprep.subr.mxu0 0.0
      %436 = vmatpush1.msra.mxu0 0.0
      %437 = vmatprep.subr.mxu0 0.0
      %438 = vmatpush1.msra.mxu0 0.0
      %439 = vmatprep.subr.mxu0 0.0
      %440 = vmatpush1.msra.mxu0 0.0
      %441 = vmatprep.subr.mxu0 0.0
      %442 = vmatpush1.msra.mxu0 0.0
      %443 = vmatprep.subr.mxu0 0.0
      %444 = vmatpush1.msra.mxu0 0.0
      %445 = vmatprep.subr.mxu0 0.0
      %446 = vmatpush1.msra.mxu0 0.0
      %447 = vmatprep.subr.mxu0 0.0
      %448 = vmatpush1.msra.mxu0 0.0
      %449 = vmatprep.subr.mxu0 0.0
      %450 = vmatpush1.msra.mxu0 0.0
      %451 = vmatprep.subr.mxu0 0.0
      %452 = vmatpush1.msra.mxu0 0.0
      %453 = vmatprep.subr.mxu0 0.0
      %454 = vmatpush1.msra.mxu0 0.0
      %455 = vmatprep.subr.mxu0 0.0
      %456 = vmatpush1.msra.mxu0 0.0
      %457 = vmatprep.subr.mxu0 0.0
      %458 = vmatpush1.msra.mxu0 0.0
      %459 = vmatprep.subr.mxu0 0.0
      %460 = vmatpush1.msra.mxu0 0.0
      %461 = vmatprep.subr.mxu0 0.0
      %462 = vmatpush1.msra.mxu0 0.0
      %463 = vmatprep.subr.mxu0 0.0
      %464 = vmatpush1.msra.mxu0 0.0
      %465 = vmatprep.subr.mxu0 0.0
      %466 = vmatpush1.msra.mxu0 0.0
      %467 = vmatprep.subr.mxu0 0.0
      %468 = vmatpush1.msra.mxu0 0.0
      %469 = vmatprep.subr.mxu0 0.0
      %470 = vmatpush1.msra.mxu0 0.0
      %471 = vmatprep.subr.mxu0 0.0
      %472 = vmatpush1.msra.mxu0 0.0
      %473 = vmatprep.subr.mxu0 0.0
      %474 = vmatpush1.msra.mxu0 0.0
      %475 = vmatprep.subr.mxu0 0.0
      %476 = vmatpush1.msra.mxu0 0.0
      %477 = vmatprep.subr.mxu0 0.0
      %478 = vmatpush1.msra.mxu0 0.0
      %479 = vmatprep.subr.mxu0 0.0
      %480 = vmatpush1.msra.mxu0 0.0
      %481 = vmatprep.subr.mxu0 0.0
      %482 = vmatpush1.msra.mxu0 0.0
      %483 = vmatprep.subr.mxu0 0.0
      %484 = vmatpush1.msra.mxu0 0.0
      %485 = vmatprep.subr.mxu0 0.0
      %486 = vmatpush1.msra.mxu0 0.0
      %487 = vmatprep.subr.mxu0 0.0
      %488 = vmatpush1.msra.mxu0 0.0
      %489 = vmatprep.subr.mxu0 0.0
      %490 = vmatpush1.msra.mxu0 0.0
      %491 = vmatprep.mubr.f32.mxu0 0.0
      %492 = vmatmul.mubr.f32.gmra.mrb[0].mxu0 %v425
      %v493 = vpop.f32.mrb[0].mxu0
      %v494 = vadd.f32 0.0, %v493
      %v495 = vpop.f32.mrb[0].mxu0
      %496 = vdwg.mxu0
      %v497 = vld [vmem:[%s5] sm:$0xff]
      %v498 = vld [vmem:[%s5 + $0x8] sm:$0xff]
      %v499 = vld [vmem:[%s5 + $0x10] sm:$0xff]
      %v500 = vld [vmem:[%s5 + $0x18] sm:$0xff]
      %v502 = vsel %vm423, %v417, 0
      %504 = vmatprep.subr.mxu0 0.0
      %505 = vmatpush1.msra.mxu0 %v497
      %506 = vmatprep.subr.mxu0 0.0
      %507 = vmatpush1.msra.mxu0 %v498
      %508 = vmatprep.subr.mxu0 0.0
      %509 = vmatpush1.msra.mxu0 %v499
      %510 = vmatprep.subr.mxu0 0.0
      %511 = vmatpush1.msra.mxu0 %v500
      %512 = vmatprep.subr.mxu0 0.0
      %513 = vmatpush1.msra.mxu0 0.0
      %514 = vmatprep.subr.mxu0 0.0
      %515 = vmatpush1.msra.mxu0 0.0
      %516 = vmatprep.subr.mxu0 0.0
      %517 = vmatpush1.msra.mxu0 0.0
      %518 = vmatprep.subr.mxu0 0.0
      %519 = vmatpush1.msra.mxu0 0.0
      %520 = vmatprep.subr.mxu0 0.0
      %521 = vmatpush1.msra.mxu0 0.0
      %522 = vmatprep.subr.mxu0 0.0
      %523 = vmatpush1.msra.mxu0 0.0
      %524 = vmatprep.subr.mxu0 0.0
      %525 = vmatpush1.msra.mxu0 0.0
      %526 = vmatprep.subr.mxu0 0.0
      %527 = vmatpush1.msra.mxu0 0.0
      %528 = vmatprep.subr.mxu0 0.0
      %529 = vmatpush1.msra.mxu0 0.0
      %530 = vmatprep.subr.mxu0 0.0
      %531 = vmatpush1.msra.mxu0 0.0
      %532 = vmatprep.subr.mxu0 0.0
      %533 = vmatpush1.msra.mxu0 0.0
      %534 = vmatprep.subr.mxu0 0.0
      %535 = vmatpush1.msra.mxu0 0.0
      %536 = vmatprep.subr.mxu0 0.0
      %537 = vmatpush1.msra.mxu0 0.0
      %538 = vmatprep.subr.mxu0 0.0
      %539 = vmatpush1.msra.mxu0 0.0
      %540 = vmatprep.subr.mxu0 0.0
      %541 = vmatpush1.msra.mxu0 0.0
      %542 = vmatprep.subr.mxu0 0.0
      %543 = vmatpush1.msra.mxu0 0.0
      %544 = vmatprep.subr.mxu0 0.0
      %545 = vmatpush1.msra.mxu0 0.0
      %546 = vmatprep.subr.mxu0 0.0
      %547 = vmatpush1.msra.mxu0 0.0
      %548 = vmatprep.subr.mxu0 0.0
      %549 = vmatpush1.msra.mxu0 0.0
      %550 = vmatprep.subr.mxu0 0.0
      %551 = vmatpush1.msra.mxu0 0.0
      %552 = vmatprep.subr.mxu0 0.0
      %553 = vmatpush1.msra.mxu0 0.0
      %554 = vmatprep.subr.mxu0 0.0
      %555 = vmatpush1.msra.mxu0 0.0
      %556 = vmatprep.subr.mxu0 0.0
      %557 = vmatpush1.msra.mxu0 0.0
      %558 = vmatprep.subr.mxu0 0.0
      %559 = vmatpush1.msra.mxu0 0.0
      %560 = vmatprep.subr.mxu0 0.0
      %561 = vmatpush1.msra.mxu0 0.0
      %562 = vmatprep.subr.mxu0 0.0
      %563 = vmatpush1.msra.mxu0 0.0
      %564 = vmatprep.subr.mxu0 0.0
      %565 = vmatpush1.msra.mxu0 0.0
      %566 = vmatprep.subr.mxu0 0.0
      %567 = vmatpush1.msra.mxu0 0.0
      %568 = vmatprep.mubr.f32.mxu0 0.0
      %569 = vmatmul.mubr.f32.gmra.mrb[0].mxu0 %v502
      %v570 = vpop.f32.mrb[0].mxu0
      %v571 = vadd.f32 0.0, %v570
      %v572 = vpop.f32.mrb[0].mxu0
      %573 = vdwg.mxu0
      %v574 = vld [vmem:[%s4] sm:$0xff]
      %v575 = vld [vmem:[%s4 + $0x8] sm:$0xff]
      %v576 = vld [vmem:[%s4 + $0x10] sm:$0xff]
      %v577 = vld [vmem:[%s4 + $0x18] sm:$0xff]
      %v579 = vsel %vm423, %v416, 0
      %581 = vmatprep.subr.mxu0 0.0
      %582 = vmatpush1.msra.mxu0 %v574
      %583 = vmatprep.subr.mxu0 0.0
      %584 = vmatpush1.msra.mxu0 %v575
      %585 = vmatprep.subr.mxu0 0.0
      %586 = vmatpush1.msra.mxu0 %v576
      %587 = vmatprep.subr.mxu0 0.0
      %588 = vmatpush1.msra.mxu0 %v577
      %589 = vmatprep.subr.mxu0 0.0
      %590 = vmatpush1.msra.mxu0 0.0
      %591 = vmatprep.subr.mxu0 0.0
      %592 = vmatpush1.msra.mxu0 0.0
      %593 = vmatprep.subr.mxu0 0.0
      %594 = vmatpush1.msra.mxu0 0.0
      %595 = vmatprep.subr.mxu0 0.0
      %596 = vmatpush1.msra.mxu0 0.0
      %597 = vmatprep.subr.mxu0 0.0
      %598 = vmatpush1.msra.mxu0 0.0
      %599 = vmatprep.subr.mxu0 0.0
      %600 = vmatpush1.msra.mxu0 0.0
      %601 = vmatprep.subr.mxu0 0.0
      %602 = vmatpush1.msra.mxu0 0.0
      %603 = vmatprep.subr.mxu0 0.0
      %604 = vmatpush1.msra.mxu0 0.0
      %605 = vmatprep.subr.mxu0 0.0
      %606 = vmatpush1.msra.mxu0 0.0
      %607 = vmatprep.subr.mxu0 0.0
      %608 = vmatpush1.msra.mxu0 0.0
      %609 = vmatprep.subr.mxu0 0.0
      %610 = vmatpush1.msra.mxu0 0.0
      %611 = vmatprep.subr.mxu0 0.0
      %612 = vmatpush1.msra.mxu0 0.0
      %613 = vmatprep.subr.mxu0 0.0
      %614 = vmatpush1.msra.mxu0 0.0
      %615 = vmatprep.subr.mxu0 0.0
      %616 = vmatpush1.msra.mxu0 0.0
      %617 = vmatprep.subr.mxu0 0.0
      %618 = vmatpush1.msra.mxu0 0.0
      %619 = vmatprep.subr.mxu0 0.0
      %620 = vmatpush1.msra.mxu0 0.0
      %621 = vmatprep.subr.mxu0 0.0
      %622 = vmatpush1.msra.mxu0 0.0
      %623 = vmatprep.subr.mxu0 0.0
      %624 = vmatpush1.msra.mxu0 0.0
      %625 = vmatprep.subr.mxu0 0.0
      %626 = vmatpush1.msra.mxu0 0.0
      %627 = vmatprep.subr.mxu0 0.0
      %628 = vmatpush1.msra.mxu0 0.0
      %629 = vmatprep.subr.mxu0 0.0
      %630 = vmatpush1.msra.mxu0 0.0
      %631 = vmatprep.subr.mxu0 0.0
      %632 = vmatpush1.msra.mxu0 0.0
      %633 = vmatprep.subr.mxu0 0.0
      %634 = vmatpush1.msra.mxu0 0.0
      %635 = vmatprep.subr.mxu0 0.0
      %636 = vmatpush1.msra.mxu0 0.0
      %637 = vmatprep.subr.mxu0 0.0
      %638 = vmatpush1.msra.mxu0 0.0
      %639 = vmatprep.subr.mxu0 0.0
      %640 = vmatpush1.msra.mxu0 0.0
      %641 = vmatprep.subr.mxu0 0.0
      %642 = vmatpush1.msra.mxu0 0.0
      %643 = vmatprep.subr.mxu0 0.0
      %644 = vmatpush1.msra.mxu0 0.0
      %645 = vmatprep.mubr.f32.mxu0 0.0
      %646 = vmatmul.mubr.f32.gmra.mrb[0].mxu0 %v579
      %v647 = vpop.f32.mrb[0].mxu0
      %v648 = vadd.f32 0.0, %v647
      %v649 = vpop.f32.mrb[0].mxu0
      %650 = vdwg.mxu0
      %v651 = vld [vmem:[%s3] sm:$0xff]
      %vm652 = vcmp.eq.s32.totalorder %v651, 0
      %vm653 = vcmask 64512
      %v655 = vsel %vm653, %v494, 0
      %v658 = vsel %vm653, %v571, 0
      %660 = vmatprep.subr.mxu0 0.0
      %661 = vmatpush1.xpose.msra.mxu0 %v658
      %662 = vmatprep.subr.mxu0 0.0
      %663 = vmatpush1.xpose.msra.mxu0 0.0
      %664 = vmatprep.subr.mxu0 0.0
      %665 = vmatpush1.xpose.msra.mxu0 0.0
      %666 = vmatprep.subr.mxu0 0.0
      %667 = vmatpush1.xpose.msra.mxu0 0.0
      %668 = vmatprep.subr.mxu0 0.0
      %669 = vmatpush1.xpose.msra.mxu0 0.0
      %670 = vmatprep.subr.mxu0 0.0
      %671 = vmatpush1.xpose.msra.mxu0 0.0
      %672 = vmatprep.subr.mxu0 0.0
      %673 = vmatpush1.xpose.msra.mxu0 0.0
      %674 = vmatprep.subr.mxu0 0.0
      %675 = vmatpush1.xpose.msra.mxu0 0.0
      %676 = vmatprep.subr.mxu0 0.0
      %677 = vmatpush1.xpose.msra.mxu0 0.0
      %678 = vmatprep.subr.mxu0 0.0
      %679 = vmatpush1.xpose.msra.mxu0 0.0
      %680 = vmatprep.subr.mxu0 0.0
      %681 = vmatpush1.xpose.msra.mxu0 0.0
      %682 = vmatprep.subr.mxu0 0.0
      %683 = vmatpush1.xpose.msra.mxu0 0.0
      %684 = vmatprep.subr.mxu0 0.0
      %685 = vmatpush1.xpose.msra.mxu0 0.0
      %686 = vmatprep.subr.mxu0 0.0
      %687 = vmatpush1.xpose.msra.mxu0 0.0
      %688 = vmatprep.subr.mxu0 0.0
      %689 = vmatpush1.xpose.msra.mxu0 0.0
      %690 = vmatprep.subr.mxu0 0.0
      %691 = vmatpush1.xpose.msra.mxu0 0.0
      %692 = vmatprep.subr.mxu0 0.0
      %693 = vmatpush1.xpose.msra.mxu0 0.0
      %694 = vmatprep.subr.mxu0 0.0
      %695 = vmatpush1.xpose.msra.mxu0 0.0
      %696 = vmatprep.subr.mxu0 0.0
      %697 = vmatpush1.xpose.msra.mxu0 0.0
      %698 = vmatprep.subr.mxu0 0.0
      %699 = vmatpush1.xpose.msra.mxu0 0.0
      %700 = vmatprep.subr.mxu0 0.0
      %701 = vmatpush1.xpose.msra.mxu0 0.0
      %702 = vmatprep.subr.mxu0 0.0
      %703 = vmatpush1.xpose.msra.mxu0 0.0
      %704 = vmatprep.subr.mxu0 0.0
      %705 = vmatpush1.xpose.msra.mxu0 0.0
      %706 = vmatprep.subr.mxu0 0.0
      %707 = vmatpush1.xpose.msra.mxu0 0.0
      %708 = vmatprep.subr.mxu0 0.0
      %709 = vmatpush1.xpose.msra.mxu0 0.0
      %710 = vmatprep.subr.mxu0 0.0
      %711 = vmatpush1.xpose.msra.mxu0 0.0
      %712 = vmatprep.subr.mxu0 0.0
      %713 = vmatpush1.xpose.msra.mxu0 0.0
      %714 = vmatprep.subr.mxu0 0.0
      %715 = vmatpush1.xpose.msra.mxu0 0.0
      %716 = vmatprep.subr.mxu0 0.0
      %717 = vmatpush1.xpose.msra.mxu0 0.0
      %718 = vmatprep.subr.mxu0 0.0
      %719 = vmatpush1.xpose.msra.mxu0 0.0
      %720 = vmatprep.subr.mxu0 0.0
      %721 = vmatpush1.xpose.msra.mxu0 0.0
      %722 = vmatprep.subr.mxu0 0.0
      %723 = vmatpush1.xpose.msra.mxu0 0.0
      %724 = vmatprep.mubr.f32.mxu0 0.0
      %725 = vmatmul.mubr.f32.gmra.mrb[0].mxu0 %v655
      %v726 = vpop.f32.mrb[0].mxu0
      %v727 = vadd.f32 0.0, %v726
      %v728 = vpop.f32.mrb[0].mxu0
      %729 = vdwg.mxu0
      %v730 = vsel %vm652, -1e+20, %v727
      %v731 = vsel %vm653, %v730, -inf
      %732 = vmax.xlane.f32.xlu0 %v731
      %v733 = vpop.xlane.xlu0 %732
      %v734 = vsub.f32 %v730, %v733
      %v735 = vmul.f32 %v734, 1.442695
      %v736 = vpow.pop %v735
      %v737 = vsel %vm653, %v736, 0.0
      %738 = vadd.xlane.f32.xlu0 %v737
      %v739 = vpop.xlane.xlu0 %738
      %v740 = vrcp.pop %v739
      %v741 = vmul.f32 %v736, %v740
      %v743 = vsel %vm653, %v741, 0
      %745 = vmatprep.subr.mxu0 0.0
      %746 = vmatpush1.msra.mxu0 %v648
      %747 = vmatprep.subr.mxu0 0.0
      %748 = vmatpush1.msra.mxu0 0.0
      %749 = vmatprep.subr.mxu0 0.0
      %750 = vmatpush1.msra.mxu0 0.0
      %751 = vmatprep.subr.mxu0 0.0
      %752 = vmatpush1.msra.mxu0 0.0
      %753 = vmatprep.subr.mxu0 0.0
      %754 = vmatpush1.msra.mxu0 0.0
      %755 = vmatprep.subr.mxu0 0.0
      %756 = vmatpush1.msra.mxu0 0.0
      %757 = vmatprep.subr.mxu0 0.0
      %758 = vmatpush1.msra.mxu0 0.0
      %759 = vmatprep.subr.mxu0 0.0
      %760 = vmatpush1.msra.mxu0 0.0
      %761 = vmatprep.subr.mxu0 0.0
      %762 = vmatpush1.msra.mxu0 0.0
      %763 = vmatprep.subr.mxu0 0.0
      %764 = vmatpush1.msra.mxu0 0.0
      %765 = vmatprep.subr.mxu0 0.0
      %766 = vmatpush1.msra.mxu0 0.0
      %767 = vmatprep.subr.mxu0 0.0
      %768 = vmatpush1.msra.mxu0 0.0
      %769 = vmatprep.subr.mxu0 0.0
      %770 = vmatpush1.msra.mxu0 0.0
      %771 = vmatprep.subr.mxu0 0.0
      %772 = vmatpush1.msra.mxu0 0.0
      %773 = vmatprep.subr.mxu0 0.0
      %774 = vmatpush1.msra.mxu0 0.0
      %775 = vmatprep.subr.mxu0 0.0
      %776 = vmatpush1.msra.mxu0 0.0
      %777 = vmatprep.subr.mxu0 0.0
      %778 = vmatpush1.msra.mxu0 0.0
      %779 = vmatprep.subr.mxu0 0.0
      %780 = vmatpush1.msra.mxu0 0.0
      %781 = vmatprep.subr.mxu0 0.0
      %782 = vmatpush1.msra.mxu0 0.0
      %783 = vmatprep.subr.mxu0 0.0
      %784 = vmatpush1.msra.mxu0 0.0
      %785 = vmatprep.subr.mxu0 0.0
      %786 = vmatpush1.msra.mxu0 0.0
      %787 = vmatprep.subr.mxu0 0.0
      %788 = vmatpush1.msra.mxu0 0.0
      %789 = vmatprep.subr.mxu0 0.0
      %790 = vmatpush1.msra.mxu0 0.0
      %791 = vmatprep.subr.mxu0 0.0
      %792 = vmatpush1.msra.mxu0 0.0
      %793 = vmatprep.subr.mxu0 0.0
      %794 = vmatpush1.msra.mxu0 0.0
      %795 = vmatprep.subr.mxu0 0.0
      %796 = vmatpush1.msra.mxu0 0.0
      %797 = vmatprep.subr.mxu0 0.0
      %798 = vmatpush1.msra.mxu0 0.0
      %799 = vmatprep.subr.mxu0 0.0
      %800 = vmatpush1.msra.mxu0 0.0
      %801 = vmatprep.subr.mxu0 0.0
      %802 = vmatpush1.msra.mxu0 0.0
      %803 = vmatprep.subr.mxu0 0.0
      %804 = vmatpush1.msra.mxu0 0.0
      %805 = vmatprep.subr.mxu0 0.0
      %806 = vmatpush1.msra.mxu0 0.0
      %807 = vmatprep.subr.mxu0 0.0
      %808 = vmatpush1.msra.mxu0 0.0
      %809 = vmatprep.mubr.f32.mxu0 0.0
      %810 = vmatmul.mubr.f32.gmra.mrb[0].mxu0 %v743
      %v811 = vpop.f32.mrb[0].mxu0
      %v812 = vadd.f32 0.0, %v811
      %v813 = vpop.f32.mrb[0].mxu0
      %814 = vdwg.mxu0
      %815 = vrot.lane.b32.xlu0 %v494, 120
      %v816 = vpop.permute.xlu0 %815
      %817 = vrot.lane.b32.xlu0 %v571, 120
      %v818 = vpop.permute.xlu0 %817
      %v819 = vsel %vm653, %v816, 0
      %v821 = vsel %vm653, %v818, 0
      %823 = vmatprep.subr.mxu0 0.0
      %824 = vmatpush1.xpose.msra.mxu0 %v821
      %825 = vmatprep.subr.mxu0 0.0
      %826 = vmatpush1.xpose.msra.mxu0 0.0
      %827 = vmatprep.subr.mxu0 0.0
      %828 = vmatpush1.xpose.msra.mxu0 0.0
      %829 = vmatprep.subr.mxu0 0.0
      %830 = vmatpush1.xpose.msra.mxu0 0.0
      %831 = vmatprep.subr.mxu0 0.0
      %832 = vmatpush1.xpose.msra.mxu0 0.0
      %833 = vmatprep.subr.mxu0 0.0
      %834 = vmatpush1.xpose.msra.mxu0 0.0
      %835 = vmatprep.subr.mxu0 0.0
      %836 = vmatpush1.xpose.msra.mxu0 0.0
      %837 = vmatprep.subr.mxu0 0.0
      %838 = vmatpush1.xpose.msra.mxu0 0.0
      %839 = vmatprep.subr.mxu0 0.0
      %840 = vmatpush1.xpose.msra.mxu0 0.0
      %841 = vmatprep.subr.mxu0 0.0
      %842 = vmatpush1.xpose.msra.mxu0 0.0
      %843 = vmatprep.subr.mxu0 0.0
      %844 = vmatpush1.xpose.msra.mxu0 0.0
      %845 = vmatprep.subr.mxu0 0.0
      %846 = vmatpush1.xpose.msra.mxu0 0.0
      %847 = vmatprep.subr.mxu0 0.0
      %848 = vmatpush1.xpose.msra.mxu0 0.0
      %849 = vmatprep.subr.mxu0 0.0
      %850 = vmatpush1.xpose.msra.mxu0 0.0
      %851 = vmatprep.subr.mxu0 0.0
      %852 = vmatpush1.xpose.msra.mxu0 0.0
      %853 = vmatprep.subr.mxu0 0.0
      %854 = vmatpush1.xpose.msra.mxu0 0.0
      %855 = vmatprep.subr.mxu0 0.0
      %856 = vmatpush1.xpose.msra.mxu0 0.0
      %857 = vmatprep.subr.mxu0 0.0
      %858 = vmatpush1.xpose.msra.mxu0 0.0
      %859 = vmatprep.subr.mxu0 0.0
      %860 = vmatpush1.xpose.msra.mxu0 0.0
      %861 = vmatprep.subr.mxu0 0.0
      %862 = vmatpush1.xpose.msra.mxu0 0.0
      %863 = vmatprep.subr.mxu0 0.0
      %864 = vmatpush1.xpose.msra.mxu0 0.0
      %865 = vmatprep.subr.mxu0 0.0
      %866 = vmatpush1.xpose.msra.mxu0 0.0
      %867 = vmatprep.subr.mxu0 0.0
      %868 = vmatpush1.xpose.msra.mxu0 0.0
      %869 = vmatprep.subr.mxu0 0.0
      %870 = vmatpush1.xpose.msra.mxu0 0.0
      %871 = vmatprep.subr.mxu0 0.0
      %872 = vmatpush1.xpose.msra.mxu0 0.0
      %873 = vmatprep.subr.mxu0 0.0
      %874 = vmatpush1.xpose.msra.mxu0 0.0
      %875 = vmatprep.subr.mxu0 0.0
      %876 = vmatpush1.xpose.msra.mxu0 0.0
      %877 = vmatprep.subr.mxu0 0.0
      %878 = vmatpush1.xpose.msra.mxu0 0.0
      %879 = vmatprep.subr.mxu0 0.0
      %880 = vmatpush1.xpose.msra.mxu0 0.0
      %881 = vmatprep.subr.mxu0 0.0
      %882 = vmatpush1.xpose.msra.mxu0 0.0
      %883 = vmatprep.subr.mxu0 0.0
      %884 = vmatpush1.xpose.msra.mxu0 0.0
      %885 = vmatprep.subr.mxu0 0.0
      %886 = vmatpush1.xpose.msra.mxu0 0.0
      %887 = vmatprep.mubr.f32.mxu0 0.0
      %888 = vmatmul.mubr.f32.gmra.mrb[0].mxu0 %v819
      %v889 = vpop.f32.mrb[0].mxu0
      %v890 = vadd.f32 0.0, %v889
      %v891 = vpop.f32.mrb[0].mxu0
      %892 = vdwg.mxu0
      %v893 = vsel %vm652, -1e+20, %v890
      %v894 = vsel %vm653, %v893, -inf
      %895 = vmax.xlane.f32.xlu0 %v894
      %v896 = vpop.xlane.xlu0 %895
      %v897 = vsub.f32 %v893, %v896
      %v898 = vmul.f32 %v897, 1.442695
      %v899 = vpow.pop %v898
      %v900 = vsel %vm653, %v899, 0.0
      %901 = vadd.xlane.f32.xlu0 %v900
      %v902 = vpop.xlane.xlu0 %901
      %v903 = vrcp.pop %v902
      %v904 = vmul.f32 %v899, %v903
      %906 = vrot.lane.b32.xlu0 %v648, 120
      %v907 = vpop.permute.xlu0 %906
      %v910 = vsel %vm653, %v904, 0
      %912 = vmatprep.subr.mxu0 0.0
      %913 = vmatpush1.msra.mxu0 %v907
      %914 = vmatprep.subr.mxu0 0.0
      %915 = vmatpush1.msra.mxu0 0.0
      %916 = vmatprep.subr.mxu0 0.0
      %917 = vmatpush1.msra.mxu0 0.0
      %918 = vmatprep.subr.mxu0 0.0
      %919 = vmatpush1.msra.mxu0 0.0
      %920 = vmatprep.subr.mxu0 0.0
      %921 = vmatpush1.msra.mxu0 0.0
      %922 = vmatprep.subr.mxu0 0.0
      %923 = vmatpush1.msra.mxu0 0.0
      %924 = vmatprep.subr.mxu0 0.0
      %925 = vmatpush1.msra.mxu0 0.0
      %926 = vmatprep.subr.mxu0 0.0
      %927 = vmatpush1.msra.mxu0 0.0
      %928 = vmatprep.subr.mxu0 0.0
      %929 = vmatpush1.msra.mxu0 0.0
      %930 = vmatprep.subr.mxu0 0.0
      %931 = vmatpush1.msra.mxu0 0.0
      %932 = vmatprep.subr.mxu0 0.0
      %933 = vmatpush1.msra.mxu0 0.0
      %934 = vmatprep.subr.mxu0 0.0
      %935 = vmatpush1.msra.mxu0 0.0
      %936 = vmatprep.subr.mxu0 0.0
      %937 = vmatpush1.msra.mxu0 0.0
      %938 = vmatprep.subr.mxu0 0.0
      %939 = vmatpush1.msra.mxu0 0.0
      %940 = vmatprep.subr.mxu0 0.0
      %941 = vmatpush1.msra.mxu0 0.0
      %942 = vmatprep.subr.mxu0 0.0
      %943 = vmatpush1.msra.mxu0 0.0
      %944 = vmatprep.subr.mxu0 0.0
      %945 = vmatpush1.msra.mxu0 0.0
      %946 = vmatprep.subr.mxu0 0.0
      %947 = vmatpush1.msra.mxu0 0.0
      %948 = vmatprep.subr.mxu0 0.0
      %949 = vmatpush1.msra.mxu0 0.0
      %950 = vmatprep.subr.mxu0 0.0
      %951 = vmatpush1.msra.mxu0 0.0
      %952 = vmatprep.subr.mxu0 0.0
      %953 = vmatpush1.msra.mxu0 0.0
      %954 = vmatprep.subr.mxu0 0.0
      %955 = vmatpush1.msra.mxu0 0.0
      %956 = vmatprep.subr.mxu0 0.0
      %957 = vmatpush1.msra.mxu0 0.0
      %958 = vmatprep.subr.mxu0 0.0
      %959 = vmatpush1.msra.mxu0 0.0
      %960 = vmatprep.subr.mxu0 0.0
      %961 = vmatpush1.msra.mxu0 0.0
      %962 = vmatprep.subr.mxu0 0.0
      %963 = vmatpush1.msra.mxu0 0.0
      %964 = vmatprep.subr.mxu0 0.0
      %965 = vmatpush1.msra.mxu0 0.0
      %966 = vmatprep.subr.mxu0 0.0
      %967 = vmatpush1.msra.mxu0 0.0
      %968 = vmatprep.subr.mxu0 0.0
      %969 = vmatpush1.msra.mxu0 0.0
      %970 = vmatprep.subr.mxu0 0.0
      %971 = vmatpush1.msra.mxu0 0.0
      %972 = vmatprep.subr.mxu0 0.0
      %973 = vmatpush1.msra.mxu0 0.0
      %974 = vmatprep.subr.mxu0 0.0
      %975 = vmatpush1.msra.mxu0 0.0
      %976 = vmatprep.mubr.f32.mxu0 0.0
      %977 = vmatmul.mubr.f32.gmra.mrb[0].mxu0 %v910
      %v978 = vpop.f32.mrb[0].mxu0
      %v979 = vadd.f32 0.0, %v978
      %v980 = vpop.f32.mrb[0].mxu0
      %981 = vdwg.mxu0
      %982 = vrot.lane.b32.xlu0 %v494, 112
      %v983 = vpop.permute.xlu0 %982
      %984 = vrot.lane.b32.xlu0 %v571, 112
      %v985 = vpop.permute.xlu0 %984
      %v986 = vsel %vm653, %v983, 0
      %v988 = vsel %vm653, %v985, 0
      %990 = vmatprep.subr.mxu0 0.0
      %991 = vmatpush1.xpose.msra.mxu0 %v988
      %992 = vmatprep.subr.mxu0 0.0
      %993 = vmatpush1.xpose.msra.mxu0 0.0
      %994 = vmatprep.subr.mxu0 0.0
      %995 = vmatpush1.xpose.msra.mxu0 0.0
      %996 = vmatprep.subr.mxu0 0.0
      %997 = vmatpush1.xpose.msra.mxu0 0.0
      %998 = vmatprep.subr.mxu0 0.0
      %999 = vmatpush1.xpose.msra.mxu0 0.0
      %1000 = vmatprep.subr.mxu0 0.0
      %1001 = vmatpush1.xpose.msra.mxu0 0.0
      %1002 = vmatprep.subr.mxu0 0.0
      %1003 = vmatpush1.xpose.msra.mxu0 0.0
      %1004 = vmatprep.subr.mxu0 0.0
      %1005 = vmatpush1.xpose.msra.mxu0 0.0
      %1006 = vmatprep.subr.mxu0 0.0
      %1007 = vmatpush1.xpose.msra.mxu0 0.0
      %1008 = vmatprep.subr.mxu0 0.0
      %1009 = vmatpush1.xpose.msra.mxu0 0.0
      %1010 = vmatprep.subr.mxu0 0.0
      %1011 = vmatpush1.xpose.msra.mxu0 0.0
      %1012 = vmatprep.subr.mxu0 0.0
      %1013 = vmatpush1.xpose.msra.mxu0 0.0
      %1014 = vmatprep.subr.mxu0 0.0
      %1015 = vmatpush1.xpose.msra.mxu0 0.0
      %1016 = vmatprep.subr.mxu0 0.0
      %1017 = vmatpush1.xpose.msra.mxu0 0.0
      %1018 = vmatprep.subr.mxu0 0.0
      %1019 = vmatpush1.xpose.msra.mxu0 0.0
      %1020 = vmatprep.subr.mxu0 0.0
      %1021 = vmatpush1.xpose.msra.mxu0 0.0
      %1022 = vmatprep.subr.mxu0 0.0
      %1023 = vmatpush1.xpose.msra.mxu0 0.0
      %1024 = vmatprep.subr.mxu0 0.0
      %1025 = vmatpush1.xpose.msra.mxu0 0.0
      %1026 = vmatprep.subr.mxu0 0.0
      %1027 = vmatpush1.xpose.msra.mxu0 0.0
      %1028 = vmatprep.subr.mxu0 0.0
      %1029 = vmatpush1.xpose.msra.mxu0 0.0
      %1030 = vmatprep.subr.mxu0 0.0
      %1031 = vmatpush1.xpose.msra.mxu0 0.0
      %1032 = vmatprep.subr.mxu0 0.0
      %1033 = vmatpush1.xpose.msra.mxu0 0.0
      %1034 = vmatprep.subr.mxu0 0.0
      %1035 = vmatpush1.xpose.msra.mxu0 0.0
      %1036 = vmatprep.subr.mxu0 0.0
      %1037 = vmatpush1.xpose.msra.mxu0 0.0
      %1038 = vmatprep.subr.mxu0 0.0
      %1039 = vmatpush1.xpose.msra.mxu0 0.0
      %1040 = vmatprep.subr.mxu0 0.0
      %1041 = vmatpush1.xpose.msra.mxu0 0.0
      %1042 = vmatprep.subr.mxu0 0.0
      %1043 = vmatpush1.xpose.msra.mxu0 0.0
      %1044 = vmatprep.subr.mxu0 0.0
      %1045 = vmatpush1.xpose.msra.mxu0 0.0
      %1046 = vmatprep.subr.mxu0 0.0
      %1047 = vmatpush1.xpose.msra.mxu0 0.0
      %1048 = vmatprep.subr.mxu0 0.0
      %1049 = vmatpush1.xpose.msra.mxu0 0.0
      %1050 = vmatprep.subr.mxu0 0.0
      %1051 = vmatpush1.xpose.msra.mxu0 0.0
      %1052 = vmatprep.subr.mxu0 0.0
      %1053 = vmatpush1.xpose.msra.mxu0 0.0
      %1054 = vmatprep.mubr.f32.mxu0 0.0
      %1055 = vmatmul.mubr.f32.gmra.mrb[0].mxu0 %v986
      %v1056 = vpop.f32.mrb[0].mxu0
      %v1057 = vadd.f32 0.0, %v1056
      %v1058 = vpop.f32.mrb[0].mxu0
      %1059 = vdwg.mxu0
      %v1060 = vsel %vm652, -1e+20, %v1057
      %v1061 = vsel %vm653, %v1060, -inf
      %1062 = vmax.xlane.f32.xlu0 %v1061
      %v1063 = vpop.xlane.xlu0 %1062
      %v1064 = vsub.f32 %v1060, %v1063
      %v1065 = vmul.f32 %v1064, 1.442695
      %v1066 = vpow.pop %v1065
      %v1067 = vsel %vm653, %v1066, 0.0
      %1068 = vadd.xlane.f32.xlu0 %v1067
      %v1069 = vpop.xlane.xlu0 %1068
      %v1070 = vrcp.pop %v1069
      %v1071 = vmul.f32 %v1066, %v1070
      %1072 = vrot.lane.b32.xlu0 %v648, 112
      %v1073 = vpop.permute.xlu0 %1072
      %v1076 = vsel %vm653, %v1071, 0
      %1078 = vmatprep.subr.mxu0 0.0
      %1079 = vmatpush1.msra.mxu0 %v1073
      %1080 = vmatprep.subr.mxu0 0.0
      %1081 = vmatpush1.msra.mxu0 0.0
      %1082 = vmatprep.subr.mxu0 0.0
      %1083 = vmatpush1.msra.mxu0 0.0
      %1084 = vmatprep.subr.mxu0 0.0
      %1085 = vmatpush1.msra.mxu0 0.0
      %1086 = vmatprep.subr.mxu0 0.0
      %1087 = vmatpush1.msra.mxu0 0.0
      %1088 = vmatprep.subr.mxu0 0.0
      %1089 = vmatpush1.msra.mxu0 0.0
      %1090 = vmatprep.subr.mxu0 0.0
      %1091 = vmatpush1.msra.mxu0 0.0
      %1092 = vmatprep.subr.mxu0 0.0
      %1093 = vmatpush1.msra.mxu0 0.0
      %1094 = vmatprep.subr.mxu0 0.0
      %1095 = vmatpush1.msra.mxu0 0.0
      %1096 = vmatprep.subr.mxu0 0.0
      %1097 = vmatpush1.msra.mxu0 0.0
      %1098 = vmatprep.subr.mxu0 0.0
      %1099 = vmatpush1.msra.mxu0 0.0
      %1100 = vmatprep.subr.mxu0 0.0
      %1101 = vmatpush1.msra.mxu0 0.0
      %1102 = vmatprep.subr.mxu0 0.0
      %1103 = vmatpush1.msra.mxu0 0.0
      %1104 = vmatprep.subr.mxu0 0.0
      %1105 = vmatpush1.msra.mxu0 0.0
      %1106 = vmatprep.subr.mxu0 0.0
      %1107 = vmatpush1.msra.mxu0 0.0
      %1108 = vmatprep.subr.mxu0 0.0
      %1109 = vmatpush1.msra.mxu0 0.0
      %1110 = vmatprep.subr.mxu0 0.0
      %1111 = vmatpush1.msra.mxu0 0.0
      %1112 = vmatprep.subr.mxu0 0.0
      %1113 = vmatpush1.msra.mxu0 0.0
      %1114 = vmatprep.subr.mxu0 0.0
      %1115 = vmatpush1.msra.mxu0 0.0
      %1116 = vmatprep.subr.mxu0 0.0
      %1117 = vmatpush1.msra.mxu0 0.0
      %1118 = vmatprep.subr.mxu0 0.0
      %1119 = vmatpush1.msra.mxu0 0.0
      %1120 = vmatprep.subr.mxu0 0.0
      %1121 = vmatpush1.msra.mxu0 0.0
      %1122 = vmatprep.subr.mxu0 0.0
      %1123 = vmatpush1.msra.mxu0 0.0
      %1124 = vmatprep.subr.mxu0 0.0
      %1125 = vmatpush1.msra.mxu0 0.0
      %1126 = vmatprep.subr.mxu0 0.0
      %1127 = vmatpush1.msra.mxu0 0.0
      %1128 = vmatprep.subr.mxu0 0.0
      %1129 = vmatpush1.msra.mxu0 0.0
      %1130 = vmatprep.subr.mxu0 0.0
      %1131 = vmatpush1.msra.mxu0 0.0
      %1132 = vmatprep.subr.mxu0 0.0
      %1133 = vmatpush1.msra.mxu0 0.0
      %1134 = vmatprep.subr.mxu0 0.0
      %1135 = vmatpush1.msra.mxu0 0.0
      %1136 = vmatprep.subr.mxu0 0.0
      %1137 = vmatpush1.msra.mxu0 0.0
      %1138 = vmatprep.subr.mxu0 0.0
      %1139 = vmatpush1.msra.mxu0 0.0
      %1140 = vmatprep.subr.mxu0 0.0
      %1141 = vmatpush1.msra.mxu0 0.0
      %1142 = vmatprep.mubr.f32.mxu0 0.0
      %1143 = vmatmul.mubr.f32.gmra.mrb[0].mxu0 %v1076
      %v1144 = vpop.f32.mrb[0].mxu0
      %v1145 = vadd.f32 0.0, %v1144
      %v1146 = vpop.f32.mrb[0].mxu0
      %1147 = vdwg.mxu0
      %1148 = vrot.lane.b32.xlu0 %v494, 104
      %v1149 = vpop.permute.xlu0 %1148
      %1150 = vrot.lane.b32.xlu0 %v571, 104
      %v1151 = vpop.permute.xlu0 %1150
      %v1152 = vsel %vm653, %v1149, 0
      %v1154 = vsel %vm653, %v1151, 0
      %1156 = vmatprep.subr.mxu0 0.0
      %1157 = vmatpush1.xpose.msra.mxu0 %v1154
      %1158 = vmatprep.subr.mxu0 0.0
      %1159 = vmatpush1.xpose.msra.mxu0 0.0
      %1160 = vmatprep.subr.mxu0 0.0
      %1161 = vmatpush1.xpose.msra.mxu0 0.0
      %1162 = vmatprep.subr.mxu0 0.0
      %1163 = vmatpush1.xpose.msra.mxu0 0.0
      %1164 = vmatprep.subr.mxu0 0.0
      %1165 = vmatpush1.xpose.msra.mxu0 0.0
      %1166 = vmatprep.subr.mxu0 0.0
      %1167 = vmatpush1.xpose.msra.mxu0 0.0
      %1168 = vmatprep.subr.mxu0 0.0
      %1169 = vmatpush1.xpose.msra.mxu0 0.0
      %1170 = vmatprep.subr.mxu0 0.0
      %1171 = vmatpush1.xpose.msra.mxu0 0.0
      %1172 = vmatprep.subr.mxu0 0.0
      %1173 = vmatpush1.xpose.msra.mxu0 0.0
      %1174 = vmatprep.subr.mxu0 0.0
      %1175 = vmatpush1.xpose.msra.mxu0 0.0
      %1176 = vmatprep.subr.mxu0 0.0
      %1177 = vmatpush1.xpose.msra.mxu0 0.0
      %1178 = vmatprep.subr.mxu0 0.0
      %1179 = vmatpush1.xpose.msra.mxu0 0.0
      %1180 = vmatprep.subr.mxu0 0.0
      %1181 = vmatpush1.xpose.msra.mxu0 0.0
      %1182 = vmatprep.subr.mxu0 0.0
      %1183 = vmatpush1.xpose.msra.mxu0 0.0
      %1184 = vmatprep.subr.mxu0 0.0
      %1185 = vmatpush1.xpose.msra.mxu0 0.0
      %1186 = vmatprep.subr.mxu0 0.0
      %1187 = vmatpush1.xpose.msra.mxu0 0.0
      %1188 = vmatprep.subr.mxu0 0.0
      %1189 = vmatpush1.xpose.msra.mxu0 0.0
      %1190 = vmatprep.subr.mxu0 0.0
      %1191 = vmatpush1.xpose.msra.mxu0 0.0
      %1192 = vmatprep.subr.mxu0 0.0
      %1193 = vmatpush1.xpose.msra.mxu0 0.0
      %1194 = vmatprep.subr.mxu0 0.0
      %1195 = vmatpush1.xpose.msra.mxu0 0.0
      %1196 = vmatprep.subr.mxu0 0.0
      %1197 = vmatpush1.xpose.msra.mxu0 0.0
      %1198 = vmatprep.subr.mxu0 0.0
      %1199 = vmatpush1.xpose.msra.mxu0 0.0
      %1200 = vmatprep.subr.mxu0 0.0
      %1201 = vmatpush1.xpose.msra.mxu0 0.0
      %1202 = vmatprep.subr.mxu0 0.0
      %1203 = vmatpush1.xpose.msra.mxu0 0.0
      %1204 = vmatprep.subr.mxu0 0.0
      %1205 = vmatpush1.xpose.msra.mxu0 0.0
      %1206 = vmatprep.subr.mxu0 0.0
      %1207 = vmatpush1.xpose.msra.mxu0 0.0
      %1208 = vmatprep.subr.mxu0 0.0
      %1209 = vmatpush1.xpose.msra.mxu0 0.0
      %1210 = vmatprep.subr.mxu0 0.0
      %1211 = vmatpush1.xpose.msra.mxu0 0.0
      %1212 = vmatprep.subr.mxu0 0.0
      %1213 = vmatpush1.xpose.msra.mxu0 0.0
      %1214 = vmatprep.subr.mxu0 0.0
      %1215 = vmatpush1.xpose.msra.mxu0 0.0
      %1216 = vmatprep.subr.mxu0 0.0
      %1217 = vmatpush1.xpose.msra.mxu0 0.0
      %1218 = vmatprep.subr.mxu0 0.0
      %1219 = vmatpush1.xpose.msra.mxu0 0.0
      %1220 = vmatprep.mubr.f32.mxu0 0.0
      %1221 = vmatmul.mubr.f32.gmra.mrb[0].mxu0 %v1152
      %v1222 = vpop.f32.mrb[0].mxu0
      %v1223 = vadd.f32 0.0, %v1222
      %v1224 = vpop.f32.mrb[0].mxu0
      %1225 = vdwg.mxu0
      %v1226 = vsel %vm652, -1e+20, %v1223
      %v1227 = vsel %vm653, %v1226, -inf
      %1228 = vmax.xlane.f32.xlu0 %v1227
      %v1229 = vpop.xlane.xlu0 %1228
      %v1230 = vsub.f32 %v1226, %v1229
      %v1231 = vmul.f32 %v1230, 1.442695
      %v1232 = vpow.pop %v1231
      %v1233 = vsel %vm653, %v1232, 0.0
      %1234 = vadd.xlane.f32.xlu0 %v1233
      %v1235 = vpop.xlane.xlu0 %1234
      %v1236 = vrcp.pop %v1235
      %v1237 = vmul.f32 %v1232, %v1236
      %1238 = vrot.lane.b32.xlu0 %v648, 104
      %v1239 = vpop.permute.xlu0 %1238
      %v1242 = vsel %vm653, %v1237, 0
      %1244 = vmatprep.subr.mxu0 0.0
      %1245 = vmatpush1.msra.mxu0 %v1239
      %1246 = vmatprep.subr.mxu0 0.0
      %1247 = vmatpush1.msra.mxu0 0.0
      %1248 = vmatprep.subr.mxu0 0.0
      %1249 = vmatpush1.msra.mxu0 0.0
      %1250 = vmatprep.subr.mxu0 0.0
      %1251 = vmatpush1.msra.mxu0 0.0
      %1252 = vmatprep.subr.mxu0 0.0
      %1253 = vmatpush1.msra.mxu0 0.0
      %1254 = vmatprep.subr.mxu0 0.0
      %1255 = vmatpush1.msra.mxu0 0.0
      %1256 = vmatprep.subr.mxu0 0.0
      %1257 = vmatpush1.msra.mxu0 0.0
      %1258 = vmatprep.subr.mxu0 0.0
      %1259 = vmatpush1.msra.mxu0 0.0
      %1260 = vmatprep.subr.mxu0 0.0
      %1261 = vmatpush1.msra.mxu0 0.0
      %1262 = vmatprep.subr.mxu0 0.0
      %1263 = vmatpush1.msra.mxu0 0.0
      %1264 = vmatprep.subr.mxu0 0.0
      %1265 = vmatpush1.msra.mxu0 0.0
      %1266 = vmatprep.subr.mxu0 0.0
      %1267 = vmatpush1.msra.mxu0 0.0
      %1268 = vmatprep.subr.mxu0 0.0
      %1269 = vmatpush1.msra.mxu0 0.0
      %1270 = vmatprep.subr.mxu0 0.0
      %1271 = vmatpush1.msra.mxu0 0.0
      %1272 = vmatprep.subr.mxu0 0.0
      %1273 = vmatpush1.msra.mxu0 0.0
      %1274 = vmatprep.subr.mxu0 0.0
      %1275 = vmatpush1.msra.mxu0 0.0
      %1276 = vmatprep.subr.mxu0 0.0
      %1277 = vmatpush1.msra.mxu0 0.0
      %1278 = vmatprep.subr.mxu0 0.0
      %1279 = vmatpush1.msra.mxu0 0.0
      %1280 = vmatprep.subr.mxu0 0.0
      %1281 = vmatpush1.msra.mxu0 0.0
      %1282 = vmatprep.subr.mxu0 0.0
      %1283 = vmatpush1.msra.mxu0 0.0
      %1284 = vmatprep.subr.mxu0 0.0
      %1285 = vmatpush1.msra.mxu0 0.0
      %1286 = vmatprep.subr.mxu0 0.0
      %1287 = vmatpush1.msra.mxu0 0.0
      %1288 = vmatprep.subr.mxu0 0.0
      %1289 = vmatpush1.msra.mxu0 0.0
      %1290 = vmatprep.subr.mxu0 0.0
      %1291 = vmatpush1.msra.mxu0 0.0
      %1292 = vmatprep.subr.mxu0 0.0
      %1293 = vmatpush1.msra.mxu0 0.0
      %1294 = vmatprep.subr.mxu0 0.0
      %1295 = vmatpush1.msra.mxu0 0.0
      %1296 = vmatprep.subr.mxu0 0.0
      %1297 = vmatpush1.msra.mxu0 0.0
      %1298 = vmatprep.subr.mxu0 0.0
      %1299 = vmatpush1.msra.mxu0 0.0
      %1300 = vmatprep.subr.mxu0 0.0
      %1301 = vmatpush1.msra.mxu0 0.0
      %1302 = vmatprep.subr.mxu0 0.0
      %1303 = vmatpush1.msra.mxu0 0.0
      %1304 = vmatprep.subr.mxu0 0.0
      %1305 = vmatpush1.msra.mxu0 0.0
      %1306 = vmatprep.subr.mxu0 0.0
      %1307 = vmatpush1.msra.mxu0 0.0
      %1308 = vmatprep.mubr.f32.mxu0 0.0
      %1309 = vmatmul.mubr.f32.gmra.mrb[0].mxu0 %v1242
      %v1310 = vpop.f32.mrb[0].mxu0
      %v1311 = vadd.f32 0.0, %v1310
      %v1312 = vpop.f32.mrb[0].mxu0
      %1313 = vdwg.mxu0
      %1315 = vrot.lane.b32.xlu0 %v979, 8
      %v1316 = vpop.permute.xlu0 %1315
      %1319 = vrot.lane.b32.xlu0 %v1145, 16
      %v1320 = vpop.permute.xlu0 %1319
      %1323 = vrot.lane.b32.xlu0 %v1311, 24
      %v1324 = vpop.permute.xlu0 %1323
      %v1326 = vsel %vm653, %v812, %v1316
      %vm1327 = vcmask 130048
      %v1328 = vsel %vm1327, %v1326, %v1320
      %vm1329 = vcmask 195584
      %v1330 = vsel %vm1329, %v1328, %v1324
      %v1331 = vld [vmem:[%s7] sm:$0xff]
      %v1332 = vld [vmem:[%s7 + $0x8] sm:$0xff]
      %v1333 = vld [vmem:[%s7 + $0x10] sm:$0xff]
      %v1334 = vld [vmem:[%s7 + $0x18] sm:$0xff]
      %v1335 = vld [vmem:[%s8] sm:$0x1]
      %v1337 = vlaneseq
      %v1338 = vshrl.u32 %v1337, 7
      %v1339 = vsub.s32 0, %v1338
      %v1340 = vrot.slane %v1335, %v1339
      %v1343 = vsel %vm423, %v1330, 0
      %1345 = vmatprep.subr.mxu0 0.0
      %1346 = vmatpush1.msra.mxu0 %v1331
      %1347 = vmatprep.subr.mxu0 0.0
      %1348 = vmatpush1.msra.mxu0 %v1332
      %1349 = vmatprep.subr.mxu0 0.0
      %1350 = vmatpush1.msra.mxu0 %v1333
      %1351 = vmatprep.subr.mxu0 0.0
      %1352 = vmatpush1.msra.mxu0 %v1334
      %1353 = vmatprep.subr.mxu0 0.0
      %1354 = vmatpush1.msra.mxu0 0.0
      %1355 = vmatprep.subr.mxu0 0.0
      %1356 = vmatpush1.msra.mxu0 0.0
      %1357 = vmatprep.subr.mxu0 0.0
      %1358 = vmatpush1.msra.mxu0 0.0
      %1359 = vmatprep.subr.mxu0 0.0
      %1360 = vmatpush1.msra.mxu0 0.0
      %1361 = vmatprep.subr.mxu0 0.0
      %1362 = vmatpush1.msra.mxu0 0.0
      %1363 = vmatprep.subr.mxu0 0.0
      %1364 = vmatpush1.msra.mxu0 0.0
      %1365 = vmatprep.subr.mxu0 0.0
      %1366 = vmatpush1.msra.mxu0 0.0
      %1367 = vmatprep.subr.mxu0 0.0
      %1368 = vmatpush1.msra.mxu0 0.0
      %1369 = vmatprep.subr.mxu0 0.0
      %1370 = vmatpush1.msra.mxu0 0.0
      %1371 = vmatprep.subr.mxu0 0.0
      %1372 = vmatpush1.msra.mxu0 0.0
      %1373 = vmatprep.subr.mxu0 0.0
      %1374 = vmatpush1.msra.mxu0 0.0
      %1375 = vmatprep.subr.mxu0 0.0
      %1376 = vmatpush1.msra.mxu0 0.0
      %1377 = vmatprep.subr.mxu0 0.0
      %1378 = vmatpush1.msra.mxu0 0.0
      %1379 = vmatprep.subr.mxu0 0.0
      %1380 = vmatpush1.msra.mxu0 0.0
      %1381 = vmatprep.subr.mxu0 0.0
      %1382 = vmatpush1.msra.mxu0 0.0
      %1383 = vmatprep.subr.mxu0 0.0
      %1384 = vmatpush1.msra.mxu0 0.0
      %1385 = vmatprep.subr.mxu0 0.0
      %1386 = vmatpush1.msra.mxu0 0.0
      %1387 = vmatprep.subr.mxu0 0.0
      %1388 = vmatpush1.msra.mxu0 0.0
      %1389 = vmatprep.subr.mxu0 0.0
      %1390 = vmatpush1.msra.mxu0 0.0
      %1391 = vmatprep.subr.mxu0 0.0
      %1392 = vmatpush1.msra.mxu0 0.0
      %1393 = vmatprep.subr.mxu0 0.0
      %1394 = vmatpush1.msra.mxu0 0.0
      %1395 = vmatprep.subr.mxu0 0.0
      %1396 = vmatpush1.msra.mxu0 0.0
      %1397 = vmatprep.subr.mxu0 0.0
      %1398 = vmatpush1.msra.mxu0 0.0
      %1399 = vmatprep.subr.mxu0 0.0
      %1400 = vmatpush1.msra.mxu0 0.0
      %1401 = vmatprep.subr.mxu0 0.0
      %1402 = vmatpush1.msra.mxu0 0.0
      %1403 = vmatprep.subr.mxu0 0.0
      %1404 = vmatpush1.msra.mxu0 0.0
      %1405 = vmatprep.subr.mxu0 0.0
      %1406 = vmatpush1.msra.mxu0 0.0
      %1407 = vmatprep.subr.mxu0 0.0
      %1408 = vmatpush1.msra.mxu0 0.0
      %1409 = vmatprep.mubr.f32.mxu0 0.0
      %1410 = vmatmul.mubr.f32.gmra.mrb[0].mxu0 %v1343
      %v1411 = vpop.f32.mrb[0].mxu0
      %v1412 = vadd.f32 %v1340, %v1411
      %v1413 = vpop.f32.mrb[0].mxu0
      %1414 = vdwg.mxu0
      %v1415 = vadd.f32 %v1412, %v418
      %v1416 = vsel %vm423, %v1415, 0.0
      %1417 = vadd.xlane.f32.xlu0 %v1416
      %v1418 = vpop.xlane.xlu0 %1417
      %v1419 = vrcp.pop 32.0
      %v1420 = vmul.f32 %v1418, %v1419
      %v1421 = vsub.f32 %v1415, %v1420
      %v1422 = vmul.f32 %v1421, %v1421
      %v1423 = vsel %vm423, %v1422, 0.0
      %1424 = vadd.xlane.f32.xlu0 %v1423
      %v1425 = vpop.xlane.xlu0 %1424
      %v1426 = vmul.f32 %v1425, %v1419
      %v1427 = vadd.f32 %v1426, 1e-05
      %v1428 = vrsqrt.pop %v1427
      %v1429 = vmul.f32 %v1421, %v1428
      %v1430 = vld [vmem:[%s9] sm:$0x1]
      %v1432 = vlaneseq
      %v1433 = vshrl.u32 %v1432, 7
      %v1434 = vsub.s32 0, %v1433
      %v1435 = vrot.slane %v1430, %v1434
      %v1437 = vmul.f32 %v1429, %v1435
      %v1438 = vld [vmem:[%s10] sm:$0x1]
      %v1440 = vlaneseq
      %v1441 = vshrl.u32 %v1440, 7
      %v1442 = vsub.s32 0, %v1441
      %v1443 = vrot.slane %v1438, %v1442
      %v1445 = vadd.f32 %v1437, %v1443
      %1446 = vst.msk [vmem:[%s415] sm:$0xff] %vm423, %v1445
      %p1447 = scmp.lt.s32.totalorder %s22, 1
      %s1448 = scalar_select %p1447, %s22, 1
      %s1449 = smul.addr %s1448, 8
      %s1450 = scalar_lea.vmem %s11, %s1449
      // Predicated region
      $region65: #{transformer_forward.15} parent=63 // pred_check
        %p1451 = pneg %p286
      $region66: #{transformer_forward.15} parent=63 // pred_check_branch
        %1453 = sbr.rel (%p1451) target = $region68
      $region67: #{transformer_forward.15} parent=63 // pred_region
        _
      $region68: #{transformer_forward.15} parent=63 // pred_fallthru
        _
    $region64: #{transformer_forward.15} parent=5 // pred_fallthru
      _
    %p1454 = scmp.le.s32.totalorder 2, %s17
    // Predicated region
    $region69: #{transformer_forward.15} parent=5 // pred_check
      %p1455 = pneg %p1454
    $region70: #{transformer_forward.15} parent=5 // pred_check_branch
      %1457 = sbr.rel (%p1455) target = $region72
    $region71: #{transformer_forward.15} parent=5 // pred_region
      %s1458 = ssub.s32 %s17, 2
      // Predicated region
      $region73: #{transformer_forward.15} parent=71 // pred_check
        %p1459 = pneg %p292
      $region74: #{transformer_forward.15} parent=71 // pred_check_branch
        %1461 = sbr.rel (%p1459) target = $region76
      $region75: #{transformer_forward.15} parent=71 // pred_region
        %p1462 = scmp.lt.s32.totalorder %s23, 1
        %s1463 = scalar_select %p1462, %s23, 1
        %s1464 = smul.addr %s1463, 8
        %s1465 = scalar_lea.vmem %s11, %s1464
      $region76: #{transformer_forward.15} parent=71 // pred_fallthru
        _
    $region72: #{transformer_forward.15} parent=5 // pred_fallthru
      _
  $region6: #{transformer_forward.15} parent=0 // loop_footer
    %s21 = sadd.s32 1, %s17
  $region7: #{transformer_forward.15} parent=0 // loop_footer_branch
    %16 = sbr.rel target = $region3
  $region8: #{transformer_forward.15} parent=0 // loop_exit
    _

// kernel: transformer_forward.11
$region0: #{transformer_forward.11}
  #allocation0 [shape = 'u32[]', space=smem, size = 0x4, offset = 0x4, fixed_abs, tag = 'smem constant byte address 0x4 - core index']
  #allocation1 [shape = 'u32[144,128]{1,0:T(1,128)}', space=vmem, size = 0x12000, scoped, tag = 'internal scratch']
  %s0 = inlined_call_operand.vmem [shape: f32[2,8,32], index: 0, kind: input, shape index: {}, may-alias: {0,1,2}]
  %s1 = inlined_call_operand.vmem [shape: f32[2,8,32], index: 1, kind: input, shape index: {}, may-alias: {0,1,2}]
  %s2 = inlined_call_operand.vmem [shape: f32[2,8,32], index: 2, kind: input, shape index: {}, may-alias: {0,1,2}]
  %s3 = inlined_call_operand.vmem [shape: s32[2,1,8], index: 3, kind: input, shape index: {}]
  %s4 = inlined_call_operand.vmem [shape: f32[32,32], index: 4, kind: input, shape index: {}]
  %s5 = inlined_call_operand.vmem [shape: f32[32,32], index: 5, kind: input, shape index: {}]
  %s6 = inlined_call_operand.vmem [shape: f32[32,32], index: 6, kind: input, shape index: {}]
  %s7 = inlined_call_operand.vmem [shape: f32[32,32], index: 7, kind: input, shape index: {}]
  %s8 = inlined_call_operand.vmem [shape: f32[1,32], index: 8, kind: input, shape index: {}]
  %s9 = inlined_call_operand.vmem [shape: f32[1,32], index: 9, kind: input, shape index: {}]
  %s10 = inlined_call_operand.vmem [shape: f32[1,32], index: 10, kind: input, shape index: {}]
  %s11 = inlined_call_operand.vmem [shape: f32[2,8,32], index: 11, kind: output, shape index: {}]
  %s12 = sld [smem:[#allocation0]]
  $region77: #{transformer_forward.11} parent=0
    _
  %s14 = ssub.s32 1, %s12
  %s15 = scalar_select 0, %s14, %s12
  loop: start=0, step=1, limit=4
  $region2: #{transformer_forward.11} parent=0 // loop_pre_header
    _
  $region3: #{transformer_forward.11} parent=0 // loop_header
    %s17 = sphi 0, %s21
    %p18 = scmp.ge.s32.totalorder %s17, 4
    %s27 = sphi 0, %s29
    %s30 = sphi 0, %s27
    %s31 = sphi 0, %s30
    %s47 = sphi 0, %s31
    %s53 = sphi 0, %s55
    %s56 = sphi 0, %s53
    %s57 = sphi 0, %s56
    %s73 = sphi 0, %s57
    %s79 = sphi 0, %s81
    %s82 = sphi 0, %s79
    %s83 = sphi 0, %s82
    %s99 = sphi 0, %s83
    %s105 = sphi 0, %s107
    %s108 = sphi 0, %s105
    %s109 = sphi 0, %s108
    %s125 = sphi 0, %s109
    %s129 = sphi 0, %s129
    %s131 = sphi 0, %s129
    %s132 = sphi 0, %s131
    %s146 = sphi 0, %s132
    %s150 = sphi 0, %s150
    %s152 = sphi 0, %s150
    %s153 = sphi 0, %s152
    %s167 = sphi 0, %s153
    %s171 = sphi 0, %s171
    %s173 = sphi 0, %s171
    %s174 = sphi 0, %s173
    %s188 = sphi 0, %s174
    %s192 = sphi 0, %s192
    %s194 = sphi 0, %s192
    %s195 = sphi 0, %s194
    %s209 = sphi 0, %s195
    %s213 = sphi 0, %s213
    %s215 = sphi 0, %s213
    %s216 = sphi 0, %s215
    %s230 = sphi 0, %s216
    %s234 = sphi 0, %s234
    %s236 = sphi 0, %s234
    %s237 = sphi 0, %s236
    %s251 = sphi 0, %s237
    %s255 = sphi 0, %s255
    %s257 = sphi 0, %s255
    %s258 = sphi 0, %s257
    %s272 = sphi 0, %s258
    %s278 = sphi 0, %s280
    %s281 = sphi 0, %s278
    %s282 = sphi 0, %s281
    %s298 = sphi 0, %s282
  $region4: #{transformer_forward.11} parent=0 // loop_header_branch
    %20 = sbr.rel (%p18) target = $region8
  $region5: #{transformer_forward.11} parent=0 // loop_body
    %s22 = ssub.s32 %s17, 1
    %s23 = ssub.s32 %s17, 2
    %s24 = sadd.s32 %s17, 1
    %s25 = ssub.s32 %s17, %s24
    %p26 = scmp.eq.s32.totalorder %s25, 0
    %s28 = sadd.s32 %s27, 1
    %s29 = scalar_select %p26, %s27, %s28
    %p32 = pneg %p26
    %p33 = scmp.eq.s32.totalorder %s17, 1
    %p34 = por %p32, %p33
    %p35 = scmp.ne.s32.totalorder %s27, %s30
    %p36 = scmp.eq.s32.totalorder %s17, 0
    %p37 = por %p35, %p36
    %p38 = scmp.ne.s32.totalorder %s27, %s30
    %p39 = scmp.eq.s32.totalorder %s22, 1
    %p40 = por %p38, %p39
    %p41 = scmp.ne.s32.totalorder %s30, %s31
    %p42 = scmp.eq.s32.totalorder %s22, 0
    %p43 = por %p41, %p42
    %p44 = scmp.ne.s32.totalorder %s30, %s31
    %p45 = scmp.eq.s32.totalorder %s23, 1
    %p46 = por %p44, %p45
    %p48 = scmp.ne.s32.totalorder %s31, %s47
    %p49 = scmp.eq.s32.totalorder %s23, 0
    %p50 = por %p48, %p49
    %s51 = ssub.s32 %s17, %s24
    %p52 = scmp.eq.s32.totalorder %s51, 0
    %s54 = sadd.s32 %s53, 1
    %s55 = scalar_select %p52, %s53, %s54
    %p58 = pneg %p52
    %p59 = scmp.eq.s32.totalorder %s17, 1
    %p60 = por %p58, %p59
    %p61 = scmp.ne.s32.totalorder %s53, %s56
    %p62 = scmp.eq.s32.totalorder %s17, 0
    %p63 = por %p61, %p62
    %p64 = scmp.ne.s32.totalorder %s53, %s56
    %p65 = scmp.eq.s32.totalorder %s22, 1
    %p66 = por %p64, %p65
    %p67 = scmp.ne.s32.totalorder %s56, %s57
    %p68 = scmp.eq.s32.totalorder %s22, 0
    %p69 = por %p67, %p68
    %p70 = scmp.ne.s32.totalorder %s56, %s57
    %p71 = scmp.eq.s32.totalorder %s23, 1
    %p72 = por %p70, %p71
    %p74 = scmp.ne.s32.totalorder %s57, %s73
    %p75 = scmp.eq.s32.totalorder %s23, 0
    %p76 = por %p74, %p75
    %s77 = ssub.s32 %s17, %s24
    %p78 = scmp.eq.s32.totalorder %s77, 0
    %s80 = sadd.s32 %s79, 1
    %s81 = scalar_select %p78, %s79, %s80
    %p84 = pneg %p78
    %p85 = scmp.eq.s32.totalorder %s17, 1
    %p86 = por %p84, %p85
    %p87 = scmp.ne.s32.totalorder %s79, %s82
    %p88 = scmp.eq.s32.totalorder %s17, 0
    %p89 = por %p87, %p88
    %p90 = scmp.ne.s32.totalorder %s79, %s82
    %p91 = scmp.eq.s32.totalorder %s22, 1
    %p92 = por %p90, %p91
    %p93 = scmp.ne.s32.totalorder %s82, %s83
    %p94 = scmp.eq.s32.totalorder %s22, 0
    %p95 = por %p93, %p94
    %p96 = scmp.ne.s32.totalorder %s82, %s83
    %p97 = scmp.eq.s32.totalorder %s23, 1
    %p98 = por %p96, %p97
    %p100 = scmp.ne.s32.totalorder %s83, %s99
    %p101 = scmp.eq.s32.totalorder %s23, 0
    %p102 = por %p100, %p101
    %s103 = ssub.s32 %s17, %s24
    %p104 = scmp.eq.s32.totalorder %s103, 0
    %s106 = sadd.s32 %s105, 1
    %s107 = scalar_select %p104, %s105, %s106
    %p110 = pneg %p104
    %p111 = scmp.eq.s32.totalorder %s17, 1
    %p112 = por %p110, %p111
    %p113 = scmp.ne.s32.totalorder %s105, %s108
    %p114 = scmp.eq.s32.totalorder %s17, 0
    %p115 = por %p113, %p114
    %p116 = scmp.ne.s32.totalorder %s105, %s108
    %p117 = scmp.eq.s32.totalorder %s22, 1
    %p118 = por %p116, %p117
    %p119 = scmp.ne.s32.totalorder %s108, %s109
    %p120 = scmp.eq.s32.totalorder %s22, 0
    %p121 = por %p119, %p120
    %p122 = scmp.ne.s32.totalorder %s108, %s109
    %p123 = scmp.eq.s32.totalorder %s23, 1
    %p124 = por %p122, %p123
    %p126 = scmp.ne.s32.totalorder %s109, %s125
    %p127 = scmp.eq.s32.totalorder %s23, 0
    %p128 = por %p126, %p127
    %s130 = sadd.s32 %s129, 1
    %p133 = scmp.eq.s32.totalorder %s17, 1
    %p134 = scmp.ne.s32.totalorder %s129, %s131
    %p135 = scmp.eq.s32.totalorder %s17, 0
    %p136 = por %p134, %p135
    %p137 = scmp.ne.s32.totalorder %s129, %s131
    %p138 = scmp.eq.s32.totalorder %s22, 1
    %p139 = por %p137, %p138
    %p140 = scmp.ne.s32.totalorder %s131, %s132
    %p141 = scmp.eq.s32.totalorder %s22, 0
    %p142 = por %p140, %p141
    %p143 = scmp.ne.s32.totalorder %s131, %s132
    %p144 = scmp.eq.s32.totalorder %s23, 1
    %p145 = por %p143, %p144
    %p147 = scmp.ne.s32.totalorder %s132, %s146
    %p148 = scmp.eq.s32.totalorder %s23, 0
    %p149 = por %p147, %p148
    %s151 = sadd.s32 %s150, 1
    %p154 = scmp.eq.s32.totalorder %s17, 1
    %p155 = scmp.ne.s32.totalorder %s150, %s152
    %p156 = scmp.eq.s32.totalorder %s17, 0
    %p157 = por %p155, %p156
    %p158 = scmp.ne.s32.totalorder %s150, %s152
    %p159 = scmp.eq.s32.totalorder %s22, 1
    %p160 = por %p158, %p159
    %p161 = scmp.ne.s32.totalorder %s152, %s153
    %p162 = scmp.eq.s32.totalorder %s22, 0
    %p163 = por %p161, %p162
    %p164 = scmp.ne.s32.totalorder %s152, %s153
    %p165 = scmp.eq.s32.totalorder %s23, 1
    %p166 = por %p164, %p165
    %p168 = scmp.ne.s32.totalorder %s153, %s167
    %p169 = scmp.eq.s32.totalorder %s23, 0
    %p170 = por %p168, %p169
    %s172 = sadd.s32 %s171, 1
    %p175 = scmp.eq.s32.totalorder %s17, 1
    %p176 = scmp.ne.s32.totalorder %s171, %s173
    %p177 = scmp.eq.s32.totalorder %s17, 0
    %p178 = por %p176, %p177
    %p179 = scmp.ne.s32.totalorder %s171, %s173
    %p180 = scmp.eq.s32.totalorder %s22, 1
    %p181 = por %p179, %p180
    %p182 = scmp.ne.s32.totalorder %s173, %s174
    %p183 = scmp.eq.s32.totalorder %s22, 0
    %p184 = por %p182, %p183
    %p185 = scmp.ne.s32.totalorder %s173, %s174
    %p186 = scmp.eq.s32.totalorder %s23, 1
    %p187 = por %p185, %p186
    %p189 = scmp.ne.s32.totalorder %s174, %s188
    %p190 = scmp.eq.s32.totalorder %s23, 0
    %p191 = por %p189, %p190
    %s193 = sadd.s32 %s192, 1
    %p196 = scmp.eq.s32.totalorder %s17, 1
    %p197 = scmp.ne.s32.totalorder %s192, %s194
    %p198 = scmp.eq.s32.totalorder %s17, 0
    %p199 = por %p197, %p198
    %p200 = scmp.ne.s32.totalorder %s192, %s194
    %p201 = scmp.eq.s32.totalorder %s22, 1
    %p202 = por %p200, %p201
    %p203 = scmp.ne.s32.totalorder %s194, %s195
    %p204 = scmp.eq.s32.totalorder %s22, 0
    %p205 = por %p203, %p204
    %p206 = scmp.ne.s32.totalorder %s194, %s195
    %p207 = scmp.eq.s32.totalorder %s23, 1
    %p208 = por %p206, %p207
    %p210 = scmp.ne.s32.totalorder %s195, %s209
    %p211 = scmp.eq.s32.totalorder %s23, 0
    %p212 = por %p210, %p211
    %s214 = sadd.s32 %s213, 1
    %p217 = scmp.eq.s32.totalorder %s17, 1
    %p218 = scmp.ne.s32.totalorder %s213, %s215
    %p219 = scmp.eq.s32.totalorder %s17, 0
    %p220 = por %p218, %p219
    %p221 = scmp.ne.s32.totalorder %s213, %s215
    %p222 = scmp.eq.s32.totalorder %s22, 1
    %p223 = por %p221, %p222
    %p224 = scmp.ne.s32.totalorder %s215, %s216
    %p225 = scmp.eq.s32.totalorder %s22, 0
    %p226 = por %p224, %p225
    %p227 = scmp.ne.s32.totalorder %s215, %s216
    %p228 = scmp.eq.s32.totalorder %s23, 1
    %p229 = por %p227, %p228
    %p231 = scmp.ne.s32.totalorder %s216, %s230
    %p232 = scmp.eq.s32.totalorder %s23, 0
    %p233 = por %p231, %p232
    %s235 = sadd.s32 %s234, 1
    %p238 = scmp.eq.s32.totalorder %s17, 1
    %p239 = scmp.ne.s32.totalorder %s234, %s236
    %p240 = scmp.eq.s32.totalorder %s17, 0
    %p241 = por %p239, %p240
    %p242 = scmp.ne.s32.totalorder %s234, %s236
    %p243 = scmp.eq.s32.totalorder %s22, 1
    %p244 = por %p242, %p243
    %p245 = scmp.ne.s32.totalorder %s236, %s237
    %p246 = scmp.eq.s32.totalorder %s22, 0
    %p247 = por %p245, %p246
    %p248 = scmp.ne.s32.totalorder %s236, %s237
    %p249 = scmp.eq.s32.totalorder %s23, 1
    %p250 = por %p248, %p249
    %p252 = scmp.ne.s32.totalorder %s237, %s251
    %p253 = scmp.eq.s32.totalorder %s23, 0
    %p254 = por %p252, %p253
    %s256 = sadd.s32 %s255, 1
    %p259 = scmp.eq.s32.totalorder %s17, 1
    %p260 = scmp.ne.s32.totalorder %s255, %s257
    %p261 = scmp.eq.s32.totalorder %s17, 0
    %p262 = por %p260, %p261
    %p263 = scmp.ne.s32.totalorder %s255, %s257
    %p264 = scmp.eq.s32.totalorder %s22, 1
    %p265 = por %p263, %p264
    %p266 = scmp.ne.s32.totalorder %s257, %s258
    %p267 = scmp.eq.s32.totalorder %s22, 0
    %p268 = por %p266, %p267
    %p269 = scmp.ne.s32.totalorder %s257, %s258
    %p270 = scmp.eq.s32.totalorder %s23, 1
    %p271 = por %p269, %p270
    %p273 = scmp.ne.s32.totalorder %s258, %s272
    %p274 = scmp.eq.s32.totalorder %s23, 0
    %p275 = por %p273, %p274
    %s276 = ssub.s32 %s17, %s24
    %p277 = scmp.eq.s32.totalorder %s276, 0
    %s279 = sadd.s32 %s278, 1
    %s280 = scalar_select %p277, %s278, %s279
    %p283 = pneg %p277
    %p284 = scmp.eq.s32.totalorder %s17, 1
    %p285 = por %p283, %p284
    %p286 = scmp.ne.s32.totalorder %s278, %s281
    %p287 = scmp.eq.s32.totalorder %s17, 0
    %p288 = por %p286, %p287
    %p289 = scmp.ne.s32.totalorder %s278, %s281
    %p290 = scmp.eq.s32.totalorder %s22, 1
    %p291 = por %p289, %p290
    %p292 = scmp.ne.s32.totalorder %s281, %s282
    %p293 = scmp.eq.s32.totalorder %s22, 0
    %p294 = por %p292, %p293
    %p295 = scmp.ne.s32.totalorder %s281, %s282
    %p296 = scmp.eq.s32.totalorder %s23, 1
    %p297 = por %p295, %p296
    %p299 = scmp.ne.s32.totalorder %s282, %s298
    %p300 = scmp.eq.s32.totalorder %s23, 0
    %p301 = por %p299, %p300
    %p302 = scmp.le.s32.totalorder 1, %s17
    %p303 = scmp.lt.s32.totalorder %s17, 3
    %p304 = pnand %p302, %p303
    %p305 = pneg %p304
    // Predicated region
    $region9: #{transformer_forward.11} parent=5 // pred_check
      _
    $region10: #{transformer_forward.11} parent=5 // pred_check_branch
      %307 = sbr.rel (%p304) target = $region12
    $region11: #{transformer_forward.11} parent=5 // pred_region
      %s308 = ssub.s32 %s17, 1
      // Predicated region
      $region13: #{transformer_forward.11} parent=11 // pred_check
        %p309 = pneg %p142
      $region14: #{transformer_forward.11} parent=11 // pred_check_branch
        %311 = sbr.rel (%p309) target = $region16
      $region15: #{transformer_forward.11} parent=11 // pred_region
        _
      $region16: #{transformer_forward.11} parent=11 // pred_fallthru
        _
      // Predicated region
      $region17: #{transformer_forward.11} parent=11 // pred_check
        %p312 = pneg %p163
      $region18: #{transformer_forward.11} parent=11 // pred_check_branch
        %314 = sbr.rel (%p312) target = $region20
      $region19: #{transformer_forward.11} parent=11 // pred_region
        _
      $region20: #{transformer_forward.11} parent=11 // pred_fallthru
        _
      // Predicated region
      $region21: #{transformer_forward.11} parent=11 // pred_check
        %p315 = pneg %p184
      $region22: #{transformer_forward.11} parent=11 // pred_check_branch
        %317 = sbr.rel (%p315) target = $region24
      $region23: #{transformer_forward.11} parent=11 // pred_region
        _
      $region24: #{transformer_forward.11} parent=11 // pred_fallthru
        _
      // Predicated region
      $region25: #{transformer_forward.11} parent=11 // pred_check
        %p318 = pneg %p205
      $region26: #{transformer_forward.11} parent=11 // pred_check_branch
        %320 = sbr.rel (%p318) target = $region28
      $region27: #{transformer_forward.11} parent=11 // pred_region
        _
      $region28: #{transformer_forward.11} parent=11 // pred_fallthru
        _
      // Predicated region
      $region29: #{transformer_forward.11} parent=11 // pred_check
        %p321 = pneg %p226
      $region30: #{transformer_forward.11} parent=11 // pred_check_branch
        %323 = sbr.rel (%p321) target = $region32
      $region31: #{transformer_forward.11} parent=11 // pred_region
        _
      $region32: #{transformer_forward.11} parent=11 // pred_fallthru
        _
      // Predicated region
      $region33: #{transformer_forward.11} parent=11 // pred_check
        %p324 = pneg %p247
      $region34: #{transformer_forward.11} parent=11 // pred_check_branch
        %326 = sbr.rel (%p324) target = $region36
      $region35: #{transformer_forward.11} parent=11 // pred_region
        _
      $region36: #{transformer_forward.11} parent=11 // pred_fallthru
        _
      // Predicated region
      $region37: #{transformer_forward.11} parent=11 // pred_check
        %p327 = pneg %p268
      $region38: #{transformer_forward.11} parent=11 // pred_check_branch
        %329 = sbr.rel (%p327) target = $region40
      $region39: #{transformer_forward.11} parent=11 // pred_region
        _
      $region40: #{transformer_forward.11} parent=11 // pred_fallthru
        _
    $region12: #{transformer_forward.11} parent=5 // pred_fallthru
      _
    %p330 = scmp.lt.s32.totalorder %s17, 2
    // Predicated region
    $region41: #{transformer_forward.11} parent=5 // pred_check
      %p331 = pneg %p330
    $region42: #{transformer_forward.11} parent=5 // pred_check_branch
      %333 = sbr.rel (%p331) target = $region44
    $region43: #{transformer_forward.11} parent=5 // pred_region
      // Predicated region
      $region45: #{transformer_forward.11} parent=43 // pred_check
        %p334 = pneg %p37
      $region46: #{transformer_forward.11} parent=43 // pred_check_branch
        %336 = sbr.rel (%p334) target = $region48
      $region47: #{transformer_forward.11} parent=43 // pred_region
        %p337 = scmp.lt.s32.totalorder %s17, 1
        %s338 = scalar_select %p337, %s17, 1
        %s339 = smul.addr %s338, 8
        %s340 = scalar_lea.vmem %s0, %s339
      $region48: #{transformer_forward.11} parent=43 // pred_fallthru
        _
      // Predicated region
      $region49: #{transformer_forward.11} parent=43 // pred_check
        %p341 = pneg %p63
      $region50: #{transformer_forward.11} parent=43 // pred_check_branch
        %343 = sbr.rel (%p341) target = $region52
      $region51: #{transformer_forward.11} parent=43 // pred_region
        %p344 = scmp.lt.s32.totalorder %s17, 1
        %s345 = scalar_select %p344, %s17, 1
        %s346 = smul.addr %s345, 8
        %s347 = scalar_lea.vmem %s1, %s346
      $region52: #{transformer_forward.11} parent=43 // pred_fallthru
        _
      // Predicated region
      $region53: #{transformer_forward.11} parent=43 // pred_check
        %p348 = pneg %p89
      $region54: #{transformer_forward.11} parent=43 // pred_check_branch
        %350 = sbr.rel (%p348) target = $region56
      $region55: #{transformer_forward.11} parent=43 // pred_region
        %p351 = scmp.lt.s32.totalorder %s17, 1
        %s352 = scalar_select %p351, %s17, 1
        %s353 = smul.addr %s352, 8
        %s354 = scalar_lea.vmem %s2, %s353
      $region56: #{transformer_forward.11} parent=43 // pred_fallthru
        _
      // Predicated region
      $region57: #{transformer_forward.11} parent=43 // pred_check
        %p355 = pneg %p115
      $region58: #{transformer_forward.11} parent=43 // pred_check_branch
        %357 = sbr.rel (%p355) target = $region60
      $region59: #{transformer_forward.11} parent=43 // pred_region
        %p358 = scmp.lt.s32.totalorder %s17, 1
        %s359 = scalar_select %p358, %s17, 1
        %s360 = scalar_lea.vmem %s3, %s359
      $region60: #{transformer_forward.11} parent=43 // pred_fallthru
        _
    $region44: #{transformer_forward.11} parent=5 // pred_fallthru
      _
    %p361 = scmp.le.s32.totalorder 1, %s17
    %p362 = scmp.lt.s32.totalorder %s17, 3
    %p363 = pnand %p361, %p362
    %p364 = pneg %p363
    // Predicated region
    $region61: #{transformer_forward.11} parent=5 // pred_check
      _
    $region62: #{transformer_forward.11} parent=5 // pred_check_branch
      %366 = sbr.rel (%p363) target = $region64
    $region63: #{transformer_forward.11} parent=5 // pred_region
      %s367 = ssub.s32 %s17, 1
      %p368 = scmp.lt.s32.totalorder %s22, 1
      %s369 = scalar_select %p368, %s22, 1
      %s370 = smul.addr %s369, 8
      %s371 = scalar_lea.vmem %s0, %s370
      %p372 = pneg %p43
      %p373 = pneg %p40
      %p374 = scmp.lt.s32.totalorder %s22, 1
      %s375 = scalar_select %p374, %s22, 1
      %s376 = smul.addr %s375, 8
      %s377 = scalar_lea.vmem %s1, %s376
      %p378 = pneg %p69
      %p379 = pneg %p66
      %p380 = scmp.lt.s32.totalorder %s22, 1
      %s381 = scalar_select %p380, %s22, 1
      %s382 = smul.addr %s381, 8
      %s383 = scalar_lea.vmem %s2, %s382
      %p384 = pneg %p95
      %p385 = pneg %p92
      %p386 = scmp.lt.s32.totalorder %s22, 1
      %s387 = scalar_select %p386, %s22, 1
      %s388 = scalar_lea.vmem %s3, %s387
      %p389 = pneg %p121
      %p390 = pneg %p118
      %p391 = pneg %p142
      %p392 = pneg %p139
      %p393 = pneg %p163
      %p394 = pneg %p160
      %p395 = pneg %p184
      %p396 = pneg %p181
      %p397 = pneg %p205
      %p398 = pneg %p202
      %p399 = pneg %p226
      %p400 = pneg %p223
      %p401 = pneg %p247
      %p402 = pneg %p244
      %p403 = pneg %p268
      %p404 = pneg %p265
      %p405 = pneg %p294
      %p406 = pneg %p291
      %p407 = scmp.lt.s32.totalorder %s22, 1
      %s408 = scalar_select %p407, %s22, 1
      %s409 = smul.addr %s408, 8
      %s410 = scalar_lea.vmem %s11, %s409
      %p411 = scmp.lt.s32.totalorder %s22, 1
      %s412 = scalar_select %p411, %s22, 1
      %s413 = smul.addr %s412, 8
      %s414 = scalar_lea.vmem %s0, %s413
      %p415 = scmp.lt.s32.totalorder %s22, 1
      %s416 = scalar_select %p415, %s22, 1
      %s417 = smul.addr %s416, 8
      %s418 = scalar_lea.vmem %s1, %s417
      %p419 = scmp.lt.s32.totalorder %s22, 1
      %s420 = scalar_select %p419, %s22, 1
      %s421 = smul.addr %s420, 8
      %s422 = scalar_lea.vmem %s2, %s421
      %p423 = scmp.lt.s32.totalorder %s22, 1
      %s424 = scalar_select %p423, %s22, 1
      %s425 = scalar_lea.vmem %s3, %s424
      %p426 = scmp.lt.s32.totalorder %s22, 1
      %s427 = scalar_select %p426, %s22, 1
      %s428 = smul.addr %s427, 8
      %s429 = scalar_lea.vmem %s11, %s428
      %v430 = vld [vmem:[%s414] sm:$0xff]
      %v431 = vld [vmem:[%s418] sm:$0xff]
      %v432 = vld [vmem:[%s422] sm:$0xff]
      %v433 = vld [vmem:[%s6] sm:$0xff]
      %v434 = vld [vmem:[%s6 + $0x8] sm:$0xff]
      %v435 = vld [vmem:[%s6 + $0x10] sm:$0xff]
      %v436 = vld [vmem:[%s6 + $0x18] sm:$0xff]
      %vm437 = vcmask 261120
      %v439 = vsel %vm437, %v432, 0
      %441 = vmatprep.subr.mxu0 0.0
      %442 = vmatpush1.msra.mxu0 %v433
      %443 = vmatprep.subr.mxu0 0.0
      %444 = vmatpush1.msra.mxu0 %v434
      %445 = vmatprep.subr.mxu0 0.0
      %446 = vmatpush1.msra.mxu0 %v435
      %447 = vmatprep.subr.mxu0 0.0
      %448 = vmatpush1.msra.mxu0 %v436
      %449 = vmatprep.subr.mxu0 0.0
      %450 = vmatpush1.msra.mxu0 0.0
      %451 = vmatprep.subr.mxu0 0.0
      %452 = vmatpush1.msra.mxu0 0.0
      %453 = vmatprep.subr.mxu0 0.0
      %454 = vmatpush1.msra.mxu0 0.0
      %455 = vmatprep.subr.mxu0 0.0
      %456 = vmatpush1.msra.mxu0 0.0
      %457 = vmatprep.subr.mxu0 0.0
      %458 = vmatpush1.msra.mxu0 0.0
      %459 = vmatprep.subr.mxu0 0.0
      %460 = vmatpush1.msra.mxu0 0.0
      %461 = vmatprep.subr.mxu0 0.0
      %462 = vmatpush1.msra.mxu0 0.0
      %463 = vmatprep.subr.mxu0 0.0
      %464 = vmatpush1.msra.mxu0 0.0
      %465 = vmatprep.subr.mxu0 0.0
      %466 = vmatpush1.msra.mxu0 0.0
      %467 = vmatprep.subr.mxu0 0.0
      %468 = vmatpush1.msra.mxu0 0.0
      %469 = vmatprep.subr.mxu0 0.0
      %470 = vmatpush1.msra.mxu0 0.0
      %471 = vmatprep.subr.mxu0 0.0
      %472 = vmatpush1.msra.mxu0 0.0
      %473 = vmatprep.subr.mxu0 0.0
      %474 = vmatpush1.msra.mxu0 0.0
      %475 = vmatprep.subr.mxu0 0.0
      %476 = vmatpush1.msra.mxu0 0.0
      %477 = vmatprep.subr.mxu0 0.0
      %478 = vmatpush1.msra.mxu0 0.0
      %479 = vmatprep.subr.mxu0 0.0
      %480 = vmatpush1.msra.mxu0 0.0
      %481 = vmatprep.subr.mxu0 0.0
      %482 = vmatpush1.msra.mxu0 0.0
      %483 = vmatprep.subr.mxu0 0.0
      %484 = vmatpush1.msra.mxu0 0.0
      %485 = vmatprep.subr.mxu0 0.0
      %486 = vmatpush1.msra.mxu0 0.0
      %487 = vmatprep.subr.mxu0 0.0
      %488 = vmatpush1.msra.mxu0 0.0
      %489 = vmatprep.subr.mxu0 0.0
      %490 = vmatpush1.msra.mxu0 0.0
      %491 = vmatprep.subr.mxu0 0.0
      %492 = vmatpush1.msra.mxu0 0.0
      %493 = vmatprep.subr.mxu0 0.0
      %494 = vmatpush1.msra.mxu0 0.0
      %495 = vmatprep.subr.mxu0 0.0
      %496 = vmatpush1.msra.mxu0 0.0
      %497 = vmatprep.subr.mxu0 0.0
      %498 = vmatpush1.msra.mxu0 0.0
      %499 = vmatprep.subr.mxu0 0.0
      %500 = vmatpush1.msra.mxu0 0.0
      %501 = vmatprep.subr.mxu0 0.0
      %502 = vmatpush1.msra.mxu0 0.0
      %503 = vmatprep.subr.mxu0 0.0
      %504 = vmatpush1.msra.mxu0 0.0
      %505 = vmatprep.mubr.f32.mxu0 0.0
      %506 = vmatmul.mubr.f32.gmra.mrb[0].mxu0 %v439
      %v507 = vpop.f32.mrb[0].mxu0
      %v508 = vadd.f32 0.0, %v507
      %v509 = vpop.f32.mrb[0].mxu0
      %510 = vdwg.mxu0
      %v511 = vld [vmem:[%s5] sm:$0xff]
      %v512 = vld [vmem:[%s5 + $0x8] sm:$0xff]
      %v513 = vld [vmem:[%s5 + $0x10] sm:$0xff]
      %v514 = vld [vmem:[%s5 + $0x18] sm:$0xff]
      %v516 = vsel %vm437, %v431, 0
      %518 = vmatprep.subr.mxu0 0.0
      %519 = vmatpush1.msra.mxu0 %v511
      %520 = vmatprep.subr.mxu0 0.0
      %521 = vmatpush1.msra.mxu0 %v512
      %522 = vmatprep.subr.mxu0 0.0
      %523 = vmatpush1.msra.mxu0 %v513
      %524 = vmatprep.subr.mxu0 0.0
      %525 = vmatpush1.msra.mxu0 %v514
      %526 = vmatprep.subr.mxu0 0.0
      %527 = vmatpush1.msra.mxu0 0.0
      %528 = vmatprep.subr.mxu0 0.0
      %529 = vmatpush1.msra.mxu0 0.0
      %530 = vmatprep.subr.mxu0 0.0
      %531 = vmatpush1.msra.mxu0 0.0
      %532 = vmatprep.subr.mxu0 0.0
      %533 = vmatpush1.msra.mxu0 0.0
      %534 = vmatprep.subr.mxu0 0.0
      %535 = vmatpush1.msra.mxu0 0.0
      %536 = vmatprep.subr.mxu0 0.0
      %537 = vmatpush1.msra.mxu0 0.0
      %538 = vmatprep.subr.mxu0 0.0
      %539 = vmatpush1.msra.mxu0 0.0
      %540 = vmatprep.subr.mxu0 0.0
      %541 = vmatpush1.msra.mxu0 0.0
      %542 = vmatprep.subr.mxu0 0.0
      %543 = vmatpush1.msra.mxu0 0.0
      %544 = vmatprep.subr.mxu0 0.0
      %545 = vmatpush1.msra.mxu0 0.0
      %546 = vmatprep.subr.mxu0 0.0
      %547 = vmatpush1.msra.mxu0 0.0
      %548 = vmatprep.subr.mxu0 0.0
      %549 = vmatpush1.msra.mxu0 0.0
      %550 = vmatprep.subr.mxu0 0.0
      %551 = vmatpush1.msra.mxu0 0.0
      %552 = vmatprep.subr.mxu0 0.0
      %553 = vmatpush1.msra.mxu0 0.0
      %554 = vmatprep.subr.mxu0 0.0
      %555 = vmatpush1.msra.mxu0 0.0
      %556 = vmatprep.subr.mxu0 0.0
      %557 = vmatpush1.msra.mxu0 0.0
      %558 = vmatprep.subr.mxu0 0.0
      %559 = vmatpush1.msra.mxu0 0.0
      %560 = vmatprep.subr.mxu0 0.0
      %561 = vmatpush1.msra.mxu0 0.0
      %562 = vmatprep.subr.mxu0 0.0
      %563 = vmatpush1.msra.mxu0 0.0
      %564 = vmatprep.subr.mxu0 0.0
      %565 = vmatpush1.msra.mxu0 0.0
      %566 = vmatprep.subr.mxu0 0.0
      %567 = vmatpush1.msra.mxu0 0.0
      %568 = vmatprep.subr.mxu0 0.0
      %569 = vmatpush1.msra.mxu0 0.0
      %570 = vmatprep.subr.mxu0 0.0
      %571 = vmatpush1.msra.mxu0 0.0
      %572 = vmatprep.subr.mxu0 0.0
      %573 = vmatpush1.msra.mxu0 0.0
      %574 = vmatprep.subr.mxu0 0.0
      %575 = vmatpush1.msra.mxu0 0.0
      %576 = vmatprep.subr.mxu0 0.0
      %577 = vmatpush1.msra.mxu0 0.0
      %578 = vmatprep.subr.mxu0 0.0
      %579 = vmatpush1.msra.mxu0 0.0
      %580 = vmatprep.subr.mxu0 0.0
      %581 = vmatpush1.msra.mxu0 0.0
      %582 = vmatprep.mubr.f32.mxu0 0.0
      %583 = vmatmul.mubr.f32.gmra.mrb[0].mxu0 %v516
      %v584 = vpop.f32.mrb[0].mxu0
      %v585 = vadd.f32 0.0, %v584
      %v586 = vpop.f32.mrb[0].mxu0
      %587 = vdwg.mxu0
      %v588 = vld [vmem:[%s4] sm:$0xff]
      %v589 = vld [vmem:[%s4 + $0x8] sm:$0xff]
      %v590 = vld [vmem:[%s4 + $0x10] sm:$0xff]
      %v591 = vld [vmem:[%s4 + $0x18] sm:$0xff]
      %v593 = vsel %vm437, %v430, 0
      %595 = vmatprep.subr.mxu0 0.0
      %596 = vmatpush1.msra.mxu0 %v588
      %597 = vmatprep.subr.mxu0 0.0
      %598 = vmatpush1.msra.mxu0 %v589
      %599 = vmatprep.subr.mxu0 0.0
      %600 = vmatpush1.msra.mxu0 %v590
      %601 = vmatprep.subr.mxu0 0.0
      %602 = vmatpush1.msra.mxu0 %v591
      %603 = vmatprep.subr.mxu0 0.0
      %604 = vmatpush1.msra.mxu0 0.0
      %605 = vmatprep.subr.mxu0 0.0
      %606 = vmatpush1.msra.mxu0 0.0
      %607 = vmatprep.subr.mxu0 0.0
      %608 = vmatpush1.msra.mxu0 0.0
      %609 = vmatprep.subr.mxu0 0.0
      %610 = vmatpush1.msra.mxu0 0.0
      %611 = vmatprep.subr.mxu0 0.0
      %612 = vmatpush1.msra.mxu0 0.0
      %613 = vmatprep.subr.mxu0 0.0
      %614 = vmatpush1.msra.mxu0 0.0
      %615 = vmatprep.subr.mxu0 0.0
      %616 = vmatpush1.msra.mxu0 0.0
      %617 = vmatprep.subr.mxu0 0.0
      %618 = vmatpush1.msra.mxu0 0.0
      %619 = vmatprep.subr.mxu0 0.0
      %620 = vmatpush1.msra.mxu0 0.0
      %621 = vmatprep.subr.mxu0 0.0
      %622 = vmatpush1.msra.mxu0 0.0
      %623 = vmatprep.subr.mxu0 0.0
      %624 = vmatpush1.msra.mxu0 0.0
      %625 = vmatprep.subr.mxu0 0.0
      %626 = vmatpush1.msra.mxu0 0.0
      %627 = vmatprep.subr.mxu0 0.0
      %628 = vmatpush1.msra.mxu0 0.0
      %629 = vmatprep.subr.mxu0 0.0
      %630 = vmatpush1.msra.mxu0 0.0
      %631 = vmatprep.subr.mxu0 0.0
      %632 = vmatpush1.msra.mxu0 0.0
      %633 = vmatprep.subr.mxu0 0.0
      %634 = vmatpush1.msra.mxu0 0.0
      %635 = vmatprep.subr.mxu0 0.0
      %636 = vmatpush1.msra.mxu0 0.0
      %637 = vmatprep.subr.mxu0 0.0
      %638 = vmatpush1.msra.mxu0 0.0
      %639 = vmatprep.subr.mxu0 0.0
      %640 = vmatpush1.msra.mxu0 0.0
      %641 = vmatprep.subr.mxu0 0.0
      %642 = vmatpush1.msra.mxu0 0.0
      %643 = vmatprep.subr.mxu0 0.0
      %644 = vmatpush1.msra.mxu0 0.0
      %645 = vmatprep.subr.mxu0 0.0
      %646 = vmatpush1.msra.mxu0 0.0
      %647 = vmatprep.subr.mxu0 0.0
      %648 = vmatpush1.msra.mxu0 0.0
      %649 = vmatprep.subr.mxu0 0.0
      %650 = vmatpush1.msra.mxu0 0.0
      %651 = vmatprep.subr.mxu0 0.0
      %652 = vmatpush1.msra.mxu0 0.0
      %653 = vmatprep.subr.mxu0 0.0
      %654 = vmatpush1.msra.mxu0 0.0
      %655 = vmatprep.subr.mxu0 0.0
      %656 = vmatpush1.msra.mxu0 0.0
      %657 = vmatprep.subr.mxu0 0.0
      %658 = vmatpush1.msra.mxu0 0.0
      %659 = vmatprep.mubr.f32.mxu0 0.0
      %660 = vmatmul.mubr.f32.gmra.mrb[0].mxu0 %v593
      %v661 = vpop.f32.mrb[0].mxu0
      %v662 = vadd.f32 0.0, %v661
      %v663 = vpop.f32.mrb[0].mxu0
      %664 = vdwg.mxu0
      %v665 = vld [vmem:[%s425] sm:$0x1]
      %vm666 = vcmp.eq.s32.totalorder %v665, 0
      %v667 = vsel %vm666, 1, 0
      %v668 = vlaneseq
      %v669 = vshrl.u32 %v668, 7
      %v670 = vsub.s32 0, %v669
      %v671 = vrot.slane %v667, %v670
      %vm672 = vcmp.eq.s32.totalorder %v671, 1
      %vm673 = vcmask 64512
      %v675 = vsel %vm673, %v508, 0
      %v678 = vsel %vm673, %v585, 0
      %680 = vmatprep.subr.mxu0 0.0
      %681 = vmatpush1.xpose.msra.mxu0 %v678
      %682 = vmatprep.subr.mxu0 0.0
      %683 = vmatpush1.xpose.msra.mxu0 0.0
      %684 = vmatprep.subr.mxu0 0.0
      %685 = vmatpush1.xpose.msra.mxu0 0.0
      %686 = vmatprep.subr.mxu0 0.0
      %687 = vmatpush1.xpose.msra.mxu0 0.0
      %688 = vmatprep.subr.mxu0 0.0
      %689 = vmatpush1.xpose.msra.mxu0 0.0
      %690 = vmatprep.subr.mxu0 0.0
      %691 = vmatpush1.xpose.msra.mxu0 0.0
      %692 = vmatprep.subr.mxu0 0.0
      %693 = vmatpush1.xpose.msra.mxu0 0.0
      %694 = vmatprep.subr.mxu0 0.0
      %695 = vmatpush1.xpose.msra.mxu0 0.0
      %696 = vmatprep.subr.mxu0 0.0
      %697 = vmatpush1.xpose.msra.mxu0 0.0
      %698 = vmatprep.subr.mxu0 0.0
      %699 = vmatpush1.xpose.msra.mxu0 0.0
      %700 = vmatprep.subr.mxu0 0.0
      %701 = vmatpush1.xpose.msra.mxu0 0.0
      %702 = vmatprep.subr.mxu0 0.0
      %703 = vmatpush1.xpose.msra.mxu0 0.0
      %704 = vmatprep.subr.mxu0 0.0
      %705 = vmatpush1.xpose.msra.mxu0 0.0
      %706 = vmatprep.subr.mxu0 0.0
      %707 = vmatpush1.xpose.msra.mxu0 0.0
      %708 = vmatprep.subr.mxu0 0.0
      %709 = vmatpush1.xpose.msra.mxu0 0.0
      %710 = vmatprep.subr.mxu0 0.0
      %711 = vmatpush1.xpose.msra.mxu0 0.0
      %712 = vmatprep.subr.mxu0 0.0
      %713 = vmatpush1.xpose.msra.mxu0 0.0
      %714 = vmatprep.subr.mxu0 0.0
      %715 = vmatpush1.xpose.msra.mxu0 0.0
      %716 = vmatprep.subr.mxu0 0.0
      %717 = vmatpush1.xpose.msra.mxu0 0.0
      %718 = vmatprep.subr.mxu0 0.0
      %719 = vmatpush1.xpose.msra.mxu0 0.0
      %720 = vmatprep.subr.mxu0 0.0
      %721 = vmatpush1.xpose.msra.mxu0 0.0
      %722 = vmatprep.subr.mxu0 0.0
      %723 = vmatpush1.xpose.msra.mxu0 0.0
      %724 = vmatprep.subr.mxu0 0.0
      %725 = vmatpush1.xpose.msra.mxu0 0.0
      %726 = vmatprep.subr.mxu0 0.0
      %727 = vmatpush1.xpose.msra.mxu0 0.0
      %728 = vmatprep.subr.mxu0 0.0
      %729 = vmatpush1.xpose.msra.mxu0 0.0
      %730 = vmatprep.subr.mxu0 0.0
      %731 = vmatpush1.xpose.msra.mxu0 0.0
      %732 = vmatprep.subr.mxu0 0.0
      %733 = vmatpush1.xpose.msra.mxu0 0.0
      %734 = vmatprep.subr.mxu0 0.0
      %735 = vmatpush1.xpose.msra.mxu0 0.0
      %736 = vmatprep.subr.mxu0 0.0
      %737 = vmatpush1.xpose.msra.mxu0 0.0
      %738 = vmatprep.subr.mxu0 0.0
      %739 = vmatpush1.xpose.msra.mxu0 0.0
      %740 = vmatprep.subr.mxu0 0.0
      %741 = vmatpush1.xpose.msra.mxu0 0.0
      %742 = vmatprep.subr.mxu0 0.0
      %743 = vmatpush1.xpose.msra.mxu0 0.0
      %744 = vmatprep.mubr.f32.mxu0 0.0
      %745 = vmatmul.mubr.f32.gmra.mrb[0].mxu0 %v675
      %v746 = vpop.f32.mrb[0].mxu0
      %v747 = vadd.f32 0.0, %v746
      %v748 = vpop.f32.mrb[0].mxu0
      %749 = vdwg.mxu0
      %v750 = vsel %vm672, -1e+20, %v747
      %v751 = vsel %vm673, %v750, -inf
      %752 = vmax.xlane.f32.xlu0 %v751
      %v753 = vpop.xlane.xlu0 %752
      %v754 = vsub.f32 %v750, %v753
      %v755 = vmul.f32 %v754, 1.442695
      %v756 = vpow.pop %v755
      %v757 = vsel %vm673, %v756, 0.0
      %758 = vadd.xlane.f32.xlu0 %v757
      %v759 = vpop.xlane.xlu0 %758
      %v760 = vrcp.pop %v759
      %v761 = vmul.f32 %v756, %v760
      %v763 = vsel %vm673, %v761, 0
      %765 = vmatprep.subr.mxu0 0.0
      %766 = vmatpush1.msra.mxu0 %v662
      %767 = vmatprep.subr.mxu0 0.0
      %768 = vmatpush1.msra.mxu0 0.0
      %769 = vmatprep.subr.mxu0 0.0
      %770 = vmatpush1.msra.mxu0 0.0
      %771 = vmatprep.subr.mxu0 0.0
      %772 = vmatpush1.msra.mxu0 0.0
      %773 = vmatprep.subr.mxu0 0.0
      %774 = vmatpush1.msra.mxu0 0.0
      %775 = vmatprep.subr.mxu0 0.0
      %776 = vmatpush1.msra.mxu0 0.0
      %777 = vmatprep.subr.mxu0 0.0
      %778 = vmatpush1.msra.mxu0 0.0
      %779 = vmatprep.subr.mxu0 0.0
      %780 = vmatpush1.msra.mxu0 0.0
      %781 = vmatprep.subr.mxu0 0.0
      %782 = vmatpush1.msra.mxu0 0.0
      %783 = vmatprep.subr.mxu0 0.0
      %784 = vmatpush1.msra.mxu0 0.0
      %785 = vmatprep.subr.mxu0 0.0
      %786 = vmatpush1.msra.mxu0 0.0
      %787 = vmatprep.subr.mxu0 0.0
      %788 = vmatpush1.msra.mxu0 0.0
      %789 = vmatprep.subr.mxu0 0.0
      %790 = vmatpush1.msra.mxu0 0.0
      %791 = vmatprep.subr.mxu0 0.0
      %792 = vmatpush1.msra.mxu0 0.0
      %793 = vmatprep.subr.mxu0 0.0
      %794 = vmatpush1.msra.mxu0 0.0
      %795 = vmatprep.subr.mxu0 0.0
      %796 = vmatpush1.msra.mxu0 0.0
      %797 = vmatprep.subr.mxu0 0.0
      %798 = vmatpush1.msra.mxu0 0.0
      %799 = vmatprep.subr.mxu0 0.0
      %800 = vmatpush1.msra.mxu0 0.0
      %801 = vmatprep.subr.mxu0 0.0
      %802 = vmatpush1.msra.mxu0 0.0
      %803 = vmatprep.subr.mxu0 0.0
      %804 = vmatpush1.msra.mxu0 0.0
      %805 = vmatprep.subr.mxu0 0.0
      %806 = vmatpush1.msra.mxu0 0.0
      %807 = vmatprep.subr.mxu0 0.0
      %808 = vmatpush1.msra.mxu0 0.0
      %809 = vmatprep.subr.mxu0 0.0
      %810 = vmatpush1.msra.mxu0 0.0
      %811 = vmatprep.subr.mxu0 0.0
      %812 = vmatpush1.msra.mxu0 0.0
      %813 = vmatprep.subr.mxu0 0.0
      %814 = vmatpush1.msra.mxu0 0.0
      %815 = vmatprep.subr.mxu0 0.0
      %816 = vmatpush1.msra.mxu0 0.0
      %817 = vmatprep.subr.mxu0 0.0
      %818 = vmatpush1.msra.mxu0 0.0
      %819 = vmatprep.subr.mxu0 0.0
      %820 = vmatpush1.msra.mxu0 0.0
      %821 = vmatprep.subr.mxu0 0.0
      %822 = vmatpush1.msra.mxu0 0.0
      %823 = vmatprep.subr.mxu0 0.0
      %824 = vmatpush1.msra.mxu0 0.0
      %825 = vmatprep.subr.mxu0 0.0
      %826 = vmatpush1.msra.mxu0 0.0
      %827 = vmatprep.subr.mxu0 0.0
      %828 = vmatpush1.msra.mxu0 0.0
      %829 = vmatprep.mubr.f32.mxu0 0.0
      %830 = vmatmul.mubr.f32.gmra.mrb[0].mxu0 %v763
      %v831 = vpop.f32.mrb[0].mxu0
      %v832 = vadd.f32 0.0, %v831
      %v833 = vpop.f32.mrb[0].mxu0
      %834 = vdwg.mxu0
      %835 = vrot.lane.b32.xlu0 %v508, 120
      %v836 = vpop.permute.xlu0 %835
      %837 = vrot.lane.b32.xlu0 %v585, 120
      %v838 = vpop.permute.xlu0 %837
      %v839 = vsel %vm673, %v836, 0
      %v841 = vsel %vm673, %v838, 0
      %843 = vmatprep.subr.mxu0 0.0
      %844 = vmatpush1.xpose.msra.mxu0 %v841
      %845 = vmatprep.subr.mxu0 0.0
      %846 = vmatpush1.xpose.msra.mxu0 0.0
      %847 = vmatprep.subr.mxu0 0.0
      %848 = vmatpush1.xpose.msra.mxu0 0.0
      %849 = vmatprep.subr.mxu0 0.0
      %850 = vmatpush1.xpose.msra.mxu0 0.0
      %851 = vmatprep.subr.mxu0 0.0
      %852 = vmatpush1.xpose.msra.mxu0 0.0
      %853 = vmatprep.subr.mxu0 0.0
      %854 = vmatpush1.xpose.msra.mxu0 0.0
      %855 = vmatprep.subr.mxu0 0.0
      %856 = vmatpush1.xpose.msra.mxu0 0.0
      %857 = vmatprep.subr.mxu0 0.0
      %858 = vmatpush1.xpose.msra.mxu0 0.0
      %859 = vmatprep.subr.mxu0 0.0
      %860 = vmatpush1.xpose.msra.mxu0 0.0
      %861 = vmatprep.subr.mxu0 0.0
      %862 = vmatpush1.xpose.msra.mxu0 0.0
      %863 = vmatprep.subr.mxu0 0.0
      %864 = vmatpush1.xpose.msra.mxu0 0.0
      %865 = vmatprep.subr.mxu0 0.0
      %866 = vmatpush1.xpose.msra.mxu0 0.0
      %867 = vmatprep.subr.mxu0 0.0
      %868 = vmatpush1.xpose.msra.mxu0 0.0
      %869 = vmatprep.subr.mxu0 0.0
      %870 = vmatpush1.xpose.msra.mxu0 0.0
      %871 = vmatprep.subr.mxu0 0.0
      %872 = vmatpush1.xpose.msra.mxu0 0.0
      %873 = vmatprep.subr.mxu0 0.0
      %874 = vmatpush1.xpose.msra.mxu0 0.0
      %875 = vmatprep.subr.mxu0 0.0
      %876 = vmatpush1.xpose.msra.mxu0 0.0
      %877 = vmatprep.subr.mxu0 0.0
      %878 = vmatpush1.xpose.msra.mxu0 0.0
      %879 = vmatprep.subr.mxu0 0.0
      %880 = vmatpush1.xpose.msra.mxu0 0.0
      %881 = vmatprep.subr.mxu0 0.0
      %882 = vmatpush1.xpose.msra.mxu0 0.0
      %883 = vmatprep.subr.mxu0 0.0
      %884 = vmatpush1.xpose.msra.mxu0 0.0
      %885 = vmatprep.subr.mxu0 0.0
      %886 = vmatpush1.xpose.msra.mxu0 0.0
      %887 = vmatprep.subr.mxu0 0.0
      %888 = vmatpush1.xpose.msra.mxu0 0.0
      %889 = vmatprep.subr.mxu0 0.0
      %890 = vmatpush1.xpose.msra.mxu0 0.0
      %891 = vmatprep.subr.mxu0 0.0
      %892 = vmatpush1.xpose.msra.mxu0 0.0
      %893 = vmatprep.subr.mxu0 0.0
      %894 = vmatpush1.xpose.msra.mxu0 0.0
      %895 = vmatprep.subr.mxu0 0.0
      %896 = vmatpush1.xpose.msra.mxu0 0.0
      %897 = vmatprep.subr.mxu0 0.0
      %898 = vmatpush1.xpose.msra.mxu0 0.0
      %899 = vmatprep.subr.mxu0 0.0
      %900 = vmatpush1.xpose.msra.mxu0 0.0
      %901 = vmatprep.subr.mxu0 0.0
      %902 = vmatpush1.xpose.msra.mxu0 0.0
      %903 = vmatprep.subr.mxu0 0.0
      %904 = vmatpush1.xpose.msra.mxu0 0.0
      %905 = vmatprep.subr.mxu0 0.0
      %906 = vmatpush1.xpose.msra.mxu0 0.0
      %907 = vmatprep.mubr.f32.mxu0 0.0
      %908 = vmatmul.mubr.f32.gmra.mrb[0].mxu0 %v839
      %v909 = vpop.f32.mrb[0].mxu0
      %v910 = vadd.f32 0.0, %v909
      %v911 = vpop.f32.mrb[0].mxu0
      %912 = vdwg.mxu0
      %v913 = vsel %vm672, -1e+20, %v910
      %v914 = vsel %vm673, %v913, -inf
      %915 = vmax.xlane.f32.xlu0 %v914
      %v916 = vpop.xlane.xlu0 %915
      %v917 = vsub.f32 %v913, %v916
      %v918 = vmul.f32 %v917, 1.442695
      %v919 = vpow.pop %v918
      %v920 = vsel %vm673, %v919, 0.0
      %921 = vadd.xlane.f32.xlu0 %v920
      %v922 = vpop.xlane.xlu0 %921
      %v923 = vrcp.pop %v922
      %v924 = vmul.f32 %v919, %v923
      %926 = vrot.lane.b32.xlu0 %v662, 120
      %v927 = vpop.permute.xlu0 %926
      %v930 = vsel %vm673, %v924, 0
      %932 = vmatprep.subr.mxu0 0.0
      %933 = vmatpush1.msra.mxu0 %v927
      %934 = vmatprep.subr.mxu0 0.0
      %935 = vmatpush1.msra.mxu0 0.0
      %936 = vmatprep.subr.mxu0 0.0
      %937 = vmatpush1.msra.mxu0 0.0
      %938 = vmatprep.subr.mxu0 0.0
      %939 = vmatpush1.msra.mxu0 0.0
      %940 = vmatprep.subr.mxu0 0.0
      %941 = vmatpush1.msra.mxu0 0.0
      %942 = vmatprep.subr.mxu0 0.0
      %943 = vmatpush1.msra.mxu0 0.0
      %944 = vmatprep.subr.mxu0 0.0
      %945 = vmatpush1.msra.mxu0 0.0
      %946 = vmatprep.subr.mxu0 0.0
      %947 = vmatpush1.msra.mxu0 0.0
      %948 = vmatprep.subr.mxu0 0.0
      %949 = vmatpush1.msra.mxu0 0.0
      %950 = vmatprep.subr.mxu0 0.0
      %951 = vmatpush1.msra.mxu0 0.0
      %952 = vmatprep.subr.mxu0 0.0
      %953 = vmatpush1.msra.mxu0 0.0
      %954 = vmatprep.subr.mxu0 0.0
      %955 = vmatpush1.msra.mxu0 0.0
      %956 = vmatprep.subr.mxu0 0.0
      %957 = vmatpush1.msra.mxu0 0.0
      %958 = vmatprep.subr.mxu0 0.0
      %959 = vmatpush1.msra.mxu0 0.0
      %960 = vmatprep.subr.mxu0 0.0
      %961 = vmatpush1.msra.mxu0 0.0
      %962 = vmatprep.subr.mxu0 0.0
      %963 = vmatpush1.msra.mxu0 0.0
      %964 = vmatprep.subr.mxu0 0.0
      %965 = vmatpush1.msra.mxu0 0.0
      %966 = vmatprep.subr.mxu0 0.0
      %967 = vmatpush1.msra.mxu0 0.0
      %968 = vmatprep.subr.mxu0 0.0
      %969 = vmatpush1.msra.mxu0 0.0
      %970 = vmatprep.subr.mxu0 0.0
      %971 = vmatpush1.msra.mxu0 0.0
      %972 = vmatprep.subr.mxu0 0.0
      %973 = vmatpush1.msra.mxu0 0.0
      %974 = vmatprep.subr.mxu0 0.0
      %975 = vmatpush1.msra.mxu0 0.0
      %976 = vmatprep.subr.mxu0 0.0
      %977 = vmatpush1.msra.mxu0 0.0
      %978 = vmatprep.subr.mxu0 0.0
      %979 = vmatpush1.msra.mxu0 0.0
      %980 = vmatprep.subr.mxu0 0.0
      %981 = vmatpush1.msra.mxu0 0.0
      %982 = vmatprep.subr.mxu0 0.0
      %983 = vmatpush1.msra.mxu0 0.0
      %984 = vmatprep.subr.mxu0 0.0
      %985 = vmatpush1.msra.mxu0 0.0
      %986 = vmatprep.subr.mxu0 0.0
      %987 = vmatpush1.msra.mxu0 0.0
      %988 = vmatprep.subr.mxu0 0.0
      %989 = vmatpush1.msra.mxu0 0.0
      %990 = vmatprep.subr.mxu0 0.0
      %991 = vmatpush1.msra.mxu0 0.0
      %992 = vmatprep.subr.mxu0 0.0
      %993 = vmatpush1.msra.mxu0 0.0
      %994 = vmatprep.subr.mxu0 0.0
      %995 = vmatpush1.msra.mxu0 0.0
      %996 = vmatprep.mubr.f32.mxu0 0.0
      %997 = vmatmul.mubr.f32.gmra.mrb[0].mxu0 %v930
      %v998 = vpop.f32.mrb[0].mxu0
      %v999 = vadd.f32 0.0, %v998
      %v1000 = vpop.f32.mrb[0].mxu0
      %1001 = vdwg.mxu0
      %1002 = vrot.lane.b32.xlu0 %v508, 112
      %v1003 = vpop.permute.xlu0 %1002
      %1004 = vrot.lane.b32.xlu0 %v585, 112
      %v1005 = vpop.permute.xlu0 %1004
      %v1006 = vsel %vm673, %v1003, 0
      %v1008 = vsel %vm673, %v1005, 0
      %1010 = vmatprep.subr.mxu0 0.0
      %1011 = vmatpush1.xpose.msra.mxu0 %v1008
      %1012 = vmatprep.subr.mxu0 0.0
      %1013 = vmatpush1.xpose.msra.mxu0 0.0
      %1014 = vmatprep.subr.mxu0 0.0
      %1015 = vmatpush1.xpose.msra.mxu0 0.0
      %1016 = vmatprep.subr.mxu0 0.0
      %1017 = vmatpush1.xpose.msra.mxu0 0.0
      %1018 = vmatprep.subr.mxu0 0.0
      %1019 = vmatpush1.xpose.msra.mxu0 0.0
      %1020 = vmatprep.subr.mxu0 0.0
      %1021 = vmatpush1.xpose.msra.mxu0 0.0
      %1022 = vmatprep.subr.mxu0 0.0
      %1023 = vmatpush1.xpose.msra.mxu0 0.0
      %1024 = vmatprep.subr.mxu0 0.0
      %1025 = vmatpush1.xpose.msra.mxu0 0.0
      %1026 = vmatprep.subr.mxu0 0.0
      %1027 = vmatpush1.xpose.msra.mxu0 0.0
      %1028 = vmatprep.subr.mxu0 0.0
      %1029 = vmatpush1.xpose.msra.mxu0 0.0
      %1030 = vmatprep.subr.mxu0 0.0
      %1031 = vmatpush1.xpose.msra.mxu0 0.0
      %1032 = vmatprep.subr.mxu0 0.0
      %1033 = vmatpush1.xpose.msra.mxu0 0.0
      %1034 = vmatprep.subr.mxu0 0.0
      %1035 = vmatpush1.xpose.msra.mxu0 0.0
      %1036 = vmatprep.subr.mxu0 0.0
      %1037 = vmatpush1.xpose.msra.mxu0 0.0
      %1038 = vmatprep.subr.mxu0 0.0
      %1039 = vmatpush1.xpose.msra.mxu0 0.0
      %1040 = vmatprep.subr.mxu0 0.0
      %1041 = vmatpush1.xpose.msra.mxu0 0.0
      %1042 = vmatprep.subr.mxu0 0.0
      %1043 = vmatpush1.xpose.msra.mxu0 0.0
      %1044 = vmatprep.subr.mxu0 0.0
      %1045 = vmatpush1.xpose.msra.mxu0 0.0
      %1046 = vmatprep.subr.mxu0 0.0
      %1047 = vmatpush1.xpose.msra.mxu0 0.0
      %1048 = vmatprep.subr.mxu0 0.0
      %1049 = vmatpush1.xpose.msra.mxu0 0.0
      %1050 = vmatprep.subr.mxu0 0.0
      %1051 = vmatpush1.xpose.msra.mxu0 0.0
      %1052 = vmatprep.subr.mxu0 0.0
      %1053 = vmatpush1.xpose.msra.mxu0 0.0
      %1054 = vmatprep.subr.mxu0 0.0
      %1055 = vmatpush1.xpose.msra.mxu0 0.0
      %1056 = vmatprep.subr.mxu0 0.0
      %1057 = vmatpush1.xpose.msra.mxu0 0.0
      %1058 = vmatprep.subr.mxu0 0.0
      %1059 = vmatpush1.xpose.msra.mxu0 0.0
      %1060 = vmatprep.subr.mxu0 0.0
      %1061 = vmatpush1.xpose.msra.mxu0 0.0
      %1062 = vmatprep.subr.mxu0 0.0
      %1063 = vmatpush1.xpose.msra.mxu0 0.0
      %1064 = vmatprep.subr.mxu0 0.0
      %1065 = vmatpush1.xpose.msra.mxu0 0.0
      %1066 = vmatprep.subr.mxu0 0.0
      %1067 = vmatpush1.xpose.msra.mxu0 0.0
      %1068 = vmatprep.subr.mxu0 0.0
      %1069 = vmatpush1.xpose.msra.mxu0 0.0
      %1070 = vmatprep.subr.mxu0 0.0
      %1071 = vmatpush1.xpose.msra.mxu0 0.0
      %1072 = vmatprep.subr.mxu0 0.0
      %1073 = vmatpush1.xpose.msra.mxu0 0.0
      %1074 = vmatprep.mubr.f32.mxu0 0.0
      %1075 = vmatmul.mubr.f32.gmra.mrb[0].mxu0 %v1006
      %v1076 = vpop.f32.mrb[0].mxu0
      %v1077 = vadd.f32 0.0, %v1076
      %v1078 = vpop.f32.mrb[0].mxu0
      %1079 = vdwg.mxu0
      %v1080 = vsel %vm672, -1e+20, %v1077
      %v1081 = vsel %vm673, %v1080, -inf
      %1082 = vmax.xlane.f32.xlu0 %v1081
      %v1083 = vpop.xlane.xlu0 %1082
      %v1084 = vsub.f32 %v1080, %v1083
      %v1085 = vmul.f32 %v1084, 1.442695
      %v1086 = vpow.pop %v1085
      %v1087 = vsel %vm673, %v1086, 0.0
      %1088 = vadd.xlane.f32.xlu0 %v1087
      %v1089 = vpop.xlane.xlu0 %1088
      %v1090 = vrcp.pop %v1089
      %v1091 = vmul.f32 %v1086, %v1090
      %1092 = vrot.lane.b32.xlu0 %v662, 112
      %v1093 = vpop.permute.xlu0 %1092
      %v1096 = vsel %vm673, %v1091, 0
      %1098 = vmatprep.subr.mxu0 0.0
      %1099 = vmatpush1.msra.mxu0 %v1093
      %1100 = vmatprep.subr.mxu0 0.0
      %1101 = vmatpush1.msra.mxu0 0.0
      %1102 = vmatprep.subr.mxu0 0.0
      %1103 = vmatpush1.msra.mxu0 0.0
      %1104 = vmatprep.subr.mxu0 0.0
      %1105 = vmatpush1.msra.mxu0 0.0
      %1106 = vmatprep.subr.mxu0 0.0
      %1107 = vmatpush1.msra.mxu0 0.0
      %1108 = vmatprep.subr.mxu0 0.0
      %1109 = vmatpush1.msra.mxu0 0.0
      %1110 = vmatprep.subr.mxu0 0.0
      %1111 = vmatpush1.msra.mxu0 0.0
      %1112 = vmatprep.subr.mxu0 0.0
      %1113 = vmatpush1.msra.mxu0 0.0
      %1114 = vmatprep.subr.mxu0 0.0
      %1115 = vmatpush1.msra.mxu0 0.0
      %1116 = vmatprep.subr.mxu0 0.0
      %1117 = vmatpush1.msra.mxu0 0.0
      %1118 = vmatprep.subr.mxu0 0.0
      %1119 = vmatpush1.msra.mxu0 0.0
      %1120 = vmatprep.subr.mxu0 0.0
      %1121 = vmatpush1.msra.mxu0 0.0
      %1122 = vmatprep.subr.mxu0 0.0
      %1123 = vmatpush1.msra.mxu0 0.0
      %1124 = vmatprep.subr.mxu0 0.0
      %1125 = vmatpush1.msra.mxu0 0.0
      %1126 = vmatprep.subr.mxu0 0.0
      %1127 = vmatpush1.msra.mxu0 0.0
      %1128 = vmatprep.subr.mxu0 0.0
      %1129 = vmatpush1.msra.mxu0 0.0
      %1130 = vmatprep.subr.mxu0 0.0
      %1131 = vmatpush1.msra.mxu0 0.0
      %1132 = vmatprep.subr.mxu0 0.0
      %1133 = vmatpush1.msra.mxu0 0.0
      %1134 = vmatprep.subr.mxu0 0.0
      %1135 = vmatpush1.msra.mxu0 0.0
      %1136 = vmatprep.subr.mxu0 0.0
      %1137 = vmatpush1.msra.mxu0 0.0
      %1138 = vmatprep.subr.mxu0 0.0
      %1139 = vmatpush1.msra.mxu0 0.0
      %1140 = vmatprep.subr.mxu0 0.0
      %1141 = vmatpush1.msra.mxu0 0.0
      %1142 = vmatprep.subr.mxu0 0.0
      %1143 = vmatpush1.msra.mxu0 0.0
      %1144 = vmatprep.subr.mxu0 0.0
      %1145 = vmatpush1.msra.mxu0 0.0
      %1146 = vmatprep.subr.mxu0 0.0
      %1147 = vmatpush1.msra.mxu0 0.0
      %1148 = vmatprep.subr.mxu0 0.0
      %1149 = vmatpush1.msra.mxu0 0.0
      %1150 = vmatprep.subr.mxu0 0.0
      %1151 = vmatpush1.msra.mxu0 0.0
      %1152 = vmatprep.subr.mxu0 0.0
      %1153 = vmatpush1.msra.mxu0 0.0
      %1154 = vmatprep.subr.mxu0 0.0
      %1155 = vmatpush1.msra.mxu0 0.0
      %1156 = vmatprep.subr.mxu0 0.0
      %1157 = vmatpush1.msra.mxu0 0.0
      %1158 = vmatprep.subr.mxu0 0.0
      %1159 = vmatpush1.msra.mxu0 0.0
      %1160 = vmatprep.subr.mxu0 0.0
      %1161 = vmatpush1.msra.mxu0 0.0
      %1162 = vmatprep.mubr.f32.mxu0 0.0
      %1163 = vmatmul.mubr.f32.gmra.mrb[0].mxu0 %v1096
      %v1164 = vpop.f32.mrb[0].mxu0
      %v1165 = vadd.f32 0.0, %v1164
      %v1166 = vpop.f32.mrb[0].mxu0
      %1167 = vdwg.mxu0
      %1168 = vrot.lane.b32.xlu0 %v508, 104
      %v1169 = vpop.permute.xlu0 %1168
      %1170 = vrot.lane.b32.xlu0 %v585, 104
      %v1171 = vpop.permute.xlu0 %1170
      %v1172 = vsel %vm673, %v1169, 0
      %v1174 = vsel %vm673, %v1171, 0
      %1176 = vmatprep.subr.mxu0 0.0
      %1177 = vmatpush1.xpose.msra.mxu0 %v1174
      %1178 = vmatprep.subr.mxu0 0.0
      %1179 = vmatpush1.xpose.msra.mxu0 0.0
      %1180 = vmatprep.subr.mxu0 0.0
      %1181 = vmatpush1.xpose.msra.mxu0 0.0
      %1182 = vmatprep.subr.mxu0 0.0
      %1183 = vmatpush1.xpose.msra.mxu0 0.0
      %1184 = vmatprep.subr.mxu0 0.0
      %1185 = vmatpush1.xpose.msra.mxu0 0.0
      %1186 = vmatprep.subr.mxu0 0.0
      %1187 = vmatpush1.xpose.msra.mxu0 0.0
      %1188 = vmatprep.subr.mxu0 0.0
      %1189 = vmatpush1.xpose.msra.mxu0 0.0
      %1190 = vmatprep.subr.mxu0 0.0
      %1191 = vmatpush1.xpose.msra.mxu0 0.0
      %1192 = vmatprep.subr.mxu0 0.0
      %1193 = vmatpush1.xpose.msra.mxu0 0.0
      %1194 = vmatprep.subr.mxu0 0.0
      %1195 = vmatpush1.xpose.msra.mxu0 0.0
      %1196 = vmatprep.subr.mxu0 0.0
      %1197 = vmatpush1.xpose.msra.mxu0 0.0
      %1198 = vmatprep.subr.mxu0 0.0
      %1199 = vmatpush1.xpose.msra.mxu0 0.0
      %1200 = vmatprep.subr.mxu0 0.0
      %1201 = vmatpush1.xpose.msra.mxu0 0.0
      %1202 = vmatprep.subr.mxu0 0.0
      %1203 = vmatpush1.xpose.msra.mxu0 0.0
      %1204 = vmatprep.subr.mxu0 0.0
      %1205 = vmatpush1.xpose.msra.mxu0 0.0
      %1206 = vmatprep.subr.mxu0 0.0
      %1207 = vmatpush1.xpose.msra.mxu0 0.0
      %1208 = vmatprep.subr.mxu0 0.0
      %1209 = vmatpush1.xpose.msra.mxu0 0.0
      %1210 = vmatprep.subr.mxu0 0.0
      %1211 = vmatpush1.xpose.msra.mxu0 0.0
      %1212 = vmatprep.subr.mxu0 0.0
      %1213 = vmatpush1.xpose.msra.mxu0 0.0
      %1214 = vmatprep.subr.mxu0 0.0
      %1215 = vmatpush1.xpose.msra.mxu0 0.0
      %1216 = vmatprep.subr.mxu0 0.0
      %1217 = vmatpush1.xpose.msra.mxu0 0.0
      %1218 = vmatprep.subr.mxu0 0.0
      %1219 = vmatpush1.xpose.msra.mxu0 0.0
      %1220 = vmatprep.subr.mxu0 0.0
      %1221 = vmatpush1.xpose.msra.mxu0 0.0
      %1222 = vmatprep.subr.mxu0 0.0
      %1223 = vmatpush1.xpose.msra.mxu0 0.0
      %1224 = vmatprep.subr.mxu0 0.0
      %1225 = vmatpush1.xpose.msra.mxu0 0.0
      %1226 = vmatprep.subr.mxu0 0.0
      %1227 = vmatpush1.xpose.msra.mxu0 0.0
      %1228 = vmatprep.subr.mxu0 0.0
      %1229 = vmatpush1.xpose.msra.mxu0 0.0
      %1230 = vmatprep.subr.mxu0 0.0
      %1231 = vmatpush1.xpose.msra.mxu0 0.0
      %1232 = vmatprep.subr.mxu0 0.0
      %1233 = vmatpush1.xpose.msra.mxu0 0.0
      %1234 = vmatprep.subr.mxu0 0.0
      %1235 = vmatpush1.xpose.msra.mxu0 0.0
      %1236 = vmatprep.subr.mxu0 0.0
      %1237 = vmatpush1.xpose.msra.mxu0 0.0
      %1238 = vmatprep.subr.mxu0 0.0
      %1239 = vmatpush1.xpose.msra.mxu0 0.0
      %1240 = vmatprep.mubr.f32.mxu0 0.0
      %1241 = vmatmul.mubr.f32.gmra.mrb[0].mxu0 %v1172
      %v1242 = vpop.f32.mrb[0].mxu0
      %v1243 = vadd.f32 0.0, %v1242
      %v1244 = vpop.f32.mrb[0].mxu0
      %1245 = vdwg.mxu0
      %v1246 = vsel %vm672, -1e+20, %v1243
      %v1247 = vsel %vm673, %v1246, -inf
      %1248 = vmax.xlane.f32.xlu0 %v1247
      %v1249 = vpop.xlane.xlu0 %1248
      %v1250 = vsub.f32 %v1246, %v1249
      %v1251 = vmul.f32 %v1250, 1.442695
      %v1252 = vpow.pop %v1251
      %v1253 = vsel %vm673, %v1252, 0.0
      %1254 = vadd.xlane.f32.xlu0 %v1253
      %v1255 = vpop.xlane.xlu0 %1254
      %v1256 = vrcp.pop %v1255
      %v1257 = vmul.f32 %v1252, %v1256
      %1258 = vrot.lane.b32.xlu0 %v662, 104
      %v1259 = vpop.permute.xlu0 %1258
      %v1262 = vsel %vm673, %v1257, 0
      %1264 = vmatprep.subr.mxu0 0.0
      %1265 = vmatpush1.msra.mxu0 %v1259
      %1266 = vmatprep.subr.mxu0 0.0
      %1267 = vmatpush1.msra.mxu0 0.0
      %1268 = vmatprep.subr.mxu0 0.0
      %1269 = vmatpush1.msra.mxu0 0.0
      %1270 = vmatprep.subr.mxu0 0.0
      %1271 = vmatpush1.msra.mxu0 0.0
      %1272 = vmatprep.subr.mxu0 0.0
      %1273 = vmatpush1.msra.mxu0 0.0
      %1274 = vmatprep.subr.mxu0 0.0
      %1275 = vmatpush1.msra.mxu0 0.0
      %1276 = vmatprep.subr.mxu0 0.0
      %1277 = vmatpush1.msra.mxu0 0.0
      %1278 = vmatprep.subr.mxu0 0.0
      %1279 = vmatpush1.msra.mxu0 0.0
      %1280 = vmatprep.subr.mxu0 0.0
      %1281 = vmatpush1.msra.mxu0 0.0
      %1282 = vmatprep.subr.mxu0 0.0
      %1283 = vmatpush1.msra.mxu0 0.0
      %1284 = vmatprep.subr.mxu0 0.0
      %1285 = vmatpush1.msra.mxu0 0.0
      %1286 = vmatprep.subr.mxu0 0.0
      %1287 = vmatpush1.msra.mxu0 0.0
      %1288 = vmatprep.subr.mxu0 0.0
      %1289 = vmatpush1.msra.mxu0 0.0
      %1290 = vmatprep.subr.mxu0 0.0
      %1291 = vmatpush1.msra.mxu0 0.0
      %1292 = vmatprep.subr.mxu0 0.0
      %1293 = vmatpush1.msra.mxu0 0.0
      %1294 = vmatprep.subr.mxu0 0.0
      %1295 = vmatpush1.msra.mxu0 0.0
      %1296 = vmatprep.subr.mxu0 0.0
      %1297 = vmatpush1.msra.mxu0 0.0
      %1298 = vmatprep.subr.mxu0 0.0
      %1299 = vmatpush1.msra.mxu0 0.0
      %1300 = vmatprep.subr.mxu0 0.0
      %1301 = vmatpush1.msra.mxu0 0.0
      %1302 = vmatprep.subr.mxu0 0.0
      %1303 = vmatpush1.msra.mxu0 0.0
      %1304 = vmatprep.subr.mxu0 0.0
      %1305 = vmatpush1.msra.mxu0 0.0
      %1306 = vmatprep.subr.mxu0 0.0
      %1307 = vmatpush1.msra.mxu0 0.0
      %1308 = vmatprep.subr.mxu0 0.0
      %1309 = vmatpush1.msra.mxu0 0.0
      %1310 = vmatprep.subr.mxu0 0.0
      %1311 = vmatpush1.msra.mxu0 0.0
      %1312 = vmatprep.subr.mxu0 0.0
      %1313 = vmatpush1.msra.mxu0 0.0
      %1314 = vmatprep.subr.mxu0 0.0
      %1315 = vmatpush1.msra.mxu0 0.0
      %1316 = vmatprep.subr.mxu0 0.0
      %1317 = vmatpush1.msra.mxu0 0.0
      %1318 = vmatprep.subr.mxu0 0.0
      %1319 = vmatpush1.msra.mxu0 0.0
      %1320 = vmatprep.subr.mxu0 0.0
      %1321 = vmatpush1.msra.mxu0 0.0
      %1322 = vmatprep.subr.mxu0 0.0
      %1323 = vmatpush1.msra.mxu0 0.0
      %1324 = vmatprep.subr.mxu0 0.0
      %1325 = vmatpush1.msra.mxu0 0.0
      %1326 = vmatprep.subr.mxu0 0.0
      %1327 = vmatpush1.msra.mxu0 0.0
      %1328 = vmatprep.mubr.f32.mxu0 0.0
      %1329 = vmatmul.mubr.f32.gmra.mrb[0].mxu0 %v1262
      %v1330 = vpop.f32.mrb[0].mxu0
      %v1331 = vadd.f32 0.0, %v1330
      %v1332 = vpop.f32.mrb[0].mxu0
      %1333 = vdwg.mxu0
      %1335 = vrot.lane.b32.xlu0 %v999, 8
      %v1336 = vpop.permute.xlu0 %1335
      %1339 = vrot.lane.b32.xlu0 %v1165, 16
      %v1340 = vpop.permute.xlu0 %1339
      %1343 = vrot.lane.b32.xlu0 %v1331, 24
      %v1344 = vpop.permute.xlu0 %1343
      %v1346 = vsel %vm673, %v832, %v1336
      %vm1347 = vcmask 130048
      %v1348 = vsel %vm1347, %v1346, %v1340
      %vm1349 = vcmask 195584
      %v1350 = vsel %vm1349, %v1348, %v1344
      %v1351 = vld [vmem:[%s7] sm:$0xff]
      %v1352 = vld [vmem:[%s7 + $0x8] sm:$0xff]
      %v1353 = vld [vmem:[%s7 + $0x10] sm:$0xff]
      %v1354 = vld [vmem:[%s7 + $0x18] sm:$0xff]
      %v1355 = vld [vmem:[%s8] sm:$0x1]
      %v1357 = vlaneseq
      %v1358 = vshrl.u32 %v1357, 7
      %v1359 = vsub.s32 0, %v1358
      %v1360 = vrot.slane %v1355, %v1359
      %v1363 = vsel %vm437, %v1350, 0
      %1365 = vmatprep.subr.mxu0 0.0
      %1366 = vmatpush1.msra.mxu0 %v1351
      %1367 = vmatprep.subr.mxu0 0.0
      %1368 = vmatpush1.msra.mxu0 %v1352
      %1369 = vmatprep.subr.mxu0 0.0
      %1370 = vmatpush1.msra.mxu0 %v1353
      %1371 = vmatprep.subr.mxu0 0.0
      %1372 = vmatpush1.msra.mxu0 %v1354
      %1373 = vmatprep.subr.mxu0 0.0
      %1374 = vmatpush1.msra.mxu0 0.0
      %1375 = vmatprep.subr.mxu0 0.0
      %1376 = vmatpush1.msra.mxu0 0.0
      %1377 = vmatprep.subr.mxu0 0.0
      %1378 = vmatpush1.msra.mxu0 0.0
      %1379 = vmatprep.subr.mxu0 0.0
      %1380 = vmatpush1.msra.mxu0 0.0
      %1381 = vmatprep.subr.mxu0 0.0
      %1382 = vmatpush1.msra.mxu0 0.0
      %1383 = vmatprep.subr.mxu0 0.0
      %1384 = vmatpush1.msra.mxu0 0.0
      %1385 = vmatprep.subr.mxu0 0.0
      %1386 = vmatpush1.msra.mxu0 0.0
      %1387 = vmatprep.subr.mxu0 0.0
      %1388 = vmatpush1.msra.mxu0 0.0
      %1389 = vmatprep.subr.mxu0 0.0
      %1390 = vmatpush1.msra.mxu0 0.0
      %1391 = vmatprep.subr.mxu0 0.0
      %1392 = vmatpush1.msra.mxu0 0.0
      %1393 = vmatprep.subr.mxu0 0.0
      %1394 = vmatpush1.msra.mxu0 0.0
      %1395 = vmatprep.subr.mxu0 0.0
      %1396 = vmatpush1.msra.mxu0 0.0
      %1397 = vmatprep.subr.mxu0 0.0
      %1398 = vmatpush1.msra.mxu0 0.0
      %1399 = vmatprep.subr.mxu0 0.0
      %1400 = vmatpush1.msra.mxu0 0.0
      %1401 = vmatprep.subr.mxu0 0.0
      %1402 = vmatpush1.msra.mxu0 0.0
      %1403 = vmatprep.subr.mxu0 0.0
      %1404 = vmatpush1.msra.mxu0 0.0
      %1405 = vmatprep.subr.mxu0 0.0
      %1406 = vmatpush1.msra.mxu0 0.0
      %1407 = vmatprep.subr.mxu0 0.0
      %1408 = vmatpush1.msra.mxu0 0.0
      %1409 = vmatprep.subr.mxu0 0.0
      %1410 = vmatpush1.msra.mxu0 0.0
      %1411 = vmatprep.subr.mxu0 0.0
      %1412 = vmatpush1.msra.mxu0 0.0
      %1413 = vmatprep.subr.mxu0 0.0
      %1414 = vmatpush1.msra.mxu0 0.0
      %1415 = vmatprep.subr.mxu0 0.0
      %1416 = vmatpush1.msra.mxu0 0.0
      %1417 = vmatprep.subr.mxu0 0.0
      %1418 = vmatpush1.msra.mxu0 0.0
      %1419 = vmatprep.subr.mxu0 0.0
      %1420 = vmatpush1.msra.mxu0 0.0
      %1421 = vmatprep.subr.mxu0 0.0
      %1422 = vmatpush1.msra.mxu0 0.0
      %1423 = vmatprep.subr.mxu0 0.0
      %1424 = vmatpush1.msra.mxu0 0.0
      %1425 = vmatprep.subr.mxu0 0.0
      %1426 = vmatpush1.msra.mxu0 0.0
      %1427 = vmatprep.subr.mxu0 0.0
      %1428 = vmatpush1.msra.mxu0 0.0
      %1429 = vmatprep.mubr.f32.mxu0 0.0
      %1430 = vmatmul.mubr.f32.gmra.mrb[0].mxu0 %v1363
      %v1431 = vpop.f32.mrb[0].mxu0
      %v1432 = vadd.f32 %v1360, %v1431
      %v1433 = vpop.f32.mrb[0].mxu0
      %1434 = vdwg.mxu0
      %v1435 = vadd.f32 %v1432, %v432
      %v1436 = vsel %vm437, %v1435, 0.0
      %1437 = vadd.xlane.f32.xlu0 %v1436
      %v1438 = vpop.xlane.xlu0 %1437
      %v1439 = vrcp.pop 32.0
      %v1440 = vmul.f32 %v1438, %v1439
      %v1441 = vsub.f32 %v1435, %v1440
      %v1442 = vmul.f32 %v1441, %v1441
      %v1443 = vsel %vm437, %v1442, 0.0
      %1444 = vadd.xlane.f32.xlu0 %v1443
      %v1445 = vpop.xlane.xlu0 %1444
      %v1446 = vmul.f32 %v1445, %v1439
      %v1447 = vadd.f32 %v1446, 1e-05
      %v1448 = vrsqrt.pop %v1447
      %v1449 = vmul.f32 %v1441, %v1448
      %v1450 = vld [vmem:[%s9] sm:$0x1]
      %v1452 = vlaneseq
      %v1453 = vshrl.u32 %v1452, 7
      %v1454 = vsub.s32 0, %v1453
      %v1455 = vrot.slane %v1450, %v1454
      %v1457 = vmul.f32 %v1449, %v1455
      %v1458 = vld [vmem:[%s10] sm:$0x1]
      %v1460 = vlaneseq
      %v1461 = vshrl.u32 %v1460, 7
      %v1462 = vsub.s32 0, %v1461
      %v1463 = vrot.slane %v1458, %v1462
      %v1465 = vadd.f32 %v1457, %v1463
      %1466 = vst.msk [vmem:[%s429] sm:$0xff] %vm437, %v1465
      %p1467 = scmp.lt.s32.totalorder %s22, 1
      %s1468 = scalar_select %p1467, %s22, 1
      %s1469 = smul.addr %s1468, 8
      %s1470 = scalar_lea.vmem %s11, %s1469
      // Predicated region
      $region65: #{transformer_forward.11} parent=63 // pred_check
        %p1471 = pneg %p291
      $region66: #{transformer_forward.11} parent=63 // pred_check_branch
        %1473 = sbr.rel (%p1471) target = $region68
      $region67: #{transformer_forward.11} parent=63 // pred_region
        _
      $region68: #{transformer_forward.11} parent=63 // pred_fallthru
        _
    $region64: #{transformer_forward.11} parent=5 // pred_fallthru
      _
    %p1474 = scmp.le.s32.totalorder 2, %s17
    // Predicated region
    $region69: #{transformer_forward.11} parent=5 // pred_check
      %p1475 = pneg %p1474
    $region70: #{transformer_forward.11} parent=5 // pred_check_branch
      %1477 = sbr.rel (%p1475) target = $region72
    $region71: #{transformer_forward.11} parent=5 // pred_region
      %s1478 = ssub.s32 %s17, 2
      // Predicated region
      $region73: #{transformer_forward.11} parent=71 // pred_check
        %p1479 = pneg %p297
      $region74: #{transformer_forward.11} parent=71 // pred_check_branch
        %1481 = sbr.rel (%p1479) target = $region76
      $region75: #{transformer_forward.11} parent=71 // pred_region
        %p1482 = scmp.lt.s32.totalorder %s23, 1
        %s1483 = scalar_select %p1482, %s23, 1
        %s1484 = smul.addr %s1483, 8
        %s1485 = scalar_lea.vmem %s11, %s1484
      $region76: #{transformer_forward.11} parent=71 // pred_fallthru
        _
    $region72: #{transformer_forward.11} parent=5 // pred_fallthru
      _
  $region6: #{transformer_forward.11} parent=0 // loop_footer
    %s21 = sadd.s32 1, %s17
  $region7: #{transformer_forward.11} parent=0 // loop_footer_branch
    %16 = sbr.rel target = $region3
  $region8: #{transformer_forward.11} parent=0 // loop_exit
    _

</llo_original>
